<compile_context>
chip_gen: v6e
topology: v6e:2x2x1
jax: 0.10.0
libtpu: 0.0.40
codegen_flags: <defaults>
</compile_context>

<pallas_src>
import jax
import jax.numpy as jnp
import numpy as np
from jax.experimental import pallas as pl
from jax.experimental.pallas import tpu as pltpu


# ---------------------------------------------------------------------------
# Small static helpers
# ---------------------------------------------------------------------------
def _round_up(x, m):
    return (x + m - 1) // m * m


def _choose_tile(dim, max_tile, align=128):
    """Pick (tile, padded_dim): tile % align == 0, tile <= max_tile,
    padded_dim % tile == 0.

    Searches the two smallest feasible tile counts and keeps the one with the
    least padding (e.g. K=2592, max 512 -> tile 384 / padded 2688 rather than
    512 / 3072), tie-broken toward fewer grid steps, then larger tiles.
    """
    assert max_tile % align == 0
    dim = max(int(dim), 1)
    n_min = -(-dim // max_tile)
    best_key, best_tile, best_pad = None, None, None
    for n in (n_min, n_min + 1):
        tile = min(_round_up(-(-dim // n), align), max_tile)
        padded = _round_up(dim, tile)
        key = (padded, padded // tile, -tile)
        if best_key is None or key < best_key:
            best_key, best_tile, best_pad = key, tile, padded
    return best_tile, best_pad


# ---------------------------------------------------------------------------
# Pallas kernels
# ---------------------------------------------------------------------------
def _matmul_bn_relu_kernel(p_ref, w_ref, s_ref, b_ref, o_ref, acc_ref):
    """One (TM, TN) output tile of relu((P @ W) * scale + bias), K-axis grid.

    p_ref:   (TM, TK)  bf16 im2col patches tile
    w_ref:   (TK, TN)  bf16 (unscaled) weight tile
    s_ref:   (1,  TN)  f32  folded BN scale
    b_ref:   (1,  TN)  f32  folded BN bias
    o_ref:   (TM, TN)  output tile (f32 or bf16)
    acc_ref: (TM, TN)  f32  VMEM accumulator scratch (lives across the K axis)
    """
    @pl.when(pl.program_id(2) == 0)
    def _():
        acc_ref[...] = jnp.zeros_like(acc_ref)

    acc_ref[...] += jnp.dot(
        p_ref[...], w_ref[...], preferred_element_type=jnp.float32
    )

    @pl.when(pl.program_id(2) == pl.num_programs(2) - 1)
    def _():
        o_ref[...] = jnp.maximum(
            acc_ref[...] * s_ref[...] + b_ref[...], 0.0
        ).astype(o_ref.dtype)


def _matmul_bn_relu_single_k_kernel(p_ref, w_ref, s_ref, b_ref, o_ref):
    """Single-K-step variant: no accumulator scratch, write straight to o_ref."""
    acc = jnp.dot(p_ref[...], w_ref[...], preferred_element_type=jnp.float32)
    o_ref[...] = jnp.maximum(acc * s_ref[...] + b_ref[...], 0.0).astype(o_ref.dtype)


def _maxpool_kernel(xe_ref, xo_ref, o_ref):
    """3x3 / stride-2 max pool of one image, unit-stride slices only.

    xe_ref: (1, H, W2, C)  even input columns   xe[:, h, k, :] = x[:, h, 2k,   :]
    xo_ref: (1, H, W2, C)  odd  input columns   xo[:, h, k, :] = x[:, h, 2k+1, :]
    o_ref : (1, Ho, Wo, C)
    """
    Ho, Wo = o_ref.shape[1], o_ref.shape[2]
    for ho in range(Ho):
        row_max = None
        for i in range(3):
            e_row = xe_ref[0, 2 * ho + i]    # (W2, C)
            o_row = xo_ref[0, 2 * ho + i]    # (W2, C)
            # columns 2wo, 2wo+2, 2wo+1  ->  xe[wo], xe[wo+1], xo[wo]
            for tap in (e_row[0:Wo], e_row[1:Wo + 1], o_row[0:Wo]):
                row_max = tap if row_max is None else jnp.maximum(row_max, tap)
        o_ref[0, ho] = row_max


# ---------------------------------------------------------------------------
# Tiled pallas_call wrappers
# ---------------------------------------------------------------------------
def matmul_bn_relu(p, w, scale, bias, *, out_dtype=jnp.float32,
                   tm=1024, tn=512, tk=512, vmem_limit=48 * 1024 * 1024):
    """relu((p @ w) * scale + bias); bf16 MXU operands, f32 acc + epilogue."""
    M, K = p.shape
    _, N = w.shape
    TM, Mp = _choose_tile(M, tm, align=8)      # sublane dim: 8-aligned is enough
    TN, Np = _choose_tile(N, tn, align=128)    # lane dims: keep 128-aligned
    TK, Kp = _choose_tile(K, tk, align=128)

    # v7x has 2 TensorCores sharing the parallel grid axes: keep >= 2 blocks.
    if (Mp // TM) * (Np // TN) < 2 and Mp >= 16:
        TM = _round_up(-(-Mp // 2), 8)
        Mp = 2 * TM

    # TODO(synk): build the taps directly into a pre-padded (Mp, Kp) buffer (or
    # read them from the NHWC tensor via element-offset index_maps, i.e. a true
    # direct conv for the stride-1/pad-1 case) to avoid this extra full-HBM
    # pad copy of the patch matrix.
    p_b = jnp.pad(p, ((0, Mp - M), (0, Kp - K))).astype(jnp.bfloat16)
    w_b = jnp.pad(w, ((0, Kp - K), (0, Np - N))).astype(jnp.bfloat16)
    s_b = jnp.pad(scale, (0, Np - N)).astype(jnp.float32).reshape(1, Np)
    b_b = jnp.pad(bias, (0, Np - N)).astype(jnp.float32).reshape(1, Np)

    nM, nN, nK = Mp // TM, Np // TN, Kp // TK

    if nK == 1:
        out = pl.pallas_call(
            _matmul_bn_relu_single_k_kernel,
            out_shape=jax.ShapeDtypeStruct((Mp, Np), out_dtype),
            grid_spec=pltpu.PrefetchScalarGridSpec(
                num_scalar_prefetch=0,
                grid=(nM, nN),
                in_specs=[
                    pl.BlockSpec((TM, TK), lambda i, j: (i, 0)),
                    pl.BlockSpec((TK, TN), lambda i, j: (0, j)),
                    pl.BlockSpec((1, TN), lambda i, j: (0, j)),
                    pl.BlockSpec((1, TN), lambda i, j: (0, j)),
                ],
                out_specs=pl.BlockSpec((TM, TN), lambda i, j: (i, j)),
            ),
            compiler_params=pltpu.CompilerParams(
                dimension_semantics=("parallel", "parallel"),
                vmem_limit_bytes=vmem_limit,
            ),
        )(p_b, w_b, s_b, b_b)
    else:
        out = pl.pallas_call(
            _matmul_bn_relu_kernel,
            out_shape=jax.ShapeDtypeStruct((Mp, Np), out_dtype),
            grid_spec=pltpu.PrefetchScalarGridSpec(
                num_scalar_prefetch=0,
                grid=(nM, nN, nK),
                in_specs=[
                    pl.BlockSpec((TM, TK), lambda i, j, k: (i, k)),
                    pl.BlockSpec((TK, TN), lambda i, j, k: (k, j)),
                    pl.BlockSpec((1, TN), lambda i, j, k: (0, j)),
                    pl.BlockSpec((1, TN), lambda i, j, k: (0, j)),
                ],
                out_specs=pl.BlockSpec((TM, TN), lambda i, j, k: (i, j)),
                scratch_shapes=[pltpu.VMEM((TM, TN), jnp.float32)],
            ),
            compiler_params=pltpu.CompilerParams(
                dimension_semantics=("parallel", "parallel", "arbitrary"),
                vmem_limit_bytes=vmem_limit,
            ),
        )(p_b, w_b, s_b, b_b)
    return out[:M, :N]


def _extract_patches(x_nhwc, kh, kw, stride, padding):
    """Return (N, Ho, Wo, KH*KW, C) patches with (i, j, c) ordering."""
    if padding:
        x_nhwc = jnp.pad(
            x_nhwc, ((0, 0), (padding, padding), (padding, padding), (0, 0))
        )
    N, H, W, C = x_nhwc.shape
    Ho = (H - kh) // stride + 1
    Wo = (W - kw) // stride + 1
    taps = []
    for i in range(kh):
        for j in range(kw):
            taps.append(
                jax.lax.slice(
                    x_nhwc,
                    (0, i, j, 0),
                    (N, i + stride * (Ho - 1) + 1, j + stride * (Wo - 1) + 1, C),
                    (1, stride, stride, 1),
                )
            )
    patches = jnp.stack(taps, axis=3)  # (N, Ho, Wo, KH*KW, C)
    return patches, Ho, Wo


def conv_bn_relu(x_nhwc, params, *, stride=1, padding=0, eps=1e-3,
                 out_dtype=jnp.float32):
    """BasicConv2d: conv(bias=False) -> BatchNorm2d(eps=0.001, eval) -> ReLU."""
    w_oihw = params["w"]
    Cout, Cin, KH, KW = w_oihw.shape
    scale = params["gamma"] / jnp.sqrt(params["var"] + eps)   # f32, epilogue
    bias = params["beta"] - params["mean"] * scale            # f32, epilogue
    # OIHW -> HWIO -> (KH*KW*Cin, Cout), matching the (i, j, c) patch ordering.
    # Weights stay UNSCALED (bf16); the BN scale is applied in f32 in the
    # kernel epilogue (precision-safe when var is small).
    w2 = jnp.transpose(w_oihw, (2, 3, 1, 0)).reshape(KH * KW * Cin, Cout)

    N = x_nhwc.shape[0]
    x_b = x_nhwc.astype(jnp.bfloat16)  # bf16 MXU operands, f32 accumulation
    if KH == 1 and KW == 1 and stride == 1 and padding == 0:
        # 1x1 conv needs no im2col at all (single-K-step kernel, no scratch).
        _, Ho, Wo, _ = x_nhwc.shape
        p2 = x_b.reshape(N * Ho * Wo, Cin)
    else:
        # TODO(synk): the stride-1/pad-1 conv (branch3x3dbl_2) could skip
        # im2col entirely (9 shifted matmuls over the padded NHWC input with
        # the tap folded into the K grid axis); kept as bf16 im2col for now.
        patches, Ho, Wo = _extract_patches(x_b, KH, KW, stride, padding)
        p2 = patches.reshape(N * Ho * Wo, KH * KW * Cin)

    out = matmul_bn_relu(p2, w2, scale, bias, out_dtype=out_dtype)
    return out.reshape(N, Ho, Wo, Cout)


def maxpool_3x3_s2(x_nhwc):
    """F.max_pool2d(x, kernel_size=3, stride=2) (no padding)."""
    N, H, W, C = x_nhwc.shape
    Ho = (H - 3) // 2 + 1
    Wo = (W - 3) // 2 + 1

    # Split W into even/odd columns (free reshape + one lane slice each) so the
    # kernel only needs unit-stride slices -- no (M, 9, C) patch blow-up.
    We = W + (W % 2)
    xp = x_nhwc
    if We != W:
        xp = jnp.pad(x_nhwc, ((0, 0), (0, 0), (0, 1), (0, 0)),
                     constant_values=-jnp.inf)
    W2 = We // 2
    xr = xp.reshape(N, H, W2, 2 * C)
    xe = xr[..., :C]          # xe[n, h, k, c] = x[n, h, 2k,   c]
    xo = xr[..., C:]          # xo[n, h, k, c] = x[n, h, 2k+1, c]

    out = pl.pallas_call(
        _maxpool_kernel,
        out_shape=jax.ShapeDtypeStruct((N, Ho, Wo, C), x_nhwc.dtype),
        grid_spec=pltpu.PrefetchScalarGridSpec(
            num_scalar_prefetch=0,
            grid=(N,),
            in_specs=[
                pl.BlockSpec((1, H, W2, C), lambda n: (n, 0, 0, 0)),
                pl.BlockSpec((1, H, W2, C), lambda n: (n, 0, 0, 0)),
            ],
            out_specs=pl.BlockSpec((1, Ho, Wo, C), lambda n: (n, 0, 0, 0)),
        ),
        compiler_params=pltpu.CompilerParams(
            dimension_semantics=("parallel",),
        ),
    )(xe, xo)
    return out


def inception_b_forward(x_nchw, params):
    """InceptionB.forward.  Input NCHW, output NCHW (concat along channels)."""
    x = jnp.transpose(x_nchw, (0, 2, 3, 1))  # NCHW -> NHWC

    # Convs feeding the concat stay f32 (module output dtype); intermediates
    # in the double-3x3 branch are written in bf16 (next conv eats bf16 anyway).
    branch3x3 = conv_bn_relu(x, params["branch3x3"], stride=2,
                             out_dtype=jnp.float32)

    d = conv_bn_relu(x, params["branch3x3dbl_1"], stride=1,
                     out_dtype=jnp.bfloat16)
    d = conv_bn_relu(d, params["branch3x3dbl_2"], stride=1, padding=1,
                     out_dtype=jnp.bfloat16)
    d = conv_bn_relu(d, params["branch3x3dbl_3"], stride=2,
                     out_dtype=jnp.float32)

    branch_pool = maxpool_3x3_s2(x)

    out = jnp.concatenate([branch3x3, d, branch_pool], axis=-1)
    return jnp.transpose(out, (0, 3, 1, 2))  # NHWC -> NCHW


# ---------------------------------------------------------------------------
# Deterministic parameter initialization (shapes from InceptionB.__init__)
# ---------------------------------------------------------------------------
def init_basic_conv(key, cin, cout, ksize):
    k1, k2, k3, k4, k5 = jax.random.split(key, 5)
    fan_in = cin * ksize * ksize
    return {
        "w": jax.random.normal(k1, (cout, cin, ksize, ksize), jnp.float32)
        * (1.0 / np.sqrt(fan_in)),
        "gamma": jax.random.uniform(k2, (cout,), jnp.float32, 0.5, 1.5),
        "beta": jax.random.normal(k3, (cout,), jnp.float32) * 0.1,
        "mean": jax.random.normal(k4, (cout,), jnp.float32) * 0.1,
        "var": jax.random.uniform(k5, (cout,), jnp.float32, 0.5, 1.5),
    }


# ---------------------------------------------------------------------------
# Pure-JAX f32 reference (true module semantics, for a correctness check)
# ---------------------------------------------------------------------------
def _ref_conv_bn_relu(x_nhwc, params, stride, padding, eps=1e-3):
    w = jnp.transpose(params["w"], (2, 3, 1, 0))  # OIHW -> HWIO
    y = jax.lax.conv_general_dilated(
        x_nhwc,
        w,
        (stride, stride),
        [(padding, padding), (padding, padding)],
        dimension_numbers=("NHWC", "HWIO", "NHWC"),
        precision=jax.lax.Precision.HIGHEST,
    )
    scale = params["gamma"] / jnp.sqrt(params["var"] + eps)
    bias = params["beta"] - params["mean"] * scale
    return jnp.maximum(y * scale + bias, 0.0)


def _ref_forward(x_nchw, params):
    x = jnp.transpose(x_nchw, (0, 2, 3, 1))
    b3 = _ref_conv_bn_relu(x, params["branch3x3"], 2, 0)
    d = _ref_conv_bn_relu(x, params["branch3x3dbl_1"], 1, 0)
    d = _ref_conv_bn_relu(d, params["branch3x3dbl_2"], 1, 1)
    d = _ref_conv_bn_relu(d, params["branch3x3dbl_3"], 2, 0)
    bp = jax.lax.reduce_window(
        x, -jnp.inf, jax.lax.max, (1, 3, 3, 1), (1, 2, 2, 1), "VALID"
    )
    out = jnp.concatenate([b3, d, bp], axis=-1)
    return jnp.transpose(out, (0, 3, 1, 2))


if __name__ == "__main__":
    key = jax.random.PRNGKey(0)
    kx, kp = jax.random.split(key)
    in_channels = 4
    B, H, W = 2, 16, 16
    x = jax.random.normal(kx, (B, in_channels, H, W), jnp.float32)

    kb = jax.random.split(kp, 4)
    params = {
        "branch3x3": init_basic_conv(kb[0], in_channels, 384, 3),
        "branch3x3dbl_1": init_basic_conv(kb[1], in_channels, 64, 1),
        "branch3x3dbl_2": init_basic_conv(kb[2], 64, 96, 3),
        "branch3x3dbl_3": init_basic_conv(kb[3], 96, 96, 3),
    }

    fwd = jax.jit(inception_b_forward)
    out = jax.block_until_ready(fwd(x, params))

    Ho = (H - 3) // 2 + 1
    expected_shape = (B, 384 + 96 + in_channels, Ho, Ho)
    assert out.shape == expected_shape, (out.shape, expected_shape)
    assert out.dtype == jnp.float32

    # bf16 MXU operands / bf16 intermediates vs. f32 HIGHEST-precision
    # reference: tolerance relaxed accordingly; any indexing/tiling/BN bug
    # would show up as an O(1) error.
    ref = jax.block_until_ready(_ref_forward(x, params))
    np.testing.assert_allclose(np.asarray(out), np.asarray(ref), rtol=5e-2, atol=5e-2)

    print("KERNEL_OK")
</pallas_src>

<mosaic_0001>
module attributes {stable_mosaic.version = 11 : i64} {
  func.func @_matmul_bn_relu_single_k_kernel(%arg0: i32, %arg1: i32, %arg2: memref<256x128xbf16, #tpu.memory_space<vmem>>, %arg3: memref<128x128xbf16, #tpu.memory_space<vmem>>, %arg4: memref<1x128xf32, #tpu.memory_space<vmem>>, %arg5: memref<1x128xf32, #tpu.memory_space<vmem>>, %arg6: memref<256x128xbf16, #tpu.memory_space<vmem>>) attributes {dimension_semantics = [#tpu.dimension_semantics<parallel>, #tpu.dimension_semantics<parallel>], iteration_bounds = array<i64: 2, 1>, scalar_prefetch = 0 : i64, scratch_operands = 0 : i64, tpu.core_type = #tpu.core_type<tc>, window_params = [{transform_indices = @transform_0, window_bounds = array<i64: 256, 128>}, {transform_indices = @transform_1, window_bounds = array<i64: 128, 128>}, {transform_indices = @transform_2, window_bounds = array<i64: 1, 128>}, {transform_indices = @transform_3, window_bounds = array<i64: 1, 128>}, {transform_indices = @transform_4, window_bounds = array<i64: 256, 128>}]} {
    %c0 = arith.constant 0 : index
    %c0_0 = arith.constant 0 : index
    %0 = vector.load %arg2[%c0, %c0_0] : memref<256x128xbf16, #tpu.memory_space<vmem>>, vector<256x128xbf16>
    %c0_1 = arith.constant 0 : index
    %c0_2 = arith.constant 0 : index
    %1 = vector.load %arg3[%c0_1, %c0_2] : memref<128x128xbf16, #tpu.memory_space<vmem>>, vector<128x128xbf16>
    %cst = arith.constant dense<0.000000e+00> : vector<256x128xf32>
    %2 = tpu.matmul %0, %1, %cst {dimension_numbers = #tpu.dot_dimension_numbers<[1], [0], [0], [1], [0, 0, 1, 1], [], []>} : vector<256x128xbf16>, vector<128x128xbf16>, vector<256x128xf32> -> vector<256x128xf32>
    %c0_3 = arith.constant 0 : index
    %c0_4 = arith.constant 0 : index
    %3 = vector.load %arg4[%c0_3, %c0_4] : memref<1x128xf32, #tpu.memory_space<vmem>>, vector<1x128xf32>
    %4 = vector.broadcast %3 : vector<1x128xf32> to vector<256x128xf32>
    %5 = arith.mulf %2, %4 : vector<256x128xf32>
    %c0_5 = arith.constant 0 : index
    %c0_6 = arith.constant 0 : index
    %6 = vector.load %arg5[%c0_5, %c0_6] : memref<1x128xf32, #tpu.memory_space<vmem>>, vector<1x128xf32>
    %7 = vector.broadcast %6 : vector<1x128xf32> to vector<256x128xf32>
    %8 = arith.addf %5, %7 : vector<256x128xf32>
    %cst_7 = arith.constant 0.000000e+00 : f32
    %9 = vector.broadcast %cst_7 : f32 to vector<256x128xf32>
    %10 = arith.maximumf %8, %9 : vector<256x128xf32>
    %11 = arith.truncf %10 : vector<256x128xf32> to vector<256x128xbf16>
    %c0_8 = arith.constant 0 : index
    %c0_9 = arith.constant 0 : index
    %12 = vector.load %arg6[%c0_8, %c0_9] : memref<256x128xbf16, #tpu.memory_space<vmem>>, vector<256x128xbf16>
    tpu.vector_store %arg6[%c0_8, %c0_9], %11 {strides = array<i32>} : memref<256x128xbf16, #tpu.memory_space<vmem>>, vector<256x128xbf16>,
    return
  }
  func.func @transform_0(%arg0: i32, %arg1: i32) -> (i32, i32) {
    %c0_i32 = arith.constant 0 : i32
    %c0_i32_0 = arith.constant 0 : i32
    return %arg0, %c0_i32 : i32, i32
  }
  func.func @transform_1(%arg0: i32, %arg1: i32) -> (i32, i32) {
    %c0_i32 = arith.constant 0 : i32
    %c0_i32_0 = arith.constant 0 : i32
    return %c0_i32, %arg1 : i32, i32
  }
  func.func @transform_2(%arg0: i32, %arg1: i32) -> (i32, i32) {
    %c0_i32 = arith.constant 0 : i32
    %c0_i32_0 = arith.constant 0 : i32
    return %c0_i32, %arg1 : i32, i32
  }
  func.func @transform_3(%arg0: i32, %arg1: i32) -> (i32, i32) {
    %c0_i32 = arith.constant 0 : i32
    %c0_i32_0 = arith.constant 0 : i32
    return %c0_i32, %arg1 : i32, i32
  }
  func.func @transform_4(%arg0: i32, %arg1: i32) -> (i32, i32) {
    %c0_i32 = arith.constant 0 : i32
    return %arg0, %arg1 : i32, i32
  }
}

module attributes {stable_mosaic.version = 11 : i64} {
  func.func @_matmul_bn_relu_kernel(%arg0: i32, %arg1: i32, %arg2: i32, %arg3: memref<256x384xbf16, #tpu.memory_space<vmem>>, %arg4: memref<384x128xbf16, #tpu.memory_space<vmem>>, %arg5: memref<1x128xf32, #tpu.memory_space<vmem>>, %arg6: memref<1x128xf32, #tpu.memory_space<vmem>>, %arg7: memref<256x128xbf16, #tpu.memory_space<vmem>>, %arg8: memref<256x128xf32, #tpu.memory_space<vmem>>) attributes {dimension_semantics = [#tpu.dimension_semantics<parallel>, #tpu.dimension_semantics<parallel>, #tpu.dimension_semantics<arbitrary>], iteration_bounds = array<i64: 2, 1, 2>, scalar_prefetch = 0 : i64, scratch_operands = 1 : i64, tpu.core_type = #tpu.core_type<tc>, window_params = [{transform_indices = @transform_0, window_bounds = array<i64: 256, 384>}, {transform_indices = @transform_1, window_bounds = array<i64: 384, 128>}, {transform_indices = @transform_2, window_bounds = array<i64: 1, 128>}, {transform_indices = @transform_3, window_bounds = array<i64: 1, 128>}, {transform_indices = @transform_4, window_bounds = array<i64: 256, 128>}]} {
    %c0_i32 = arith.constant 0 : i32
    %0 = arith.cmpi eq, %arg2, %c0_i32 : i32
    %1 = arith.extui %0 : i1 to i32
    %c0_i32_0 = arith.constant 0 : i32
    %2 = arith.cmpi ne, %1, %c0_i32_0 : i32
    scf.if %2 {
      %cst_9 = arith.constant 0.000000e+00 : f32
      %12 = vector.broadcast %cst_9 : f32 to vector<256x128xf32>
      %c0_10 = arith.constant 0 : index
      %c0_11 = arith.constant 0 : index
      %13 = vector.load %arg8[%c0_10, %c0_11] : memref<256x128xf32, #tpu.memory_space<vmem>>, vector<256x128xf32>
      tpu.vector_store %arg8[%c0_10, %c0_11], %12 {strides = array<i32>} : memref<256x128xf32, #tpu.memory_space<vmem>>, vector<256x128xf32>,
    } else {
    }
    %c0 = arith.constant 0 : index
    %c0_1 = arith.constant 0 : index
    %3 = vector.load %arg8[%c0, %c0_1] : memref<256x128xf32, #tpu.memory_space<vmem>>, vector<256x128xf32>
    %c0_2 = arith.constant 0 : index
    %c0_3 = arith.constant 0 : index
    %4 = vector.load %arg3[%c0_2, %c0_3] : memref<256x384xbf16, #tpu.memory_space<vmem>>, vector<256x384xbf16>
    %c0_4 = arith.constant 0 : index
    %c0_5 = arith.constant 0 : index
    %5 = vector.load %arg4[%c0_4, %c0_5] : memref<384x128xbf16, #tpu.memory_space<vmem>>, vector<384x128xbf16>
    %cst = arith.constant dense<0.000000e+00> : vector<256x128xf32>
    %6 = tpu.matmul %4, %5, %cst {dimension_numbers = #tpu.dot_dimension_numbers<[1], [0], [0], [1], [0, 0, 1, 1], [], []>} : vector<256x384xbf16>, vector<384x128xbf16>, vector<256x128xf32> -> vector<256x128xf32>
    %7 = arith.addf %3, %6 : vector<256x128xf32>
    %c0_6 = arith.constant 0 : index
    %c0_7 = arith.constant 0 : index
    %8 = vector.load %arg8[%c0_6, %c0_7] : memref<256x128xf32, #tpu.memory_space<vmem>>, vector<256x128xf32>
    tpu.vector_store %arg8[%c0_6, %c0_7], %7 {strides = array<i32>} : memref<256x128xf32, #tpu.memory_space<vmem>>, vector<256x128xf32>,
    %c1_i32 = arith.constant 1 : i32
    %9 = arith.cmpi eq, %arg2, %c1_i32 : i32
    %10 = arith.extui %9 : i1 to i32
    %c0_i32_8 = arith.constant 0 : i32
    %11 = arith.cmpi ne, %10, %c0_i32_8 : i32
    scf.if %11 {
      %c0_9 = arith.constant 0 : index
      %c0_10 = arith.constant 0 : index
      %12 = vector.load %arg8[%c0_9, %c0_10] : memref<256x128xf32, #tpu.memory_space<vmem>>, vector<256x128xf32>
      %c0_11 = arith.constant 0 : index
      %c0_12 = arith.constant 0 : index
      %13 = vector.load %arg5[%c0_11, %c0_12] : memref<1x128xf32, #tpu.memory_space<vmem>>, vector<1x128xf32>
      %14 = vector.broadcast %13 : vector<1x128xf32> to vector<256x128xf32>
      %15 = arith.mulf %12, %14 : vector<256x128xf32>
      %c0_13 = arith.constant 0 : index
      %c0_14 = arith.constant 0 : index
      %16 = vector.load %arg6[%c0_13, %c0_14] : memref<1x128xf32, #tpu.memory_space<vmem>>, vector<1x128xf32>
      %17 = vector.broadcast %16 : vector<1x128xf32> to vector<256x128xf32>
      %18 = arith.addf %15, %17 : vector<256x128xf32>
      %cst_15 = arith.constant 0.000000e+00 : f32
      %19 = vector.broadcast %cst_15 : f32 to vector<256x128xf32>
      %20 = arith.maximumf %18, %19 : vector<256x128xf32>
      %21 = arith.truncf %20 : vector<256x128xf32> to vector<256x128xbf16>
      %c0_16 = arith.constant 0 : index
      %c0_17 = arith.constant 0 : index
      %22 = vector.load %arg7[%c0_16, %c0_17] : memref<256x128xbf16, #tpu.memory_space<vmem>>, vector<256x128xbf16>
      tpu.vector_store %arg7[%c0_16, %c0_17], %21 {strides = array<i32>} : memref<256x128xbf16, #tpu.memory_space<vmem>>, vector<256x128xbf16>,
    } else {
    }
    return
  }
  func.func @transform_0(%arg0: i32, %arg1: i32, %arg2: i32) -> (i32, i32) {
    %c0_i32 = arith.constant 0 : i32
    return %arg0, %arg2 : i32, i32
  }
  func.func @transform_1(%arg0: i32, %arg1: i32, %arg2: i32) -> (i32, i32) {
    %c0_i32 = arith.constant 0 : i32
    return %arg2, %arg1 : i32, i32
  }
  func.func @transform_2(%arg0: i32, %arg1: i32, %arg2: i32) -> (i32, i32) {
    %c0_i32 = arith.constant 0 : i32
    %c0_i32_0 = arith.constant 0 : i32
    return %c0_i32, %arg1 : i32, i32
  }
  func.func @transform_3(%arg0: i32, %arg1: i32, %arg2: i32) -> (i32, i32) {
    %c0_i32 = arith.constant 0 : i32
    %c0_i32_0 = arith.constant 0 : i32
    return %c0_i32, %arg1 : i32, i32
  }
  func.func @transform_4(%arg0: i32, %arg1: i32, %arg2: i32) -> (i32, i32) {
    %c0_i32 = arith.constant 0 : i32
    return %arg0, %arg1 : i32, i32
  }
}

module attributes {stable_mosaic.version = 11 : i64} {
  func.func @_matmul_bn_relu_kernel(%arg0: i32, %arg1: i32, %arg2: i32, %arg3: memref<56x512xbf16, #tpu.memory_space<vmem>>, %arg4: memref<512x128xbf16, #tpu.memory_space<vmem>>, %arg5: memref<1x128xf32, #tpu.memory_space<vmem>>, %arg6: memref<1x128xf32, #tpu.memory_space<vmem>>, %arg7: memref<56x128xf32, #tpu.memory_space<vmem>>, %arg8: memref<56x128xf32, #tpu.memory_space<vmem>>) attributes {dimension_semantics = [#tpu.dimension_semantics<parallel>, #tpu.dimension_semantics<parallel>, #tpu.dimension_semantics<arbitrary>], iteration_bounds = array<i64: 2, 1, 2>, scalar_prefetch = 0 : i64, scratch_operands = 1 : i64, tpu.core_type = #tpu.core_type<tc>, window_params = [{transform_indices = @transform_0, window_bounds = array<i64: 56, 512>}, {transform_indices = @transform_1, window_bounds = array<i64: 512, 128>}, {transform_indices = @transform_2, window_bounds = array<i64: 1, 128>}, {transform_indices = @transform_3, window_bounds = array<i64: 1, 128>}, {transform_indices = @transform_4, window_bounds = array<i64: 56, 128>}]} {
    %c0_i32 = arith.constant 0 : i32
    %0 = arith.cmpi eq, %arg2, %c0_i32 : i32
    %1 = arith.extui %0 : i1 to i32
    %c0_i32_0 = arith.constant 0 : i32
    %2 = arith.cmpi ne, %1, %c0_i32_0 : i32
    scf.if %2 {
      %cst_9 = arith.constant 0.000000e+00 : f32
      %12 = vector.broadcast %cst_9 : f32 to vector<56x128xf32>
      %c0_10 = arith.constant 0 : index
      %c0_11 = arith.constant 0 : index
      %13 = vector.load %arg8[%c0_10, %c0_11] : memref<56x128xf32, #tpu.memory_space<vmem>>, vector<56x128xf32>
      tpu.vector_store %arg8[%c0_10, %c0_11], %12 {strides = array<i32>} : memref<56x128xf32, #tpu.memory_space<vmem>>, vector<56x128xf32>,
    } else {
    }
    %c0 = arith.constant 0 : index
    %c0_1 = arith.constant 0 : index
    %3 = vector.load %arg8[%c0, %c0_1] : memref<56x128xf32, #tpu.memory_space<vmem>>, vector<56x128xf32>
    %c0_2 = arith.constant 0 : index
    %c0_3 = arith.constant 0 : index
    %4 = vector.load %arg3[%c0_2, %c0_3] : memref<56x512xbf16, #tpu.memory_space<vmem>>, vector<56x512xbf16>
    %c0_4 = arith.constant 0 : index
    %c0_5 = arith.constant 0 : index
    %5 = vector.load %arg4[%c0_4, %c0_5] : memref<512x128xbf16, #tpu.memory_space<vmem>>, vector<512x128xbf16>
    %cst = arith.constant dense<0.000000e+00> : vector<56x128xf32>
    %6 = tpu.matmul %4, %5, %cst {dimension_numbers = #tpu.dot_dimension_numbers<[1], [0], [0], [1], [0, 0, 1, 1], [], []>} : vector<56x512xbf16>, vector<512x128xbf16>, vector<56x128xf32> -> vector<56x128xf32>
    %7 = arith.addf %3, %6 : vector<56x128xf32>
    %c0_6 = arith.constant 0 : index
    %c0_7 = arith.constant 0 : index
    %8 = vector.load %arg8[%c0_6, %c0_7] : memref<56x128xf32, #tpu.memory_space<vmem>>, vector<56x128xf32>
    tpu.vector_store %arg8[%c0_6, %c0_7], %7 {strides = array<i32>} : memref<56x128xf32, #tpu.memory_space<vmem>>, vector<56x128xf32>,
    %c1_i32 = arith.constant 1 : i32
    %9 = arith.cmpi eq, %arg2, %c1_i32 : i32
    %10 = arith.extui %9 : i1 to i32
    %c0_i32_8 = arith.constant 0 : i32
    %11 = arith.cmpi ne, %10, %c0_i32_8 : i32
    scf.if %11 {
      %c0_9 = arith.constant 0 : index
      %c0_10 = arith.constant 0 : index
      %12 = vector.load %arg8[%c0_9, %c0_10] : memref<56x128xf32, #tpu.memory_space<vmem>>, vector<56x128xf32>
      %c0_11 = arith.constant 0 : index
      %c0_12 = arith.constant 0 : index
      %13 = vector.load %arg5[%c0_11, %c0_12] : memref<1x128xf32, #tpu.memory_space<vmem>>, vector<1x128xf32>
      %14 = vector.broadcast %13 : vector<1x128xf32> to vector<56x128xf32>
      %15 = arith.mulf %12, %14 : vector<56x128xf32>
      %c0_13 = arith.constant 0 : index
      %c0_14 = arith.constant 0 : index
      %16 = vector.load %arg6[%c0_13, %c0_14] : memref<1x128xf32, #tpu.memory_space<vmem>>, vector<1x128xf32>
      %17 = vector.broadcast %16 : vector<1x128xf32> to vector<56x128xf32>
      %18 = arith.addf %15, %17 : vector<56x128xf32>
      %cst_15 = arith.constant 0.000000e+00 : f32
      %19 = vector.broadcast %cst_15 : f32 to vector<56x128xf32>
      %20 = arith.maximumf %18, %19 : vector<56x128xf32>
      %c0_16 = arith.constant 0 : index
      %c0_17 = arith.constant 0 : index
      %21 = vector.load %arg7[%c0_16, %c0_17] : memref<56x128xf32, #tpu.memory_space<vmem>>, vector<56x128xf32>
      tpu.vector_store %arg7[%c0_16, %c0_17], %20 {strides = array<i32>} : memref<56x128xf32, #tpu.memory_space<vmem>>, vector<56x128xf32>,
    } else {
    }
    return
  }
  func.func @transform_0(%arg0: i32, %arg1: i32, %arg2: i32) -> (i32, i32) {
    %c0_i32 = arith.constant 0 : i32
    return %arg0, %arg2 : i32, i32
  }
  func.func @transform_1(%arg0: i32, %arg1: i32, %arg2: i32) -> (i32, i32) {
    %c0_i32 = arith.constant 0 : i32
    return %arg2, %arg1 : i32, i32
  }
  func.func @transform_2(%arg0: i32, %arg1: i32, %arg2: i32) -> (i32, i32) {
    %c0_i32 = arith.constant 0 : i32
    %c0_i32_0 = arith.constant 0 : i32
    return %c0_i32, %arg1 : i32, i32
  }
  func.func @transform_3(%arg0: i32, %arg1: i32, %arg2: i32) -> (i32, i32) {
    %c0_i32 = arith.constant 0 : i32
    %c0_i32_0 = arith.constant 0 : i32
    return %c0_i32, %arg1 : i32, i32
  }
  func.func @transform_4(%arg0: i32, %arg1: i32, %arg2: i32) -> (i32, i32) {
    %c0_i32 = arith.constant 0 : i32
    return %arg0, %arg1 : i32, i32
  }
}

module attributes {stable_mosaic.version = 11 : i64} {
  func.func @_matmul_bn_relu_single_k_kernel(%arg0: i32, %arg1: i32, %arg2: memref<56x128xbf16, #tpu.memory_space<vmem>>, %arg3: memref<128x384xbf16, #tpu.memory_space<vmem>>, %arg4: memref<1x384xf32, #tpu.memory_space<vmem>>, %arg5: memref<1x384xf32, #tpu.memory_space<vmem>>, %arg6: memref<56x384xf32, #tpu.memory_space<vmem>>) attributes {dimension_semantics = [#tpu.dimension_semantics<parallel>, #tpu.dimension_semantics<parallel>], iteration_bounds = array<i64: 2, 1>, scalar_prefetch = 0 : i64, scratch_operands = 0 : i64, tpu.core_type = #tpu.core_type<tc>, window_params = [{transform_indices = @transform_0, window_bounds = array<i64: 56, 128>}, {transform_indices = @transform_1, window_bounds = array<i64: 128, 384>}, {transform_indices = @transform_2, window_bounds = array<i64: 1, 384>}, {transform_indices = @transform_3, window_bounds = array<i64: 1, 384>}, {transform_indices = @transform_4, window_bounds = array<i64: 56, 384>}]} {
    %c0 = arith.constant 0 : index
    %c0_0 = arith.constant 0 : index
    %0 = vector.load %arg2[%c0, %c0_0] : memref<56x128xbf16, #tpu.memory_space<vmem>>, vector<56x128xbf16>
    %c0_1 = arith.constant 0 : index
    %c0_2 = arith.constant 0 : index
    %1 = vector.load %arg3[%c0_1, %c0_2] : memref<128x384xbf16, #tpu.memory_space<vmem>>, vector<128x384xbf16>
    %cst = arith.constant dense<0.000000e+00> : vector<56x384xf32>
    %2 = tpu.matmul %0, %1, %cst {dimension_numbers = #tpu.dot_dimension_numbers<[1], [0], [0], [1], [0, 0, 1, 1], [], []>} : vector<56x128xbf16>, vector<128x384xbf16>, vector<56x384xf32> -> vector<56x384xf32>
    %c0_3 = arith.constant 0 : index
    %c0_4 = arith.constant 0 : index
    %3 = vector.load %arg4[%c0_3, %c0_4] : memref<1x384xf32, #tpu.memory_space<vmem>>, vector<1x384xf32>
    %4 = vector.broadcast %3 : vector<1x384xf32> to vector<56x384xf32>
    %5 = arith.mulf %2, %4 : vector<56x384xf32>
    %c0_5 = arith.constant 0 : index
    %c0_6 = arith.constant 0 : index
    %6 = vector.load %arg5[%c0_5, %c0_6] : memref<1x384xf32, #tpu.memory_space<vmem>>, vector<1x384xf32>
    %7 = vector.broadcast %6 : vector<1x384xf32> to vector<56x384xf32>
    %8 = arith.addf %5, %7 : vector<56x384xf32>
    %cst_7 = arith.constant 0.000000e+00 : f32
    %9 = vector.broadcast %cst_7 : f32 to vector<56x384xf32>
    %10 = arith.maximumf %8, %9 : vector<56x384xf32>
    %c0_8 = arith.constant 0 : index
    %c0_9 = arith.constant 0 : index
    %11 = vector.load %arg6[%c0_8, %c0_9] : memref<56x384xf32, #tpu.memory_space<vmem>>, vector<56x384xf32>
    tpu.vector_store %arg6[%c0_8, %c0_9], %10 {strides = array<i32>} : memref<56x384xf32, #tpu.memory_space<vmem>>, vector<56x384xf32>,
    return
  }
  func.func @transform_0(%arg0: i32, %arg1: i32) -> (i32, i32) {
    %c0_i32 = arith.constant 0 : i32
    %c0_i32_0 = arith.constant 0 : i32
    return %arg0, %c0_i32 : i32, i32
  }
  func.func @transform_1(%arg0: i32, %arg1: i32) -> (i32, i32) {
    %c0_i32 = arith.constant 0 : i32
    %c0_i32_0 = arith.constant 0 : i32
    return %c0_i32, %arg1 : i32, i32
  }
  func.func @transform_2(%arg0: i32, %arg1: i32) -> (i32, i32) {
    %c0_i32 = arith.constant 0 : i32
    %c0_i32_0 = arith.constant 0 : i32
    return %c0_i32, %arg1 : i32, i32
  }
  func.func @transform_3(%arg0: i32, %arg1: i32) -> (i32, i32) {
    %c0_i32 = arith.constant 0 : i32
    %c0_i32_0 = arith.constant 0 : i32
    return %c0_i32, %arg1 : i32, i32
  }
  func.func @transform_4(%arg0: i32, %arg1: i32) -> (i32, i32) {
    %c0_i32 = arith.constant 0 : i32
    return %arg0, %arg1 : i32, i32
  }
}

module attributes {stable_mosaic.version = 11 : i64} {
  func.func @_maxpool_kernel(%arg0: i32, %arg1: memref<1x16x8x4xf32, #tpu.memory_space<vmem>>, %arg2: memref<1x16x8x4xf32, #tpu.memory_space<vmem>>, %arg3: memref<1x7x7x4xf32, #tpu.memory_space<vmem>>) attributes {dimension_semantics = [#tpu.dimension_semantics<parallel>], iteration_bounds = array<i64: 2>, scalar_prefetch = 0 : i64, scratch_operands = 0 : i64, tpu.core_type = #tpu.core_type<tc>, window_params = [{transform_indices = @transform_0, window_bounds = array<i64: 1, 16, 8, 4>}, {transform_indices = @transform_1, window_bounds = array<i64: 1, 16, 8, 4>}, {transform_indices = @transform_2, window_bounds = array<i64: 1, 7, 7, 4>}]} {
    %c0 = arith.constant 0 : index
    %c0_0 = arith.constant 0 : index
    %c0_1 = arith.constant 0 : index
    %c0_2 = arith.constant 0 : index
    %0 = vector.load %arg1[%c0, %c0_0, %c0_1, %c0_2] : memref<1x16x8x4xf32, #tpu.memory_space<vmem>>, vector<1x1x8x4xf32>
    %1 = vector.shape_cast %0 : vector<1x1x8x4xf32> to vector<8x4xf32>
    %c0_3 = arith.constant 0 : index
    %c0_4 = arith.constant 0 : index
    %c0_5 = arith.constant 0 : index
    %c0_6 = arith.constant 0 : index
    %2 = vector.load %arg2[%c0_3, %c0_4, %c0_5, %c0_6] : memref<1x16x8x4xf32, #tpu.memory_space<vmem>>, vector<1x1x8x4xf32>
    %3 = vector.shape_cast %2 : vector<1x1x8x4xf32> to vector<8x4xf32>
    %4 = vector.extract_strided_slice %1 {offsets = [0, 0], sizes = [7, 4], strides = [1, 1]} : vector<8x4xf32> to vector<7x4xf32>
    %5 = vector.extract_strided_slice %1 {offsets = [1, 0], sizes = [7, 4], strides = [1, 1]} : vector<8x4xf32> to vector<7x4xf32>
    %6 = vector.extract_strided_slice %3 {offsets = [0, 0], sizes = [7, 4], strides = [1, 1]} : vector<8x4xf32> to vector<7x4xf32>
    %7 = arith.maximumf %4, %5 : vector<7x4xf32>
    %8 = arith.maximumf %7, %6 : vector<7x4xf32>
    %c0_7 = arith.constant 0 : index
    %c1 = arith.constant 1 : index
    %c0_8 = arith.constant 0 : index
    %c0_9 = arith.constant 0 : index
    %9 = vector.load %arg1[%c0_7, %c1, %c0_8, %c0_9] : memref<1x16x8x4xf32, #tpu.memory_space<vmem>>, vector<1x1x8x4xf32>
    %10 = vector.shape_cast %9 : vector<1x1x8x4xf32> to vector<8x4xf32>
    %c0_10 = arith.constant 0 : index
    %c1_11 = arith.constant 1 : index
    %c0_12 = arith.constant 0 : index
    %c0_13 = arith.constant 0 : index
    %11 = vector.load %arg2[%c0_10, %c1_11, %c0_12, %c0_13] : memref<1x16x8x4xf32, #tpu.memory_space<vmem>>, vector<1x1x8x4xf32>
    %12 = vector.shape_cast %11 : vector<1x1x8x4xf32> to vector<8x4xf32>
    %13 = vector.extract_strided_slice %10 {offsets = [0, 0], sizes = [7, 4], strides = [1, 1]} : vector<8x4xf32> to vector<7x4xf32>
    %14 = vector.extract_strided_slice %10 {offsets = [1, 0], sizes = [7, 4], strides = [1, 1]} : vector<8x4xf32> to vector<7x4xf32>
    %15 = vector.extract_strided_slice %12 {offsets = [0, 0], sizes = [7, 4], strides = [1, 1]} : vector<8x4xf32> to vector<7x4xf32>
    %16 = arith.maximumf %8, %13 : vector<7x4xf32>
    %17 = arith.maximumf %16, %14 : vector<7x4xf32>
    %18 = arith.maximumf %17, %15 : vector<7x4xf32>
    %c0_14 = arith.constant 0 : index
    %c2 = arith.constant 2 : index
    %c0_15 = arith.constant 0 : index
    %c0_16 = arith.constant 0 : index
    %19 = vector.load %arg1[%c0_14, %c2, %c0_15, %c0_16] : memref<1x16x8x4xf32, #tpu.memory_space<vmem>>, vector<1x1x8x4xf32>
    %20 = vector.shape_cast %19 : vector<1x1x8x4xf32> to vector<8x4xf32>
    %c0_17 = arith.constant 0 : index
    %c2_18 = arith.constant 2 : index
    %c0_19 = arith.constant 0 : index
    %c0_20 = arith.constant 0 : index
    %21 = vector.load %arg2[%c0_17, %c2_18, %c0_19, %c0_20] : memref<1x16x8x4xf32, #tpu.memory_space<vmem>>, vector<1x1x8x4xf32>
    %22 = vector.shape_cast %21 : vector<1x1x8x4xf32> to vector<8x4xf32>
    %23 = vector.extract_strided_slice %20 {offsets = [0, 0], sizes = [7, 4], strides = [1, 1]} : vector<8x4xf32> to vector<7x4xf32>
    %24 = vector.extract_strided_slice %20 {offsets = [1, 0], sizes = [7, 4], strides = [1, 1]} : vector<8x4xf32> to vector<7x4xf32>
    %25 = vector.extract_strided_slice %22 {offsets = [0, 0], sizes = [7, 4], strides = [1, 1]} : vector<8x4xf32> to vector<7x4xf32>
    %26 = arith.maximumf %18, %23 : vector<7x4xf32>
    %27 = arith.maximumf %26, %24 : vector<7x4xf32>
    %28 = arith.maximumf %27, %25 : vector<7x4xf32>
    %c0_21 = arith.constant 0 : index
    %c0_22 = arith.constant 0 : index
    %c0_23 = arith.constant 0 : index
    %c0_24 = arith.constant 0 : index
    %29 = vector.load %arg3[%c0_21, %c0_22, %c0_23, %c0_24] : memref<1x7x7x4xf32, #tpu.memory_space<vmem>>, vector<1x1x7x4xf32>
    %30 = vector.shape_cast %29 : vector<1x1x7x4xf32> to vector<7x4xf32>
    %31 = vector.shape_cast %28 : vector<7x4xf32> to vector<1x1x7x4xf32>
    tpu.vector_store %arg3[%c0_21, %c0_22, %c0_23, %c0_24], %31 {strides = array<i32>} : memref<1x7x7x4xf32, #tpu.memory_space<vmem>>, vector<1x1x7x4xf32>,
    %c0_25 = arith.constant 0 : index
    %c2_26 = arith.constant 2 : index
    %c0_27 = arith.constant 0 : index
    %c0_28 = arith.constant 0 : index
    %32 = vector.load %arg1[%c0_25, %c2_26, %c0_27, %c0_28] : memref<1x16x8x4xf32, #tpu.memory_space<vmem>>, vector<1x1x8x4xf32>
    %33 = vector.shape_cast %32 : vector<1x1x8x4xf32> to vector<8x4xf32>
    %c0_29 = arith.constant 0 : index
    %c2_30 = arith.constant 2 : index
    %c0_31 = arith.constant 0 : index
    %c0_32 = arith.constant 0 : index
    %34 = vector.load %arg2[%c0_29, %c2_30, %c0_31, %c0_32] : memref<1x16x8x4xf32, #tpu.memory_space<vmem>>, vector<1x1x8x4xf32>
    %35 = vector.shape_cast %34 : vector<1x1x8x4xf32> to vector<8x4xf32>
    %36 = vector.extract_strided_slice %33 {offsets = [0, 0], sizes = [7, 4], strides = [1, 1]} : vector<8x4xf32> to vector<7x4xf32>
    %37 = vector.extract_strided_slice %33 {offsets = [1, 0], sizes = [7, 4], strides = [1, 1]} : vector<8x4xf32> to vector<7x4xf32>
    %38 = vector.extract_strided_slice %35 {offsets = [0, 0], sizes = [7, 4], strides = [1, 1]} : vector<8x4xf32> to vector<7x4xf32>
    %39 = arith.maximumf %36, %37 : vector<7x4xf32>
    %40 = arith.maximumf %39, %38 : vector<7x4xf32>
    %c0_33 = arith.constant 0 : index
    %c3 = arith.constant 3 : index
    %c0_34 = arith.constant 0 : index
    %c0_35 = arith.constant 0 : index
    %41 = vector.load %arg1[%c0_33, %c3, %c0_34, %c0_35] : memref<1x16x8x4xf32, #tpu.memory_space<vmem>>, vector<1x1x8x4xf32>
    %42 = vector.shape_cast %41 : vector<1x1x8x4xf32> to vector<8x4xf32>
    %c0_36 = arith.constant 0 : index
    %c3_37 = arith.constant 3 : index
    %c0_38 = arith.constant 0 : index
    %c0_39 = arith.constant 0 : index
    %43 = vector.load %arg2[%c0_36, %c3_37, %c0_38, %c0_39] : memref<1x16x8x4xf32, #tpu.memory_space<vmem>>, vector<1x1x8x4xf32>
    %44 = vector.shape_cast %43 : vector<1x1x8x4xf32> to vector<8x4xf32>
    %45 = vector.extract_strided_slice %42 {offsets = [0, 0], sizes = [7, 4], strides = [1, 1]} : vector<8x4xf32> to vector<7x4xf32>
    %46 = vector.extract_strided_slice %42 {offsets = [1, 0], sizes = [7, 4], strides = [1, 1]} : vector<8x4xf32> to vector<7x4xf32>
    %47 = vector.extract_strided_slice %44 {offsets = [0, 0], sizes = [7, 4], strides = [1, 1]} : vector<8x4xf32> to vector<7x4xf32>
    %48 = arith.maximumf %40, %45 : vector<7x4xf32>
    %49 = arith.maximumf %48, %46 : vector<7x4xf32>
    %50 = arith.maximumf %49, %47 : vector<7x4xf32>
    %c0_40 = arith.constant 0 : index
    %c4 = arith.constant 4 : index
    %c0_41 = arith.constant 0 : index
    %c0_42 = arith.constant 0 : index
    %51 = vector.load %arg1[%c0_40, %c4, %c0_41, %c0_42] : memref<1x16x8x4xf32, #tpu.memory_space<vmem>>, vector<1x1x8x4xf32>
    %52 = vector.shape_cast %51 : vector<1x1x8x4xf32> to vector<8x4xf32>
    %c0_43 = arith.constant 0 : index
    %c4_44 = arith.constant 4 : index
    %c0_45 = arith.constant 0 : index
    %c0_46 = arith.constant 0 : index
    %53 = vector.load %arg2[%c0_43, %c4_44, %c0_45, %c0_46] : memref<1x16x8x4xf32, #tpu.memory_space<vmem>>, vector<1x1x8x4xf32>
    %54 = vector.shape_cast %53 : vector<1x1x8x4xf32> to vector<8x4xf32>
    %55 = vector.extract_strided_slice %52 {offsets = [0, 0], sizes = [7, 4], strides = [1, 1]} : vector<8x4xf32> to vector<7x4xf32>
    %56 = vector.extract_strided_slice %52 {offsets = [1, 0], sizes = [7, 4], strides = [1, 1]} : vector<8x4xf32> to vector<7x4xf32>
    %57 = vector.extract_strided_slice %54 {offsets = [0, 0], sizes = [7, 4], strides = [1, 1]} : vector<8x4xf32> to vector<7x4xf32>
    %58 = arith.maximumf %50, %55 : vector<7x4xf32>
    %59 = arith.maximumf %58, %56 : vector<7x4xf32>
    %60 = arith.maximumf %59, %57 : vector<7x4xf32>
    %c0_47 = arith.constant 0 : index
    %c1_48 = arith.constant 1 : index
    %c0_49 = arith.constant 0 : index
    %c0_50 = arith.constant 0 : index
    %61 = vector.load %arg3[%c0_47, %c1_48, %c0_49, %c0_50] : memref<1x7x7x4xf32, #tpu.memory_space<vmem>>, vector<1x1x7x4xf32>
    %62 = vector.shape_cast %61 : vector<1x1x7x4xf32> to vector<7x4xf32>
    %63 = vector.shape_cast %60 : vector<7x4xf32> to vector<1x1x7x4xf32>
    tpu.vector_store %arg3[%c0_47, %c1_48, %c0_49, %c0_50], %63 {strides = array<i32>} : memref<1x7x7x4xf32, #tpu.memory_space<vmem>>, vector<1x1x7x4xf32>,
    %c0_51 = arith.constant 0 : index
    %c4_52 = arith.constant 4 : index
    %c0_53 = arith.constant 0 : index
    %c0_54 = arith.constant 0 : index
    %64 = vector.load %arg1[%c0_51, %c4_52, %c0_53, %c0_54] : memref<1x16x8x4xf32, #tpu.memory_space<vmem>>, vector<1x1x8x4xf32>
    %65 = vector.shape_cast %64 : vector<1x1x8x4xf32> to vector<8x4xf32>
    %c0_55 = arith.constant 0 : index
    %c4_56 = arith.constant 4 : index
    %c0_57 = arith.constant 0 : index
    %c0_58 = arith.constant 0 : index
    %66 = vector.load %arg2[%c0_55, %c4_56, %c0_57, %c0_58] : memref<1x16x8x4xf32, #tpu.memory_space<vmem>>, vector<1x1x8x4xf32>
    %67 = vector.shape_cast %66 : vector<1x1x8x4xf32> to vector<8x4xf32>
    %68 = vector.extract_strided_slice %65 {offsets = [0, 0], sizes = [7, 4], strides = [1, 1]} : vector<8x4xf32> to vector<7x4xf32>
    %69 = vector.extract_strided_slice %65 {offsets = [1, 0], sizes = [7, 4], strides = [1, 1]} : vector<8x4xf32> to vector<7x4xf32>
    %70 = vector.extract_strided_slice %67 {offsets = [0, 0], sizes = [7, 4], strides = [1, 1]} : vector<8x4xf32> to vector<7x4xf32>
    %71 = arith.maximumf %68, %69 : vector<7x4xf32>
    %72 = arith.maximumf %71, %70 : vector<7x4xf32>
    %c0_59 = arith.constant 0 : index
    %c5 = arith.constant 5 : index
    %c0_60 = arith.constant 0 : index
    %c0_61 = arith.constant 0 : index
    %73 = vector.load %arg1[%c0_59, %c5, %c0_60, %c0_61] : memref<1x16x8x4xf32, #tpu.memory_space<vmem>>, vector<1x1x8x4xf32>
    %74 = vector.shape_cast %73 : vector<1x1x8x4xf32> to vector<8x4xf32>
    %c0_62 = arith.constant 0 : index
    %c5_63 = arith.constant 5 : index
    %c0_64 = arith.constant 0 : index
    %c0_65 = arith.constant 0 : index
    %75 = vector.load %arg2[%c0_62, %c5_63, %c0_64, %c0_65] : memref<1x16x8x4xf32, #tpu.memory_space<vmem>>, vector<1x1x8x4xf32>
    %76 = vector.shape_cast %75 : vector<1x1x8x4xf32> to vector<8x4xf32>
    %77 = vector.extract_strided_slice %74 {offsets = [0, 0], sizes = [7, 4], strides = [1, 1]} : vector<8x4xf32> to vector<7x4xf32>
    %78 = vector.extract_strided_slice %74 {offsets = [1, 0], sizes = [7, 4], strides = [1, 1]} : vector<8x4xf32> to vector<7x4xf32>
    %79 = vector.extract_strided_slice %76 {offsets = [0, 0], sizes = [7, 4], strides = [1, 1]} : vector<8x4xf32> to vector<7x4xf32>
    %80 = arith.maximumf %72, %77 : vector<7x4xf32>
    %81 = arith.maximumf %80, %78 : vector<7x4xf32>
    %82 = arith.maximumf %81, %79 : vector<7x4xf32>
    %c0_66 = arith.constant 0 : index
    %c6 = arith.constant 6 : index
    %c0_67 = arith.constant 0 : index
    %c0_68 = arith.constant 0 : index
    %83 = vector.load %arg1[%c0_66, %c6, %c0_67, %c0_68] : memref<1x16x8x4xf32, #tpu.memory_space<vmem>>, vector<1x1x8x4xf32>
    %84 = vector.shape_cast %83 : vector<1x1x8x4xf32> to vector<8x4xf32>
    %c0_69 = arith.constant 0 : index
    %c6_70 = arith.constant 6 : index
    %c0_71 = arith.constant 0 : index
    %c0_72 = arith.constant 0 : index
    %85 = vector.load %arg2[%c0_69, %c6_70, %c0_71, %c0_72] : memref<1x16x8x4xf32, #tpu.memory_space<vmem>>, vector<1x1x8x4xf32>
    %86 = vector.shape_cast %85 : vector<1x1x8x4xf32> to vector<8x4xf32>
    %87 = vector.extract_strided_slice %84 {offsets = [0, 0], sizes = [7, 4], strides = [1, 1]} : vector<8x4xf32> to vector<7x4xf32>
    %88 = vector.extract_strided_slice %84 {offsets = [1, 0], sizes = [7, 4], strides = [1, 1]} : vector<8x4xf32> to vector<7x4xf32>
    %89 = vector.extract_strided_slice %86 {offsets = [0, 0], sizes = [7, 4], strides = [1, 1]} : vector<8x4xf32> to vector<7x4xf32>
    %90 = arith.maximumf %82, %87 : vector<7x4xf32>
    %91 = arith.maximumf %90, %88 : vector<7x4xf32>
    %92 = arith.maximumf %91, %89 : vector<7x4xf32>
    %c0_73 = arith.constant 0 : index
    %c2_74 = arith.constant 2 : index
    %c0_75 = arith.constant 0 : index
    %c0_76 = arith.constant 0 : index
    %93 = vector.load %arg3[%c0_73, %c2_74, %c0_75, %c0_76] : memref<1x7x7x4xf32, #tpu.memory_space<vmem>>, vector<1x1x7x4xf32>
    %94 = vector.shape_cast %93 : vector<1x1x7x4xf32> to vector<7x4xf32>
    %95 = vector.shape_cast %92 : vector<7x4xf32> to vector<1x1x7x4xf32>
    tpu.vector_store %arg3[%c0_73, %c2_74, %c0_75, %c0_76], %95 {strides = array<i32>} : memref<1x7x7x4xf32, #tpu.memory_space<vmem>>, vector<1x1x7x4xf32>,
    %c0_77 = arith.constant 0 : index
    %c6_78 = arith.constant 6 : index
    %c0_79 = arith.constant 0 : index
    %c0_80 = arith.constant 0 : index
    %96 = vector.load %arg1[%c0_77, %c6_78, %c0_79, %c0_80] : memref<1x16x8x4xf32, #tpu.memory_space<vmem>>, vector<1x1x8x4xf32>
    %97 = vector.shape_cast %96 : vector<1x1x8x4xf32> to vector<8x4xf32>
    %c0_81 = arith.constant 0 : index
    %c6_82 = arith.constant 6 : index
    %c0_83 = arith.constant 0 : index
    %c0_84 = arith.constant 0 : index
    %98 = vector.load %arg2[%c0_81, %c6_82, %c0_83, %c0_84] : memref<1x16x8x4xf32, #tpu.memory_space<vmem>>, vector<1x1x8x4xf32>
    %99 = vector.shape_cast %98 : vector<1x1x8x4xf32> to vector<8x4xf32>
    %100 = vector.extract_strided_slice %97 {offsets = [0, 0], sizes = [7, 4], strides = [1, 1]} : vector<8x4xf32> to vector<7x4xf32>
    %101 = vector.extract_strided_slice %97 {offsets = [1, 0], sizes = [7, 4], strides = [1, 1]} : vector<8x4xf32> to vector<7x4xf32>
    %102 = vector.extract_strided_slice %99 {offsets = [0, 0], sizes = [7, 4], strides = [1, 1]} : vector<8x4xf32> to vector<7x4xf32>
    %103 = arith.maximumf %100, %101 : vector<7x4xf32>
    %104 = arith.maximumf %103, %102 : vector<7x4xf32>
    %c0_85 = arith.constant 0 : index
    %c7 = arith.constant 7 : index
    %c0_86 = arith.constant 0 : index
    %c0_87 = arith.constant 0 : index
    %105 = vector.load %arg1[%c0_85, %c7, %c0_86, %c0_87] : memref<1x16x8x4xf32, #tpu.memory_space<vmem>>, vector<1x1x8x4xf32>
    %106 = vector.shape_cast %105 : vector<1x1x8x4xf32> to vector<8x4xf32>
    %c0_88 = arith.constant 0 : index
    %c7_89 = arith.constant 7 : index
    %c0_90 = arith.constant 0 : index
    %c0_91 = arith.constant 0 : index
    %107 = vector.load %arg2[%c0_88, %c7_89, %c0_90, %c0_91] : memref<1x16x8x4xf32, #tpu.memory_space<vmem>>, vector<1x1x8x4xf32>
    %108 = vector.shape_cast %107 : vector<1x1x8x4xf32> to vector<8x4xf32>
    %109 = vector.extract_strided_slice %106 {offsets = [0, 0], sizes = [7, 4], strides = [1, 1]} : vector<8x4xf32> to vector<7x4xf32>
    %110 = vector.extract_strided_slice %106 {offsets = [1, 0], sizes = [7, 4], strides = [1, 1]} : vector<8x4xf32> to vector<7x4xf32>
    %111 = vector.extract_strided_slice %108 {offsets = [0, 0], sizes = [7, 4], strides = [1, 1]} : vector<8x4xf32> to vector<7x4xf32>
    %112 = arith.maximumf %104, %109 : vector<7x4xf32>
    %113 = arith.maximumf %112, %110 : vector<7x4xf32>
    %114 = arith.maximumf %113, %111 : vector<7x4xf32>
    %c0_92 = arith.constant 0 : index
    %c8 = arith.constant 8 : index
    %c0_93 = arith.constant 0 : index
    %c0_94 = arith.constant 0 : index
    %115 = vector.load %arg1[%c0_92, %c8, %c0_93, %c0_94] : memref<1x16x8x4xf32, #tpu.memory_space<vmem>>, vector<1x1x8x4xf32>
    %116 = vector.shape_cast %115 : vector<1x1x8x4xf32> to vector<8x4xf32>
    %c0_95 = arith.constant 0 : index
    %c8_96 = arith.constant 8 : index
    %c0_97 = arith.constant 0 : index
    %c0_98 = arith.constant 0 : index
    %117 = vector.load %arg2[%c0_95, %c8_96, %c0_97, %c0_98] : memref<1x16x8x4xf32, #tpu.memory_space<vmem>>, vector<1x1x8x4xf32>
    %118 = vector.shape_cast %117 : vector<1x1x8x4xf32> to vector<8x4xf32>
    %119 = vector.extract_strided_slice %116 {offsets = [0, 0], sizes = [7, 4], strides = [1, 1]} : vector<8x4xf32> to vector<7x4xf32>
    %120 = vector.extract_strided_slice %116 {offsets = [1, 0], sizes = [7, 4], strides = [1, 1]} : vector<8x4xf32> to vector<7x4xf32>
    %121 = vector.extract_strided_slice %118 {offsets = [0, 0], sizes = [7, 4], strides = [1, 1]} : vector<8x4xf32> to vector<7x4xf32>
    %122 = arith.maximumf %114, %119 : vector<7x4xf32>
    %123 = arith.maximumf %122, %120 : vector<7x4xf32>
    %124 = arith.maximumf %123, %121 : vector<7x4xf32>
    %c0_99 = arith.constant 0 : index
    %c3_100 = arith.constant 3 : index
    %c0_101 = arith.constant 0 : index
    %c0_102 = arith.constant 0 : index
    %125 = vector.load %arg3[%c0_99, %c3_100, %c0_101, %c0_102] : memref<1x7x7x4xf32, #tpu.memory_space<vmem>>, vector<1x1x7x4xf32>
    %126 = vector.shape_cast %125 : vector<1x1x7x4xf32> to vector<7x4xf32>
    %127 = vector.shape_cast %124 : vector<7x4xf32> to vector<1x1x7x4xf32>
    tpu.vector_store %arg3[%c0_99, %c3_100, %c0_101, %c0_102], %127 {strides = array<i32>} : memref<1x7x7x4xf32, #tpu.memory_space<vmem>>, vector<1x1x7x4xf32>,
    %c0_103 = arith.constant 0 : index
    %c8_104 = arith.constant 8 : index
    %c0_105 = arith.constant 0 : index
    %c0_106 = arith.constant 0 : index
    %128 = vector.load %arg1[%c0_103, %c8_104, %c0_105, %c0_106] : memref<1x16x8x4xf32, #tpu.memory_space<vmem>>, vector<1x1x8x4xf32>
    %129 = vector.shape_cast %128 : vector<1x1x8x4xf32> to vector<8x4xf32>
    %c0_107 = arith.constant 0 : index
    %c8_108 = arith.constant 8 : index
    %c0_109 = arith.constant 0 : index
    %c0_110 = arith.constant 0 : index
    %130 = vector.load %arg2[%c0_107, %c8_108, %c0_109, %c0_110] : memref<1x16x8x4xf32, #tpu.memory_space<vmem>>, vector<1x1x8x4xf32>
    %131 = vector.shape_cast %130 : vector<1x1x8x4xf32> to vector<8x4xf32>
    %132 = vector.extract_strided_slice %129 {offsets = [0, 0], sizes = [7, 4], strides = [1, 1]} : vector<8x4xf32> to vector<7x4xf32>
    %133 = vector.extract_strided_slice %129 {offsets = [1, 0], sizes = [7, 4], strides = [1, 1]} : vector<8x4xf32> to vector<7x4xf32>
    %134 = vector.extract_strided_slice %131 {offsets = [0, 0], sizes = [7, 4], strides = [1, 1]} : vector<8x4xf32> to vector<7x4xf32>
    %135 = arith.maximumf %132, %133 : vector<7x4xf32>
    %136 = arith.maximumf %135, %134 : vector<7x4xf32>
    %c0_111 = arith.constant 0 : index
    %c9 = arith.constant 9 : index
    %c0_112 = arith.constant 0 : index
    %c0_113 = arith.constant 0 : index
    %137 = vector.load %arg1[%c0_111, %c9, %c0_112, %c0_113] : memref<1x16x8x4xf32, #tpu.memory_space<vmem>>, vector<1x1x8x4xf32>
    %138 = vector.shape_cast %137 : vector<1x1x8x4xf32> to vector<8x4xf32>
    %c0_114 = arith.constant 0 : index
    %c9_115 = arith.constant 9 : index
    %c0_116 = arith.constant 0 : index
    %c0_117 = arith.constant 0 : index
    %139 = vector.load %arg2[%c0_114, %c9_115, %c0_116, %c0_117] : memref<1x16x8x4xf32, #tpu.memory_space<vmem>>, vector<1x1x8x4xf32>
    %140 = vector.shape_cast %139 : vector<1x1x8x4xf32> to vector<8x4xf32>
    %141 = vector.extract_strided_slice %138 {offsets = [0, 0], sizes = [7, 4], strides = [1, 1]} : vector<8x4xf32> to vector<7x4xf32>
    %142 = vector.extract_strided_slice %138 {offsets = [1, 0], sizes = [7, 4], strides = [1, 1]} : vector<8x4xf32> to vector<7x4xf32>
    %143 = vector.extract_strided_slice %140 {offsets = [0, 0], sizes = [7, 4], strides = [1, 1]} : vector<8x4xf32> to vector<7x4xf32>
    %144 = arith.maximumf %136, %141 : vector<7x4xf32>
    %145 = arith.maximumf %144, %142 : vector<7x4xf32>
    %146 = arith.maximumf %145, %143 : vector<7x4xf32>
    %c0_118 = arith.constant 0 : index
    %c10 = arith.constant 10 : index
    %c0_119 = arith.constant 0 : index
    %c0_120 = arith.constant 0 : index
    %147 = vector.load %arg1[%c0_118, %c10, %c0_119, %c0_120] : memref<1x16x8x4xf32, #tpu.memory_space<vmem>>, vector<1x1x8x4xf32>
    %148 = vector.shape_cast %147 : vector<1x1x8x4xf32> to vector<8x4xf32>
    %c0_121 = arith.constant 0 : index
    %c10_122 = arith.constant 10 : index
    %c0_123 = arith.constant 0 : index
    %c0_124 = arith.constant 0 : index
    %149 = vector.load %arg2[%c0_121, %c10_122, %c0_123, %c0_124] : memref<1x16x8x4xf32, #tpu.memory_space<vmem>>, vector<1x1x8x4xf32>
    %150 = vector.shape_cast %149 : vector<1x1x8x4xf32> to vector<8x4xf32>
    %151 = vector.extract_strided_slice %148 {offsets = [0, 0], sizes = [7, 4], strides = [1, 1]} : vector<8x4xf32> to vector<7x4xf32>
    %152 = vector.extract_strided_slice %148 {offsets = [1, 0], sizes = [7, 4], strides = [1, 1]} : vector<8x4xf32> to vector<7x4xf32>
    %153 = vector.extract_strided_slice %150 {offsets = [0, 0], sizes = [7, 4], strides = [1, 1]} : vector<8x4xf32> to vector<7x4xf32>
    %154 = arith.maximumf %146, %151 : vector<7x4xf32>
    %155 = arith.maximumf %154, %152 : vector<7x4xf32>
    %156 = arith.maximumf %155, %153 : vector<7x4xf32>
    %c0_125 = arith.constant 0 : index
    %c4_126 = arith.constant 4 : index
    %c0_127 = arith.constant 0 : index
    %c0_128 = arith.constant 0 : index
    %157 = vector.load %arg3[%c0_125, %c4_126, %c0_127, %c0_128] : memref<1x7x7x4xf32, #tpu.memory_space<vmem>>, vector<1x1x7x4xf32>
    %158 = vector.shape_cast %157 : vector<1x1x7x4xf32> to vector<7x4xf32>
    %159 = vector.shape_cast %156 : vector<7x4xf32> to vector<1x1x7x4xf32>
    tpu.vector_store %arg3[%c0_125, %c4_126, %c0_127, %c0_128], %159 {strides = array<i32>} : memref<1x7x7x4xf32, #tpu.memory_space<vmem>>, vector<1x1x7x4xf32>,
    %c0_129 = arith.constant 0 : index
    %c10_130 = arith.constant 10 : index
    %c0_131 = arith.constant 0 : index
    %c0_132 = arith.constant 0 : index
    %160 = vector.load %arg1[%c0_129, %c10_130, %c0_131, %c0_132] : memref<1x16x8x4xf32, #tpu.memory_space<vmem>>, vector<1x1x8x4xf32>
    %161 = vector.shape_cast %160 : vector<1x1x8x4xf32> to vector<8x4xf32>
    %c0_133 = arith.constant 0 : index
    %c10_134 = arith.constant 10 : index
    %c0_135 = arith.constant 0 : index
    %c0_136 = arith.constant 0 : index
    %162 = vector.load %arg2[%c0_133, %c10_134, %c0_135, %c0_136] : memref<1x16x8x4xf32, #tpu.memory_space<vmem>>, vector<1x1x8x4xf32>
    %163 = vector.shape_cast %162 : vector<1x1x8x4xf32> to vector<8x4xf32>
    %164 = vector.extract_strided_slice %161 {offsets = [0, 0], sizes = [7, 4], strides = [1, 1]} : vector<8x4xf32> to vector<7x4xf32>
    %165 = vector.extract_strided_slice %161 {offsets = [1, 0], sizes = [7, 4], strides = [1, 1]} : vector<8x4xf32> to vector<7x4xf32>
    %166 = vector.extract_strided_slice %163 {offsets = [0, 0], sizes = [7, 4], strides = [1, 1]} : vector<8x4xf32> to vector<7x4xf32>
    %167 = arith.maximumf %164, %165 : vector<7x4xf32>
    %168 = arith.maximumf %167, %166 : vector<7x4xf32>
    %c0_137 = arith.constant 0 : index
    %c11 = arith.constant 11 : index
    %c0_138 = arith.constant 0 : index
    %c0_139 = arith.constant 0 : index
    %169 = vector.load %arg1[%c0_137, %c11, %c0_138, %c0_139] : memref<1x16x8x4xf32, #tpu.memory_space<vmem>>, vector<1x1x8x4xf32>
    %170 = vector.shape_cast %169 : vector<1x1x8x4xf32> to vector<8x4xf32>
    %c0_140 = arith.constant 0 : index
    %c11_141 = arith.constant 11 : index
    %c0_142 = arith.constant 0 : index
    %c0_143 = arith.constant 0 : index
    %171 = vector.load %arg2[%c0_140, %c11_141, %c0_142, %c0_143] : memref<1x16x8x4xf32, #tpu.memory_space<vmem>>, vector<1x1x8x4xf32>
    %172 = vector.shape_cast %171 : vector<1x1x8x4xf32> to vector<8x4xf32>
    %173 = vector.extract_strided_slice %170 {offsets = [0, 0], sizes = [7, 4], strides = [1, 1]} : vector<8x4xf32> to vector<7x4xf32>
    %174 = vector.extract_strided_slice %170 {offsets = [1, 0], sizes = [7, 4], strides = [1, 1]} : vector<8x4xf32> to vector<7x4xf32>
    %175 = vector.extract_strided_slice %172 {offsets = [0, 0], sizes = [7, 4], strides = [1, 1]} : vector<8x4xf32> to vector<7x4xf32>
    %176 = arith.maximumf %168, %173 : vector<7x4xf32>
    %177 = arith.maximumf %176, %174 : vector<7x4xf32>
    %178 = arith.maximumf %177, %175 : vector<7x4xf32>
    %c0_144 = arith.constant 0 : index
    %c12 = arith.constant 12 : index
    %c0_145 = arith.constant 0 : index
    %c0_146 = arith.constant 0 : index
    %179 = vector.load %arg1[%c0_144, %c12, %c0_145, %c0_146] : memref<1x16x8x4xf32, #tpu.memory_space<vmem>>, vector<1x1x8x4xf32>
    %180 = vector.shape_cast %179 : vector<1x1x8x4xf32> to vector<8x4xf32>
    %c0_147 = arith.constant 0 : index
    %c12_148 = arith.constant 12 : index
    %c0_149 = arith.constant 0 : index
    %c0_150 = arith.constant 0 : index
    %181 = vector.load %arg2[%c0_147, %c12_148, %c0_149, %c0_150] : memref<1x16x8x4xf32, #tpu.memory_space<vmem>>, vector<1x1x8x4xf32>
    %182 = vector.shape_cast %181 : vector<1x1x8x4xf32> to vector<8x4xf32>
    %183 = vector.extract_strided_slice %180 {offsets = [0, 0], sizes = [7, 4], strides = [1, 1]} : vector<8x4xf32> to vector<7x4xf32>
    %184 = vector.extract_strided_slice %180 {offsets = [1, 0], sizes = [7, 4], strides = [1, 1]} : vector<8x4xf32> to vector<7x4xf32>
    %185 = vector.extract_strided_slice %182 {offsets = [0, 0], sizes = [7, 4], strides = [1, 1]} : vector<8x4xf32> to vector<7x4xf32>
    %186 = arith.maximumf %178, %183 : vector<7x4xf32>
    %187 = arith.maximumf %186, %184 : vector<7x4xf32>
    %188 = arith.maximumf %187, %185 : vector<7x4xf32>
    %c0_151 = arith.constant 0 : index
    %c5_152 = arith.constant 5 : index
    %c0_153 = arith.constant 0 : index
    %c0_154 = arith.constant 0 : index
    %189 = vector.load %arg3[%c0_151, %c5_152, %c0_153, %c0_154] : memref<1x7x7x4xf32, #tpu.memory_space<vmem>>, vector<1x1x7x4xf32>
    %190 = vector.shape_cast %189 : vector<1x1x7x4xf32> to vector<7x4xf32>
    %191 = vector.shape_cast %188 : vector<7x4xf32> to vector<1x1x7x4xf32>
    tpu.vector_store %arg3[%c0_151, %c5_152, %c0_153, %c0_154], %191 {strides = array<i32>} : memref<1x7x7x4xf32, #tpu.memory_space<vmem>>, vector<1x1x7x4xf32>,
    %c0_155 = arith.constant 0 : index
    %c12_156 = arith.constant 12 : index
    %c0_157 = arith.constant 0 : index
    %c0_158 = arith.constant 0 : index
    %192 = vector.load %arg1[%c0_155, %c12_156, %c0_157, %c0_158] : memref<1x16x8x4xf32, #tpu.memory_space<vmem>>, vector<1x1x8x4xf32>
    %193 = vector.shape_cast %192 : vector<1x1x8x4xf32> to vector<8x4xf32>
    %c0_159 = arith.constant 0 : index
    %c12_160 = arith.constant 12 : index
    %c0_161 = arith.constant 0 : index
    %c0_162 = arith.constant 0 : index
    %194 = vector.load %arg2[%c0_159, %c12_160, %c0_161, %c0_162] : memref<1x16x8x4xf32, #tpu.memory_space<vmem>>, vector<1x1x8x4xf32>
    %195 = vector.shape_cast %194 : vector<1x1x8x4xf32> to vector<8x4xf32>
    %196 = vector.extract_strided_slice %193 {offsets = [0, 0], sizes = [7, 4], strides = [1, 1]} : vector<8x4xf32> to vector<7x4xf32>
    %197 = vector.extract_strided_slice %193 {offsets = [1, 0], sizes = [7, 4], strides = [1, 1]} : vector<8x4xf32> to vector<7x4xf32>
    %198 = vector.extract_strided_slice %195 {offsets = [0, 0], sizes = [7, 4], strides = [1, 1]} : vector<8x4xf32> to vector<7x4xf32>
    %199 = arith.maximumf %196, %197 : vector<7x4xf32>
    %200 = arith.maximumf %199, %198 : vector<7x4xf32>
    %c0_163 = arith.constant 0 : index
    %c13 = arith.constant 13 : index
    %c0_164 = arith.constant 0 : index
    %c0_165 = arith.constant 0 : index
    %201 = vector.load %arg1[%c0_163, %c13, %c0_164, %c0_165] : memref<1x16x8x4xf32, #tpu.memory_space<vmem>>, vector<1x1x8x4xf32>
    %202 = vector.shape_cast %201 : vector<1x1x8x4xf32> to vector<8x4xf32>
    %c0_166 = arith.constant 0 : index
    %c13_167 = arith.constant 13 : index
    %c0_168 = arith.constant 0 : index
    %c0_169 = arith.constant 0 : index
    %203 = vector.load %arg2[%c0_166, %c13_167, %c0_168, %c0_169] : memref<1x16x8x4xf32, #tpu.memory_space<vmem>>, vector<1x1x8x4xf32>
    %204 = vector.shape_cast %203 : vector<1x1x8x4xf32> to vector<8x4xf32>
    %205 = vector.extract_strided_slice %202 {offsets = [0, 0], sizes = [7, 4], strides = [1, 1]} : vector<8x4xf32> to vector<7x4xf32>
    %206 = vector.extract_strided_slice %202 {offsets = [1, 0], sizes = [7, 4], strides = [1, 1]} : vector<8x4xf32> to vector<7x4xf32>
    %207 = vector.extract_strided_slice %204 {offsets = [0, 0], sizes = [7, 4], strides = [1, 1]} : vector<8x4xf32> to vector<7x4xf32>
    %208 = arith.maximumf %200, %205 : vector<7x4xf32>
    %209 = arith.maximumf %208, %206 : vector<7x4xf32>
    %210 = arith.maximumf %209, %207 : vector<7x4xf32>
    %c0_170 = arith.constant 0 : index
    %c14 = arith.constant 14 : index
    %c0_171 = arith.constant 0 : index
    %c0_172 = arith.constant 0 : index
    %211 = vector.load %arg1[%c0_170, %c14, %c0_171, %c0_172] : memref<1x16x8x4xf32, #tpu.memory_space<vmem>>, vector<1x1x8x4xf32>
    %212 = vector.shape_cast %211 : vector<1x1x8x4xf32> to vector<8x4xf32>
    %c0_173 = arith.constant 0 : index
    %c14_174 = arith.constant 14 : index
    %c0_175 = arith.constant 0 : index
    %c0_176 = arith.constant 0 : index
    %213 = vector.load %arg2[%c0_173, %c14_174, %c0_175, %c0_176] : memref<1x16x8x4xf32, #tpu.memory_space<vmem>>, vector<1x1x8x4xf32>
    %214 = vector.shape_cast %213 : vector<1x1x8x4xf32> to vector<8x4xf32>
    %215 = vector.extract_strided_slice %212 {offsets = [0, 0], sizes = [7, 4], strides = [1, 1]} : vector<8x4xf32> to vector<7x4xf32>
    %216 = vector.extract_strided_slice %212 {offsets = [1, 0], sizes = [7, 4], strides = [1, 1]} : vector<8x4xf32> to vector<7x4xf32>
    %217 = vector.extract_strided_slice %214 {offsets = [0, 0], sizes = [7, 4], strides = [1, 1]} : vector<8x4xf32> to vector<7x4xf32>
    %218 = arith.maximumf %210, %215 : vector<7x4xf32>
    %219 = arith.maximumf %218, %216 : vector<7x4xf32>
    %220 = arith.maximumf %219, %217 : vector<7x4xf32>
    %c0_177 = arith.constant 0 : index
    %c6_178 = arith.constant 6 : index
    %c0_179 = arith.constant 0 : index
    %c0_180 = arith.constant 0 : index
    %221 = vector.load %arg3[%c0_177, %c6_178, %c0_179, %c0_180] : memref<1x7x7x4xf32, #tpu.memory_space<vmem>>, vector<1x1x7x4xf32>
    %222 = vector.shape_cast %221 : vector<1x1x7x4xf32> to vector<7x4xf32>
    %223 = vector.shape_cast %220 : vector<7x4xf32> to vector<1x1x7x4xf32>
    tpu.vector_store %arg3[%c0_177, %c6_178, %c0_179, %c0_180], %223 {strides = array<i32>} : memref<1x7x7x4xf32, #tpu.memory_space<vmem>>, vector<1x1x7x4xf32>,
    return
  }
  func.func @transform_0(%arg0: i32) -> (i32, i32, i32, i32) {
    %c0_i32 = arith.constant 0 : i32
    %c0_i32_0 = arith.constant 0 : i32
    %c0_i32_1 = arith.constant 0 : i32
    %c0_i32_2 = arith.constant 0 : i32
    return %arg0, %c0_i32, %c0_i32_0, %c0_i32_1 : i32, i32, i32, i32
  }
  func.func @transform_1(%arg0: i32) -> (i32, i32, i32, i32) {
    %c0_i32 = arith.constant 0 : i32
    %c0_i32_0 = arith.constant 0 : i32
    %c0_i32_1 = arith.constant 0 : i32
    %c0_i32_2 = arith.constant 0 : i32
    return %arg0, %c0_i32, %c0_i32_0, %c0_i32_1 : i32, i32, i32, i32
  }
  func.func @transform_2(%arg0: i32) -> (i32, i32, i32, i32) {
    %c0_i32 = arith.constant 0 : i32
    %c0_i32_0 = arith.constant 0 : i32
    %c0_i32_1 = arith.constant 0 : i32
    %c0_i32_2 = arith.constant 0 : i32
    return %arg0, %c0_i32, %c0_i32_0, %c0_i32_1 : i32, i32, i32, i32
  }
}

</mosaic_0001>

<llo_original>
// kernel: inception_b_forward.6
$region0: #{inception_b_forward.6}
  #allocation0 [shape = 'u32[]', space=smem, size = 0x4, offset = 0x4, fixed_abs, tag = 'smem constant byte address 0x4 - core index']
  #allocation1 [shape = 'u32[144,128]{1,0:T(1,128)}', space=vmem, size = 0x12000, scoped, tag = 'internal scratch']
  %s0 = inlined_call_operand.vmem [shape: bf16[512,128], index: 0, kind: input, shape index: {}]
  %s1 = inlined_call_operand.vmem [shape: bf16[128,128], index: 1, kind: input, shape index: {}]
  %s2 = inlined_call_operand.vmem [shape: f32[1,128], index: 2, kind: input, shape index: {}]
  %s3 = inlined_call_operand.vmem [shape: f32[1,128], index: 3, kind: input, shape index: {}]
  %s4 = inlined_call_operand.vmem [shape: bf16[512,128], index: 4, kind: output, shape index: {}]
  %s5 = sld [smem:[#allocation0]]
  $region49: #{inception_b_forward.6} parent=0
    _
  %s7 = ssub.s32 1, %s5
  %s8 = scalar_select 0, %s7, %s5
  loop: start=0, step=1, limit=4
  $region2: #{inception_b_forward.6} parent=0 // loop_pre_header
    _
  $region3: #{inception_b_forward.6} parent=0 // loop_header
    %s10 = sphi 0, %s14
    %p11 = scmp.ge.s32.totalorder %s10, 4
    %s17 = sphi 0, %s29
    %s18 = sphi 0, %s25
    %s19 = sphi 0, %s17
    %s20 = sphi 0, %s18
    %s21 = sphi 0, %s19
    %s22 = sphi 0, %s20
    %s32 = sphi 0, %s34
    %s35 = sphi 0, %s32
    %s36 = sphi 0, %s35
    %s52 = sphi 0, %s36
    %s58 = sphi 0, %s60
    %s61 = sphi 0, %s58
    %s62 = sphi 0, %s61
    %s78 = sphi 0, %s62
    %s84 = sphi 0, %s86
    %s87 = sphi 0, %s84
    %s88 = sphi 0, %s87
    %s104 = sphi 0, %s88
    %s110 = sphi 0, %s112
    %s113 = sphi 0, %s110
    %s114 = sphi 0, %s113
    %s130 = sphi 0, %s114
    %s138 = sphi 0, %s140
    %s141 = sphi 0, %s138
    %s142 = sphi 0, %s141
    %s158 = sphi 0, %s142
  $region4: #{inception_b_forward.6} parent=0 // loop_header_branch
    %13 = sbr.rel (%p11) target = $region8
  $region5: #{inception_b_forward.6} parent=0 // loop_body
    %s15 = ssub.s32 %s10, 1
    %s16 = ssub.s32 %s10, 2
    %s23 = sadd.s32 1, %s18
    %p24 = scmp.ge.s32.totalorder %s23, 1
    %s25 = scalar_select %p24, 0, %s23
    %s26 = sadd.s32 1, %s17
    %s27 = scalar_select %p24, %s26, %s17
    %p28 = scmp.ge.s32.totalorder %s27, 2
    %s29 = scalar_select %p28, 0, %s27
    %s30 = ssub.s32 %s17, %s29
    %p31 = scmp.eq.s32.totalorder %s30, 0
    %s33 = sadd.s32 %s32, 1
    %s34 = scalar_select %p31, %s32, %s33
    %p37 = pneg %p31
    %p38 = scmp.eq.s32.totalorder %s10, 1
    %p39 = por %p37, %p38
    %p40 = scmp.ne.s32.totalorder %s32, %s35
    %p41 = scmp.eq.s32.totalorder %s10, 0
    %p42 = por %p40, %p41
    %p43 = scmp.ne.s32.totalorder %s32, %s35
    %p44 = scmp.eq.s32.totalorder %s15, 1
    %p45 = por %p43, %p44
    %p46 = scmp.ne.s32.totalorder %s35, %s36
    %p47 = scmp.eq.s32.totalorder %s15, 0
    %p48 = por %p46, %p47
    %p49 = scmp.ne.s32.totalorder %s35, %s36
    %p50 = scmp.eq.s32.totalorder %s16, 1
    %p51 = por %p49, %p50
    %p53 = scmp.ne.s32.totalorder %s36, %s52
    %p54 = scmp.eq.s32.totalorder %s16, 0
    %p55 = por %p53, %p54
    %s56 = ssub.s32 %s18, %s25
    %p57 = scmp.eq.s32.totalorder %s56, 0
    %s59 = sadd.s32 %s58, 1
    %s60 = scalar_select %p57, %s58, %s59
    %p63 = pneg %p57
    %p64 = scmp.eq.s32.totalorder %s10, 1
    %p65 = por %p63, %p64
    %p66 = scmp.ne.s32.totalorder %s58, %s61
    %p67 = scmp.eq.s32.totalorder %s10, 0
    %p68 = por %p66, %p67
    %p69 = scmp.ne.s32.totalorder %s58, %s61
    %p70 = scmp.eq.s32.totalorder %s15, 1
    %p71 = por %p69, %p70
    %p72 = scmp.ne.s32.totalorder %s61, %s62
    %p73 = scmp.eq.s32.totalorder %s15, 0
    %p74 = por %p72, %p73
    %p75 = scmp.ne.s32.totalorder %s61, %s62
    %p76 = scmp.eq.s32.totalorder %s16, 1
    %p77 = por %p75, %p76
    %p79 = scmp.ne.s32.totalorder %s62, %s78
    %p80 = scmp.eq.s32.totalorder %s16, 0
    %p81 = por %p79, %p80
    %s82 = ssub.s32 %s18, %s25
    %p83 = scmp.eq.s32.totalorder %s82, 0
    %s85 = sadd.s32 %s84, 1
    %s86 = scalar_select %p83, %s84, %s85
    %p89 = pneg %p83
    %p90 = scmp.eq.s32.totalorder %s10, 1
    %p91 = por %p89, %p90
    %p92 = scmp.ne.s32.totalorder %s84, %s87
    %p93 = scmp.eq.s32.totalorder %s10, 0
    %p94 = por %p92, %p93
    %p95 = scmp.ne.s32.totalorder %s84, %s87
    %p96 = scmp.eq.s32.totalorder %s15, 1
    %p97 = por %p95, %p96
    %p98 = scmp.ne.s32.totalorder %s87, %s88
    %p99 = scmp.eq.s32.totalorder %s15, 0
    %p100 = por %p98, %p99
    %p101 = scmp.ne.s32.totalorder %s87, %s88
    %p102 = scmp.eq.s32.totalorder %s16, 1
    %p103 = por %p101, %p102
    %p105 = scmp.ne.s32.totalorder %s88, %s104
    %p106 = scmp.eq.s32.totalorder %s16, 0
    %p107 = por %p105, %p106
    %s108 = ssub.s32 %s18, %s25
    %p109 = scmp.eq.s32.totalorder %s108, 0
    %s111 = sadd.s32 %s110, 1
    %s112 = scalar_select %p109, %s110, %s111
    %p115 = pneg %p109
    %p116 = scmp.eq.s32.totalorder %s10, 1
    %p117 = por %p115, %p116
    %p118 = scmp.ne.s32.totalorder %s110, %s113
    %p119 = scmp.eq.s32.totalorder %s10, 0
    %p120 = por %p118, %p119
    %p121 = scmp.ne.s32.totalorder %s110, %s113
    %p122 = scmp.eq.s32.totalorder %s15, 1
    %p123 = por %p121, %p122
    %p124 = scmp.ne.s32.totalorder %s113, %s114
    %p125 = scmp.eq.s32.totalorder %s15, 0
    %p126 = por %p124, %p125
    %p127 = scmp.ne.s32.totalorder %s113, %s114
    %p128 = scmp.eq.s32.totalorder %s16, 1
    %p129 = por %p127, %p128
    %p131 = scmp.ne.s32.totalorder %s114, %s130
    %p132 = scmp.eq.s32.totalorder %s16, 0
    %p133 = por %p131, %p132
    %s134 = ssub.s32 %s17, %s29
    %s135 = ssub.s32 %s18, %s25
    %s136 = sor.u32 %s134, %s135
    %p137 = scmp.eq.s32.totalorder %s136, 0
    %s139 = sadd.s32 %s138, 1
    %s140 = scalar_select %p137, %s138, %s139
    %p143 = pneg %p137
    %p144 = scmp.eq.s32.totalorder %s10, 1
    %p145 = por %p143, %p144
    %p146 = scmp.ne.s32.totalorder %s138, %s141
    %p147 = scmp.eq.s32.totalorder %s10, 0
    %p148 = por %p146, %p147
    %p149 = scmp.ne.s32.totalorder %s138, %s141
    %p150 = scmp.eq.s32.totalorder %s15, 1
    %p151 = por %p149, %p150
    %p152 = scmp.ne.s32.totalorder %s141, %s142
    %p153 = scmp.eq.s32.totalorder %s15, 0
    %p154 = por %p152, %p153
    %p155 = scmp.ne.s32.totalorder %s141, %s142
    %p156 = scmp.eq.s32.totalorder %s16, 1
    %p157 = por %p155, %p156
    %p159 = scmp.ne.s32.totalorder %s142, %s158
    %p160 = scmp.eq.s32.totalorder %s16, 0
    %p161 = por %p159, %p160
    %p162 = scmp.le.s32.totalorder 1, %s10
    %p163 = scmp.lt.s32.totalorder %s10, 3
    %p164 = pnand %p162, %p163
    %p165 = pneg %p164
    // Predicated region
    $region9: #{inception_b_forward.6} parent=5 // pred_check
      _
    $region10: #{inception_b_forward.6} parent=5 // pred_check_branch
      %167 = sbr.rel (%p164) target = $region12
    $region11: #{inception_b_forward.6} parent=5 // pred_region
      %s168 = ssub.s32 %s10, 1
      // Predicated region
      $region13: #{inception_b_forward.6} parent=11 // pred_check
        %p169 = pneg %p74
      $region14: #{inception_b_forward.6} parent=11 // pred_check_branch
        %171 = sbr.rel (%p169) target = $region16
      $region15: #{inception_b_forward.6} parent=11 // pred_region
        %p172 = scmp.lt.s32.totalorder %s20, 0
        %s173 = scalar_select %p172, %s20, 0
        %s174 = smul.addr %s173, 4
        %s175 = scalar_lea.vmem %s1, %s174
      $region16: #{inception_b_forward.6} parent=11 // pred_fallthru
        _
      // Predicated region
      $region17: #{inception_b_forward.6} parent=11 // pred_check
        %p176 = pneg %p100
      $region18: #{inception_b_forward.6} parent=11 // pred_check_branch
        %178 = sbr.rel (%p176) target = $region20
      $region19: #{inception_b_forward.6} parent=11 // pred_region
        %p179 = scmp.lt.s32.totalorder %s20, 0
        %s180 = scalar_select %p179, %s20, 0
        %s181 = scalar_lea.vmem %s2, %s180
      $region20: #{inception_b_forward.6} parent=11 // pred_fallthru
        _
      // Predicated region
      $region21: #{inception_b_forward.6} parent=11 // pred_check
        %p182 = pneg %p126
      $region22: #{inception_b_forward.6} parent=11 // pred_check_branch
        %184 = sbr.rel (%p182) target = $region24
      $region23: #{inception_b_forward.6} parent=11 // pred_region
        %p185 = scmp.lt.s32.totalorder %s20, 0
        %s186 = scalar_select %p185, %s20, 0
        %s187 = scalar_lea.vmem %s3, %s186
      $region24: #{inception_b_forward.6} parent=11 // pred_fallthru
        _
    $region12: #{inception_b_forward.6} parent=5 // pred_fallthru
      _
    %p188 = scmp.lt.s32.totalorder %s10, 2
    // Predicated region
    $region25: #{inception_b_forward.6} parent=5 // pred_check
      %p189 = pneg %p188
    $region26: #{inception_b_forward.6} parent=5 // pred_check_branch
      %191 = sbr.rel (%p189) target = $region28
    $region27: #{inception_b_forward.6} parent=5 // pred_region
      // Predicated region
      $region29: #{inception_b_forward.6} parent=27 // pred_check
        %p192 = pneg %p42
      $region30: #{inception_b_forward.6} parent=27 // pred_check_branch
        %194 = sbr.rel (%p192) target = $region32
      $region31: #{inception_b_forward.6} parent=27 // pred_region
        %s195 = smul.u32 32, %s17
        %p196 = scmp.lt.s32.totalorder %s195, 63
        %s197 = scalar_select %p196, %s195, 63
        %s198 = smul.addr %s197, 4
        %s199 = scalar_lea.vmem %s0, %s198
        %s200 = smul.u32 32, %s17
      $region32: #{inception_b_forward.6} parent=27 // pred_fallthru
        _
    $region28: #{inception_b_forward.6} parent=5 // pred_fallthru
      _
    %p201 = scmp.le.s32.totalorder 1, %s10
    %p202 = scmp.lt.s32.totalorder %s10, 3
    %p203 = pnand %p201, %p202
    %p204 = pneg %p203
    // Predicated region
    $region33: #{inception_b_forward.6} parent=5 // pred_check
      _
    $region34: #{inception_b_forward.6} parent=5 // pred_check_branch
      %206 = sbr.rel (%p203) target = $region36
    $region35: #{inception_b_forward.6} parent=5 // pred_region
      %s207 = ssub.s32 %s10, 1
      %s208 = smul.u32 32, %s19
      %p209 = scmp.lt.s32.totalorder %s208, 63
      %s210 = scalar_select %p209, %s208, 63
      %s211 = smul.addr %s210, 4
      %s212 = scalar_lea.vmem %s0, %s211
      %p213 = pneg %p48
      %p214 = pneg %p45
      %p215 = scmp.lt.s32.totalorder %s20, 0
      %s216 = scalar_select %p215, %s20, 0
      %s217 = smul.addr %s216, 4
      %s218 = scalar_lea.vmem %s1, %s217
      %p219 = pneg %p74
      %p220 = pneg %p71
      %p221 = scmp.lt.s32.totalorder %s20, 0
      %s222 = scalar_select %p221, %s20, 0
      %s223 = scalar_lea.vmem %s2, %s222
      %p224 = pneg %p100
      %p225 = pneg %p97
      %p226 = scmp.lt.s32.totalorder %s20, 0
      %s227 = scalar_select %p226, %s20, 0
      %s228 = scalar_lea.vmem %s3, %s227
      %p229 = pneg %p126
      %p230 = pneg %p123
      %p231 = pneg %p154
      %p232 = pneg %p151
      %s233 = smul.u32 32, %s19
      %p234 = scmp.lt.s32.totalorder %s233, 63
      %s235 = scalar_select %p234, %s233, 63
      %p236 = scmp.lt.s32.totalorder %s20, 0
      %s237 = scalar_select %p236, %s20, 0
      %s238 = sadd.s32 %s237, %s235
      %s239 = smul.addr %s238, 4
      %s240 = scalar_lea.vmem %s4, %s239
      %s241 = smul.u32 32, %s19
      %p242 = scmp.lt.s32.totalorder %s241, 63
      %s243 = scalar_select %p242, %s241, 63
      %s244 = smul.addr %s243, 4
      %s245 = scalar_lea.vmem %s0, %s244
      %s246 = smul.u32 32, %s19
      %p247 = scmp.lt.s32.totalorder %s20, 0
      %s248 = scalar_select %p247, %s20, 0
      %s249 = smul.addr %s248, 4
      %s250 = scalar_lea.vmem %s1, %s249
      %p251 = scmp.lt.s32.totalorder %s20, 0
      %s252 = scalar_select %p251, %s20, 0
      %s253 = scalar_lea.vmem %s2, %s252
      %p254 = scmp.lt.s32.totalorder %s20, 0
      %s255 = scalar_select %p254, %s20, 0
      %s256 = scalar_lea.vmem %s3, %s255
      %s257 = smul.u32 32, %s19
      %p258 = scmp.lt.s32.totalorder %s257, 63
      %s259 = scalar_select %p258, %s257, 63
      %p260 = scmp.lt.s32.totalorder %s20, 0
      %s261 = scalar_select %p260, %s20, 0
      %s262 = sadd.s32 %s261, %s259
      %s263 = smul.addr %s262, 4
      %s264 = scalar_lea.vmem %s4, %s263
      %s265 = smul.u32 32, %s19
      %v267 = vld [vmem:[%s245] sm:$0xf]
      %v268 = vld [vmem:[%s245 + $0x4] sm:$0xf]
      %v269 = vld [vmem:[%s245 + $0x8] sm:$0xf]
      %v270 = vld [vmem:[%s245 + $0xc] sm:$0xf]
      %v271 = vld [vmem:[%s245 + $0x10] sm:$0xf]
      %v272 = vld [vmem:[%s245 + $0x14] sm:$0xf]
      %v273 = vld [vmem:[%s245 + $0x18] sm:$0xf]
      %v274 = vld [vmem:[%s245 + $0x1c] sm:$0xf]
      %v275 = vld [vmem:[%s245 + $0x20] sm:$0xf]
      %v276 = vld [vmem:[%s245 + $0x24] sm:$0xf]
      %v277 = vld [vmem:[%s245 + $0x28] sm:$0xf]
      %v278 = vld [vmem:[%s245 + $0x2c] sm:$0xf]
      %v279 = vld [vmem:[%s245 + $0x30] sm:$0xf]
      %v280 = vld [vmem:[%s245 + $0x34] sm:$0xf]
      %v281 = vld [vmem:[%s245 + $0x38] sm:$0xf]
      %v282 = vld [vmem:[%s245 + $0x3c] sm:$0xf]
      %v283 = vld [vmem:[%s245 + $0x40] sm:$0xf]
      %v284 = vld [vmem:[%s245 + $0x44] sm:$0xf]
      %v285 = vld [vmem:[%s245 + $0x48] sm:$0xf]
      %v286 = vld [vmem:[%s245 + $0x4c] sm:$0xf]
      %v287 = vld [vmem:[%s245 + $0x50] sm:$0xf]
      %v288 = vld [vmem:[%s245 + $0x54] sm:$0xf]
      %v289 = vld [vmem:[%s245 + $0x58] sm:$0xf]
      %v290 = vld [vmem:[%s245 + $0x5c] sm:$0xf]
      %v291 = vld [vmem:[%s245 + $0x60] sm:$0xf]
      %v292 = vld [vmem:[%s245 + $0x64] sm:$0xf]
      %v293 = vld [vmem:[%s245 + $0x68] sm:$0xf]
      %v294 = vld [vmem:[%s245 + $0x6c] sm:$0xf]
      %v295 = vld [vmem:[%s245 + $0x70] sm:$0xf]
      %v296 = vld [vmem:[%s245 + $0x74] sm:$0xf]
      %v297 = vld [vmem:[%s245 + $0x78] sm:$0xf]
      %v298 = vld [vmem:[%s245 + $0x7c] sm:$0xf]
      %v299 = vld [vmem:[%s250] sm:$0xf]
      %v300 = vld [vmem:[%s250 + $0x4] sm:$0xf]
      %v301 = vld [vmem:[%s250 + $0x8] sm:$0xf]
      %v302 = vld [vmem:[%s250 + $0xc] sm:$0xf]
      %v303 = vld [vmem:[%s250 + $0x10] sm:$0xf]
      %v304 = vld [vmem:[%s250 + $0x14] sm:$0xf]
      %v305 = vld [vmem:[%s250 + $0x18] sm:$0xf]
      %v306 = vld [vmem:[%s250 + $0x1c] sm:$0xf]
      %v307 = vld [vmem:[%s250 + $0x20] sm:$0xf]
      %v308 = vld [vmem:[%s250 + $0x24] sm:$0xf]
      %v309 = vld [vmem:[%s250 + $0x28] sm:$0xf]
      %v310 = vld [vmem:[%s250 + $0x2c] sm:$0xf]
      %v311 = vld [vmem:[%s250 + $0x30] sm:$0xf]
      %v312 = vld [vmem:[%s250 + $0x34] sm:$0xf]
      %v313 = vld [vmem:[%s250 + $0x38] sm:$0xf]
      %v314 = vld [vmem:[%s250 + $0x3c] sm:$0xf]
      %v347 = vunpack.c.l.b16 %v267
      %v348 = vunpack.c.l.b16 %v268
      %v349 = vunpack.c.l.b16 %v269
      %v350 = vunpack.c.l.b16 %v270
      %v351 = vunpack.c.l.b16 %v271
      %v352 = vunpack.c.l.b16 %v272
      %v353 = vunpack.c.l.b16 %v273
      %v354 = vunpack.c.l.b16 %v274
      %v355 = vunpack.c.l.b16 %v275
      %v356 = vunpack.c.l.b16 %v276
      %v357 = vunpack.c.l.b16 %v277
      %v358 = vunpack.c.l.b16 %v278
      %v359 = vunpack.c.l.b16 %v279
      %v360 = vunpack.c.l.b16 %v280
      %v361 = vunpack.c.l.b16 %v281
      %v362 = vunpack.c.l.b16 %v282
      %v363 = vunpack.c.l.b16 %v283
      %v364 = vunpack.c.l.b16 %v284
      %v365 = vunpack.c.l.b16 %v285
      %v366 = vunpack.c.l.b16 %v286
      %v367 = vunpack.c.l.b16 %v287
      %v368 = vunpack.c.l.b16 %v288
      %v369 = vunpack.c.l.b16 %v289
      %v370 = vunpack.c.l.b16 %v290
      %v371 = vunpack.c.l.b16 %v291
      %v372 = vunpack.c.l.b16 %v292
      %v373 = vunpack.c.l.b16 %v293
      %v374 = vunpack.c.l.b16 %v294
      %v375 = vunpack.c.l.b16 %v295
      %v376 = vunpack.c.l.b16 %v296
      %v377 = vunpack.c.l.b16 %v297
      %v378 = vunpack.c.l.b16 %v298
      %v379 = vpack.c.b16 %v348, %v347
      %v380 = vpack.c.b16 %v350, %v349
      %v381 = vpack.c.b16 %v352, %v351
      %v382 = vpack.c.b16 %v354, %v353
      %v383 = vpack.c.b16 %v356, %v355
      %v384 = vpack.c.b16 %v358, %v357
      %v385 = vpack.c.b16 %v360, %v359
      %v386 = vpack.c.b16 %v362, %v361
      %v387 = vpack.c.b16 %v364, %v363
      %v388 = vpack.c.b16 %v366, %v365
      %v389 = vpack.c.b16 %v368, %v367
      %v390 = vpack.c.b16 %v370, %v369
      %v391 = vpack.c.b16 %v372, %v371
      %v392 = vpack.c.b16 %v374, %v373
      %v393 = vpack.c.b16 %v376, %v375
      %v394 = vpack.c.b16 %v378, %v377
      %v427 = vunpack.c.l.b16 %v299
      %v428 = vunpack.c.l.b16 %v300
      %v429 = vunpack.c.l.b16 %v301
      %v430 = vunpack.c.l.b16 %v302
      %v431 = vunpack.c.l.b16 %v303
      %v432 = vunpack.c.l.b16 %v304
      %v433 = vunpack.c.l.b16 %v305
      %v434 = vunpack.c.l.b16 %v306
      %v435 = vunpack.c.l.b16 %v307
      %v436 = vunpack.c.l.b16 %v308
      %v437 = vunpack.c.l.b16 %v309
      %v438 = vunpack.c.l.b16 %v310
      %v439 = vunpack.c.l.b16 %v311
      %v440 = vunpack.c.l.b16 %v312
      %v441 = vunpack.c.l.b16 %v313
      %v442 = vunpack.c.l.b16 %v314
      %v443 = vpack.c.b16 %v428, %v427
      %v444 = vpack.c.b16 %v430, %v429
      %v445 = vpack.c.b16 %v432, %v431
      %v446 = vpack.c.b16 %v434, %v433
      %v447 = vpack.c.b16 %v436, %v435
      %v448 = vpack.c.b16 %v438, %v437
      %v449 = vpack.c.b16 %v440, %v439
      %v450 = vpack.c.b16 %v442, %v441
      %459 = vmatprep.subr.bf16.mxu0 0
      %460 = vmatpush1.bf16.msra.mxu0 %v450
      %461 = vmatprep.subr.bf16.mxu0 0
      %462 = vmatpush1.bf16.msra.mxu0 %v449
      %463 = vmatprep.subr.bf16.mxu0 0
      %464 = vmatpush1.bf16.msra.mxu0 %v448
      %465 = vmatprep.subr.bf16.mxu0 0
      %466 = vmatpush1.bf16.msra.mxu0 %v447
      %467 = vmatprep.subr.bf16.mxu0 0
      %468 = vmatpush1.bf16.msra.mxu0 %v446
      %469 = vmatprep.subr.bf16.mxu0 0
      %470 = vmatpush1.bf16.msra.mxu0 %v445
      %471 = vmatprep.subr.bf16.mxu0 0
      %472 = vmatpush1.bf16.msra.mxu0 %v444
      %473 = vmatprep.subr.bf16.mxu0 0
      %474 = vmatpush1.bf16.msra.mxu0 %v443
      %475 = vmatprep.subr.bf16.mxu0 0
      %476 = vmatpush2.bf16.msra.mxu0 0
      %477 = vmatprep.subr.bf16.mxu0 0
      %478 = vmatpush2.bf16.msra.mxu0 0
      %479 = vmatprep.subr.bf16.mxu0 0
      %480 = vmatpush2.bf16.msra.mxu0 0
      %481 = vmatprep.subr.bf16.mxu0 0
      %482 = vmatpush2.bf16.msra.mxu0 0
      %483 = vmatprep.subr.bf16.mxu0 0
      %484 = vmatpush2.bf16.msra.mxu0 0
      %485 = vmatprep.subr.bf16.mxu0 0
      %486 = vmatpush2.bf16.msra.mxu0 0
      %487 = vmatprep.subr.bf16.mxu0 0
      %488 = vmatpush2.bf16.msra.mxu0 0
      %489 = vmatprep.subr.bf16.mxu0 0
      %490 = vmatpush2.bf16.msra.mxu0 0
      %491 = vmatprep.mubr.bf16.mxu0 0
      %492 = vmatmul.mubr.bf16.gmra.mxu0 %v379
      %v493 = vpop.f32.mrf.mxu0
      %v494 = vadd.f32 0.0, %v493
      %v495 = vpop.f32.mrf.mxu0
      %v496 = vpop.f32.mrf.mxu0
      %v497 = vadd.f32 0.0, %v496
      %v498 = vpop.f32.mrf.mxu0
      %499 = vmatprep.mubr.bf16.mxu0 0
      %500 = vmatmul.mubr.bf16.gmra.mxu0 %v380
      %v501 = vpop.f32.mrf.mxu0
      %v502 = vadd.f32 0.0, %v501
      %v503 = vpop.f32.mrf.mxu0
      %v504 = vpop.f32.mrf.mxu0
      %v505 = vadd.f32 0.0, %v504
      %v506 = vpop.f32.mrf.mxu0
      %507 = vmatprep.mubr.bf16.mxu0 0
      %508 = vmatmul.mubr.bf16.gmra.mxu0 %v381
      %v509 = vpop.f32.mrf.mxu0
      %v510 = vadd.f32 0.0, %v509
      %v511 = vpop.f32.mrf.mxu0
      %v512 = vpop.f32.mrf.mxu0
      %v513 = vadd.f32 0.0, %v512
      %v514 = vpop.f32.mrf.mxu0
      %515 = vmatprep.mubr.bf16.mxu0 0
      %516 = vmatmul.mubr.bf16.gmra.mxu0 %v382
      %v517 = vpop.f32.mrf.mxu0
      %v518 = vadd.f32 0.0, %v517
      %v519 = vpop.f32.mrf.mxu0
      %v520 = vpop.f32.mrf.mxu0
      %v521 = vadd.f32 0.0, %v520
      %v522 = vpop.f32.mrf.mxu0
      %523 = vmatprep.mubr.bf16.mxu0 0
      %524 = vmatmul.mubr.bf16.gmra.mxu0 %v383
      %v525 = vpop.f32.mrf.mxu0
      %v526 = vadd.f32 0.0, %v525
      %v527 = vpop.f32.mrf.mxu0
      %v528 = vpop.f32.mrf.mxu0
      %v529 = vadd.f32 0.0, %v528
      %v530 = vpop.f32.mrf.mxu0
      %531 = vmatprep.mubr.bf16.mxu0 0
      %532 = vmatmul.mubr.bf16.gmra.mxu0 %v384
      %v533 = vpop.f32.mrf.mxu0
      %v534 = vadd.f32 0.0, %v533
      %v535 = vpop.f32.mrf.mxu0
      %v536 = vpop.f32.mrf.mxu0
      %v537 = vadd.f32 0.0, %v536
      %v538 = vpop.f32.mrf.mxu0
      %539 = vmatprep.mubr.bf16.mxu0 0
      %540 = vmatmul.mubr.bf16.gmra.mxu0 %v385
      %v541 = vpop.f32.mrf.mxu0
      %v542 = vadd.f32 0.0, %v541
      %v543 = vpop.f32.mrf.mxu0
      %v544 = vpop.f32.mrf.mxu0
      %v545 = vadd.f32 0.0, %v544
      %v546 = vpop.f32.mrf.mxu0
      %547 = vmatprep.mubr.bf16.mxu0 0
      %548 = vmatmul.mubr.bf16.gmra.mxu0 %v386
      %v549 = vpop.f32.mrf.mxu0
      %v550 = vadd.f32 0.0, %v549
      %v551 = vpop.f32.mrf.mxu0
      %v552 = vpop.f32.mrf.mxu0
      %v553 = vadd.f32 0.0, %v552
      %v554 = vpop.f32.mrf.mxu0
      %555 = vmatprep.mubr.bf16.mxu0 0
      %556 = vmatmul.mubr.bf16.gmra.mxu0 %v387
      %v557 = vpop.f32.mrf.mxu0
      %v558 = vadd.f32 0.0, %v557
      %v559 = vpop.f32.mrf.mxu0
      %v560 = vpop.f32.mrf.mxu0
      %v561 = vadd.f32 0.0, %v560
      %v562 = vpop.f32.mrf.mxu0
      %563 = vmatprep.mubr.bf16.mxu0 0
      %564 = vmatmul.mubr.bf16.gmra.mxu0 %v388
      %v565 = vpop.f32.mrf.mxu0
      %v566 = vadd.f32 0.0, %v565
      %v567 = vpop.f32.mrf.mxu0
      %v568 = vpop.f32.mrf.mxu0
      %v569 = vadd.f32 0.0, %v568
      %v570 = vpop.f32.mrf.mxu0
      %571 = vmatprep.mubr.bf16.mxu0 0
      %572 = vmatmul.mubr.bf16.gmra.mxu0 %v389
      %v573 = vpop.f32.mrf.mxu0
      %v574 = vadd.f32 0.0, %v573
      %v575 = vpop.f32.mrf.mxu0
      %v576 = vpop.f32.mrf.mxu0
      %v577 = vadd.f32 0.0, %v576
      %v578 = vpop.f32.mrf.mxu0
      %579 = vmatprep.mubr.bf16.mxu0 0
      %580 = vmatmul.mubr.bf16.gmra.mxu0 %v390
      %v581 = vpop.f32.mrf.mxu0
      %v582 = vadd.f32 0.0, %v581
      %v583 = vpop.f32.mrf.mxu0
      %v584 = vpop.f32.mrf.mxu0
      %v585 = vadd.f32 0.0, %v584
      %v586 = vpop.f32.mrf.mxu0
      %587 = vmatprep.mubr.bf16.mxu0 0
      %588 = vmatmul.mubr.bf16.gmra.mxu0 %v391
      %v589 = vpop.f32.mrf.mxu0
      %v590 = vadd.f32 0.0, %v589
      %v591 = vpop.f32.mrf.mxu0
      %v592 = vpop.f32.mrf.mxu0
      %v593 = vadd.f32 0.0, %v592
      %v594 = vpop.f32.mrf.mxu0
      %595 = vmatprep.mubr.bf16.mxu0 0
      %596 = vmatmul.mubr.bf16.gmra.mxu0 %v392
      %v597 = vpop.f32.mrf.mxu0
      %v598 = vadd.f32 0.0, %v597
      %v599 = vpop.f32.mrf.mxu0
      %v600 = vpop.f32.mrf.mxu0
      %v601 = vadd.f32 0.0, %v600
      %v602 = vpop.f32.mrf.mxu0
      %603 = vmatprep.mubr.bf16.mxu0 0
      %604 = vmatmul.mubr.bf16.gmra.mxu0 %v393
      %v605 = vpop.f32.mrf.mxu0
      %v606 = vadd.f32 0.0, %v605
      %v607 = vpop.f32.mrf.mxu0
      %v608 = vpop.f32.mrf.mxu0
      %v609 = vadd.f32 0.0, %v608
      %v610 = vpop.f32.mrf.mxu0
      %611 = vmatprep.mubr.bf16.mxu0 0
      %612 = vmatmul.mubr.bf16.gmra.mxu0 %v394
      %v613 = vpop.f32.mrf.mxu0
      %v614 = vadd.f32 0.0, %v613
      %v615 = vpop.f32.mrf.mxu0
      %v616 = vpop.f32.mrf.mxu0
      %v617 = vadd.f32 0.0, %v616
      %v618 = vpop.f32.mrf.mxu0
      %619 = vdwg.mxu0
      %v620 = vld [vmem:[%s253] sm:$0x1]
      %v622 = vlaneseq
      %v623 = vshrl.u32 %v622, 7
      %v624 = vsub.s32 0, %v623
      %v625 = vrot.slane %v620, %v624
      %v627 = vmul.f32 %v494, %v625
      %v628 = vmul.f32 %v497, %v625
      %v629 = vmul.f32 %v502, %v625
      %v630 = vmul.f32 %v505, %v625
      %v631 = vmul.f32 %v510, %v625
      %v632 = vmul.f32 %v513, %v625
      %v633 = vmul.f32 %v518, %v625
      %v634 = vmul.f32 %v521, %v625
      %v635 = vmul.f32 %v526, %v625
      %v636 = vmul.f32 %v529, %v625
      %v637 = vmul.f32 %v534, %v625
      %v638 = vmul.f32 %v537, %v625
      %v639 = vmul.f32 %v542, %v625
      %v640 = vmul.f32 %v545, %v625
      %v641 = vmul.f32 %v550, %v625
      %v642 = vmul.f32 %v553, %v625
      %v643 = vmul.f32 %v558, %v625
      %v644 = vmul.f32 %v561, %v625
      %v645 = vmul.f32 %v566, %v625
      %v646 = vmul.f32 %v569, %v625
      %v647 = vmul.f32 %v574, %v625
      %v648 = vmul.f32 %v577, %v625
      %v649 = vmul.f32 %v582, %v625
      %v650 = vmul.f32 %v585, %v625
      %v651 = vmul.f32 %v590, %v625
      %v652 = vmul.f32 %v593, %v625
      %v653 = vmul.f32 %v598, %v625
      %v654 = vmul.f32 %v601, %v625
      %v655 = vmul.f32 %v606, %v625
      %v656 = vmul.f32 %v609, %v625
      %v657 = vmul.f32 %v614, %v625
      %v658 = vmul.f32 %v617, %v625
      %v659 = vld [vmem:[%s256] sm:$0x1]
      %v661 = vlaneseq
      %v662 = vshrl.u32 %v661, 7
      %v663 = vsub.s32 0, %v662
      %v664 = vrot.slane %v659, %v663
      %v666 = vadd.f32 %v627, %v664
      %v667 = vadd.f32 %v628, %v664
      %v668 = vadd.f32 %v629, %v664
      %v669 = vadd.f32 %v630, %v664
      %v670 = vadd.f32 %v631, %v664
      %v671 = vadd.f32 %v632, %v664
      %v672 = vadd.f32 %v633, %v664
      %v673 = vadd.f32 %v634, %v664
      %v674 = vadd.f32 %v635, %v664
      %v675 = vadd.f32 %v636, %v664
      %v676 = vadd.f32 %v637, %v664
      %v677 = vadd.f32 %v638, %v664
      %v678 = vadd.f32 %v639, %v664
      %v679 = vadd.f32 %v640, %v664
      %v680 = vadd.f32 %v641, %v664
      %v681 = vadd.f32 %v642, %v664
      %v682 = vadd.f32 %v643, %v664
      %v683 = vadd.f32 %v644, %v664
      %v684 = vadd.f32 %v645, %v664
      %v685 = vadd.f32 %v646, %v664
      %v686 = vadd.f32 %v647, %v664
      %v687 = vadd.f32 %v648, %v664
      %v688 = vadd.f32 %v649, %v664
      %v689 = vadd.f32 %v650, %v664
      %v690 = vadd.f32 %v651, %v664
      %v691 = vadd.f32 %v652, %v664
      %v692 = vadd.f32 %v653, %v664
      %v693 = vadd.f32 %v654, %v664
      %v694 = vadd.f32 %v655, %v664
      %v695 = vadd.f32 %v656, %v664
      %v696 = vadd.f32 %v657, %v664
      %v697 = vadd.f32 %v658, %v664
      %v698 = vmax.f32 %v666, 0.0
      %v699 = vmax.f32 %v667, 0.0
      %v700 = vmax.f32 %v668, 0.0
      %v701 = vmax.f32 %v669, 0.0
      %v702 = vmax.f32 %v670, 0.0
      %v703 = vmax.f32 %v671, 0.0
      %v704 = vmax.f32 %v672, 0.0
      %v705 = vmax.f32 %v673, 0.0
      %v706 = vmax.f32 %v674, 0.0
      %v707 = vmax.f32 %v675, 0.0
      %v708 = vmax.f32 %v676, 0.0
      %v709 = vmax.f32 %v677, 0.0
      %v710 = vmax.f32 %v678, 0.0
      %v711 = vmax.f32 %v679, 0.0
      %v712 = vmax.f32 %v680, 0.0
      %v713 = vmax.f32 %v681, 0.0
      %v714 = vmax.f32 %v682, 0.0
      %v715 = vmax.f32 %v683, 0.0
      %v716 = vmax.f32 %v684, 0.0
      %v717 = vmax.f32 %v685, 0.0
      %v718 = vmax.f32 %v686, 0.0
      %v719 = vmax.f32 %v687, 0.0
      %v720 = vmax.f32 %v688, 0.0
      %v721 = vmax.f32 %v689, 0.0
      %v722 = vmax.f32 %v690, 0.0
      %v723 = vmax.f32 %v691, 0.0
      %v724 = vmax.f32 %v692, 0.0
      %v725 = vmax.f32 %v693, 0.0
      %v726 = vmax.f32 %v694, 0.0
      %v727 = vmax.f32 %v695, 0.0
      %v728 = vmax.f32 %v696, 0.0
      %v729 = vmax.f32 %v697, 0.0
      %v730 = vpack.c.bf16 %v699, %v698
      %v731 = vpack.c.bf16 %v701, %v700
      %v732 = vpack.c.bf16 %v703, %v702
      %v733 = vpack.c.bf16 %v705, %v704
      %v734 = vpack.c.bf16 %v707, %v706
      %v735 = vpack.c.bf16 %v709, %v708
      %v736 = vpack.c.bf16 %v711, %v710
      %v737 = vpack.c.bf16 %v713, %v712
      %v738 = vpack.c.bf16 %v715, %v714
      %v739 = vpack.c.bf16 %v717, %v716
      %v740 = vpack.c.bf16 %v719, %v718
      %v741 = vpack.c.bf16 %v721, %v720
      %v742 = vpack.c.bf16 %v723, %v722
      %v743 = vpack.c.bf16 %v725, %v724
      %v744 = vpack.c.bf16 %v727, %v726
      %v745 = vpack.c.bf16 %v729, %v728
      %v762 = vunpack.c.l.b16 %v730
      %v763 = vunpack.c.h.b16 %v730
      %v764 = vunpack.c.l.b16 %v731
      %v765 = vunpack.c.h.b16 %v731
      %v766 = vunpack.c.l.b16 %v732
      %v767 = vunpack.c.h.b16 %v732
      %v768 = vunpack.c.l.b16 %v733
      %v769 = vunpack.c.h.b16 %v733
      %v770 = vunpack.c.l.b16 %v734
      %v771 = vunpack.c.h.b16 %v734
      %v772 = vunpack.c.l.b16 %v735
      %v773 = vunpack.c.h.b16 %v735
      %v774 = vunpack.c.l.b16 %v736
      %v775 = vunpack.c.h.b16 %v736
      %v776 = vunpack.c.l.b16 %v737
      %v777 = vunpack.c.h.b16 %v737
      %v778 = vunpack.c.l.b16 %v738
      %v779 = vunpack.c.h.b16 %v738
      %v780 = vunpack.c.l.b16 %v739
      %v781 = vunpack.c.h.b16 %v739
      %v782 = vunpack.c.l.b16 %v740
      %v783 = vunpack.c.h.b16 %v740
      %v784 = vunpack.c.l.b16 %v741
      %v785 = vunpack.c.h.b16 %v741
      %v786 = vunpack.c.l.b16 %v742
      %v787 = vunpack.c.h.b16 %v742
      %v788 = vunpack.c.l.b16 %v743
      %v789 = vunpack.c.h.b16 %v743
      %v790 = vunpack.c.l.b16 %v744
      %v791 = vunpack.c.h.b16 %v744
      %v792 = vunpack.c.l.b16 %v745
      %v793 = vunpack.c.h.b16 %v745
      %v794 = vpack.c.b16 %v762, %v762
      %v795 = vpack.c.b16 %v763, %v763
      %v796 = vpack.c.b16 %v764, %v764
      %v797 = vpack.c.b16 %v765, %v765
      %v798 = vpack.c.b16 %v766, %v766
      %v799 = vpack.c.b16 %v767, %v767
      %v800 = vpack.c.b16 %v768, %v768
      %v801 = vpack.c.b16 %v769, %v769
      %v802 = vpack.c.b16 %v770, %v770
      %v803 = vpack.c.b16 %v771, %v771
      %v804 = vpack.c.b16 %v772, %v772
      %v805 = vpack.c.b16 %v773, %v773
      %v806 = vpack.c.b16 %v774, %v774
      %v807 = vpack.c.b16 %v775, %v775
      %v808 = vpack.c.b16 %v776, %v776
      %v809 = vpack.c.b16 %v777, %v777
      %v810 = vpack.c.b16 %v778, %v778
      %v811 = vpack.c.b16 %v779, %v779
      %v812 = vpack.c.b16 %v780, %v780
      %v813 = vpack.c.b16 %v781, %v781
      %v814 = vpack.c.b16 %v782, %v782
      %v815 = vpack.c.b16 %v783, %v783
      %v816 = vpack.c.b16 %v784, %v784
      %v817 = vpack.c.b16 %v785, %v785
      %v818 = vpack.c.b16 %v786, %v786
      %v819 = vpack.c.b16 %v787, %v787
      %v820 = vpack.c.b16 %v788, %v788
      %v821 = vpack.c.b16 %v789, %v789
      %v822 = vpack.c.b16 %v790, %v790
      %v823 = vpack.c.b16 %v791, %v791
      %v824 = vpack.c.b16 %v792, %v792
      %v825 = vpack.c.b16 %v793, %v793
      %858 = vst [vmem:[%s264] sm:$0xf] %v794
      %859 = vst [vmem:[%s264 + $0x4] sm:$0xf] %v795
      %860 = vst [vmem:[%s264 + $0x8] sm:$0xf] %v796
      %861 = vst [vmem:[%s264 + $0xc] sm:$0xf] %v797
      %862 = vst [vmem:[%s264 + $0x10] sm:$0xf] %v798
      %863 = vst [vmem:[%s264 + $0x14] sm:$0xf] %v799
      %864 = vst [vmem:[%s264 + $0x18] sm:$0xf] %v800
      %865 = vst [vmem:[%s264 + $0x1c] sm:$0xf] %v801
      %866 = vst [vmem:[%s264 + $0x20] sm:$0xf] %v802
      %867 = vst [vmem:[%s264 + $0x24] sm:$0xf] %v803
      %868 = vst [vmem:[%s264 + $0x28] sm:$0xf] %v804
      %869 = vst [vmem:[%s264 + $0x2c] sm:$0xf] %v805
      %870 = vst [vmem:[%s264 + $0x30] sm:$0xf] %v806
      %871 = vst [vmem:[%s264 + $0x34] sm:$0xf] %v807
      %872 = vst [vmem:[%s264 + $0x38] sm:$0xf] %v808
      %873 = vst [vmem:[%s264 + $0x3c] sm:$0xf] %v809
      %874 = vst [vmem:[%s264 + $0x40] sm:$0xf] %v810
      %875 = vst [vmem:[%s264 + $0x44] sm:$0xf] %v811
      %876 = vst [vmem:[%s264 + $0x48] sm:$0xf] %v812
      %877 = vst [vmem:[%s264 + $0x4c] sm:$0xf] %v813
      %878 = vst [vmem:[%s264 + $0x50] sm:$0xf] %v814
      %879 = vst [vmem:[%s264 + $0x54] sm:$0xf] %v815
      %880 = vst [vmem:[%s264 + $0x58] sm:$0xf] %v816
      %881 = vst [vmem:[%s264 + $0x5c] sm:$0xf] %v817
      %882 = vst [vmem:[%s264 + $0x60] sm:$0xf] %v818
      %883 = vst [vmem:[%s264 + $0x64] sm:$0xf] %v819
      %884 = vst [vmem:[%s264 + $0x68] sm:$0xf] %v820
      %885 = vst [vmem:[%s264 + $0x6c] sm:$0xf] %v821
      %886 = vst [vmem:[%s264 + $0x70] sm:$0xf] %v822
      %887 = vst [vmem:[%s264 + $0x74] sm:$0xf] %v823
      %888 = vst [vmem:[%s264 + $0x78] sm:$0xf] %v824
      %889 = vst [vmem:[%s264 + $0x7c] sm:$0xf] %v825
      %s890 = smul.u32 32, %s19
      %p891 = scmp.lt.s32.totalorder %s890, 63
      %s892 = scalar_select %p891, %s890, 63
      %p893 = scmp.lt.s32.totalorder %s20, 0
      %s894 = scalar_select %p893, %s20, 0
      %s895 = sadd.s32 %s894, %s892
      %s896 = smul.addr %s895, 4
      %s897 = scalar_lea.vmem %s4, %s896
      // Predicated region
      $region37: #{inception_b_forward.6} parent=35 // pred_check
        %p898 = pneg %p151
      $region38: #{inception_b_forward.6} parent=35 // pred_check_branch
        %900 = sbr.rel (%p898) target = $region40
      $region39: #{inception_b_forward.6} parent=35 // pred_region
        %s901 = smul.u32 32, %s19
      $region40: #{inception_b_forward.6} parent=35 // pred_fallthru
        _
    $region36: #{inception_b_forward.6} parent=5 // pred_fallthru
      _
    %p902 = scmp.le.s32.totalorder 2, %s10
    // Predicated region
    $region41: #{inception_b_forward.6} parent=5 // pred_check
      %p903 = pneg %p902
    $region42: #{inception_b_forward.6} parent=5 // pred_check_branch
      %905 = sbr.rel (%p903) target = $region44
    $region43: #{inception_b_forward.6} parent=5 // pred_region
      %s906 = ssub.s32 %s10, 2
      // Predicated region
      $region45: #{inception_b_forward.6} parent=43 // pred_check
        %p907 = pneg %p157
      $region46: #{inception_b_forward.6} parent=43 // pred_check_branch
        %909 = sbr.rel (%p907) target = $region48
      $region47: #{inception_b_forward.6} parent=43 // pred_region
        %s910 = smul.u32 32, %s21
        %p911 = scmp.lt.s32.totalorder %s910, 63
        %s912 = scalar_select %p911, %s910, 63
        %p913 = scmp.lt.s32.totalorder %s22, 0
        %s914 = scalar_select %p913, %s22, 0
        %s915 = sadd.s32 %s914, %s912
        %s916 = smul.addr %s915, 4
        %s917 = scalar_lea.vmem %s4, %s916
      $region48: #{inception_b_forward.6} parent=43 // pred_fallthru
        _
    $region44: #{inception_b_forward.6} parent=5 // pred_fallthru
      _
  $region6: #{inception_b_forward.6} parent=0 // loop_footer
    %s14 = sadd.s32 1, %s10
  $region7: #{inception_b_forward.6} parent=0 // loop_footer_branch
    %9 = sbr.rel target = $region3
  $region8: #{inception_b_forward.6} parent=0 // loop_exit
    _

// kernel: inception_b_forward.7
$region0: #{inception_b_forward.7}
  #allocation0 [shape = 'u32[]', space=smem, size = 0x4, offset = 0x4, fixed_abs, tag = 'smem constant byte address 0x4 - core index']
  #allocation1 [shape = 'u32[144,128]{1,0:T(1,128)}', space=vmem, size = 0x12000, scoped, tag = 'internal scratch']
  #allocation2 [shape = 'f32[256,128]{1,0:T(8,128)}', space=vmem, size = 0x20000, scoped, tag = 'scratch operand']
  %s0 = inlined_call_operand.vmem [shape: bf16[512,768], index: 0, kind: input, shape index: {}]
  %s1 = inlined_call_operand.vmem [shape: bf16[768,128], index: 1, kind: input, shape index: {}]
  %s2 = inlined_call_operand.vmem [shape: f32[1,128], index: 2, kind: input, shape index: {}]
  %s3 = inlined_call_operand.vmem [shape: f32[1,128], index: 3, kind: input, shape index: {}]
  %s4 = inlined_call_operand.vmem [shape: bf16[512,128], index: 4, kind: output, shape index: {}]
  %s5 = sld [smem:[#allocation0]]
  $region83: #{inception_b_forward.7} parent=0
    _
  %s7 = ssub.s32 1, %s5
  %s8 = scalar_select 0, %s7, %s5
  $region1: #{inception_b_forward.7} parent=0
    #allocation3 [shape = 'u8[393216]{0}', space=vmem, size = 0x60000, scoped, tag = 'input window, operand 0']
    loop: start=0, step=1, limit=6
    $region2: #{inception_b_forward.7} parent=1 // loop_pre_header
      _
    $region3: #{inception_b_forward.7} parent=1 // loop_header
      %s10 = sphi 0, %s14
      %p11 = scmp.ge.s32.totalorder %s10, 6
      %s17 = sphi 0, %s36
      %s18 = sphi 0, %s32
      %s19 = sphi 0, %s28
      %s20 = sphi 0, %s17
      %s21 = sphi 0, %s18
      %s22 = sphi 0, %s19
      %s23 = sphi 0, %s20
      %s24 = sphi 0, %s21
      %s25 = sphi 0, %s22
      %s41 = sphi 0, %s43
      %s44 = sphi 0, %s41
      %s45 = sphi 0, %s44
      %s61 = sphi 0, %s45
      %s69 = sphi 0, %s71
      %s72 = sphi 0, %s69
      %s73 = sphi 0, %s72
      %s89 = sphi 0, %s73
      %s95 = sphi 0, %s97
      %s98 = sphi 0, %s95
      %s99 = sphi 0, %s98
      %s115 = sphi 0, %s99
      %s121 = sphi 0, %s123
      %s124 = sphi 0, %s121
      %s125 = sphi 0, %s124
      %s141 = sphi 0, %s125
      %s149 = sphi 0, %s151
      %s152 = sphi 0, %s149
      %s153 = sphi 0, %s152
      %s169 = sphi 0, %s153
    $region4: #{inception_b_forward.7} parent=1 // loop_header_branch
      %13 = sbr.rel (%p11) target = $region8
    $region5: #{inception_b_forward.7} parent=1 // loop_body
      %s15 = ssub.s32 %s10, 1
      %s16 = ssub.s32 %s10, 2
      %s26 = sadd.s32 1, %s19
      %p27 = scmp.ge.s32.totalorder %s26, 2
      %s28 = scalar_select %p27, 0, %s26
      %s29 = sadd.s32 1, %s18
      %s30 = scalar_select %p27, %s29, %s18
      %p31 = scmp.ge.s32.totalorder %s30, 1
      %s32 = scalar_select %p31, 0, %s30
      %s33 = sadd.s32 1, %s17
      %s34 = scalar_select %p31, %s33, %s17
      %p35 = scmp.ge.s32.totalorder %s34, 2
      %s36 = scalar_select %p35, 0, %s34
      %s37 = ssub.s32 %s17, %s36
      %s38 = ssub.s32 %s19, %s28
      %s39 = sor.u32 %s37, %s38
      %p40 = scmp.eq.s32.totalorder %s39, 0
      %s42 = sadd.s32 %s41, 1
      %s43 = scalar_select %p40, %s41, %s42
      %p46 = pneg %p40
      %p47 = scmp.eq.s32.totalorder %s10, 3
      %p48 = por %p46, %p47
      %p49 = scmp.ne.s32.totalorder %s41, %s44
      %p50 = scmp.eq.s32.totalorder %s10, 0
      %p51 = por %p49, %p50
      %p52 = scmp.ne.s32.totalorder %s41, %s44
      %p53 = scmp.eq.s32.totalorder %s15, 3
      %p54 = por %p52, %p53
      %p55 = scmp.ne.s32.totalorder %s44, %s45
      %p56 = scmp.eq.s32.totalorder %s15, 0
      %p57 = por %p55, %p56
      %p58 = scmp.ne.s32.totalorder %s44, %s45
      %p59 = scmp.eq.s32.totalorder %s16, 3
      %p60 = por %p58, %p59
      %p62 = scmp.ne.s32.totalorder %s45, %s61
      %p63 = scmp.eq.s32.totalorder %s16, 0
      %p64 = por %p62, %p63
      %s65 = ssub.s32 %s19, %s28
      %s66 = ssub.s32 %s18, %s32
      %s67 = sor.u32 %s65, %s66
      %p68 = scmp.eq.s32.totalorder %s67, 0
      %s70 = sadd.s32 %s69, 1
      %s71 = scalar_select %p68, %s69, %s70
      %p74 = pneg %p68
      %p75 = scmp.eq.s32.totalorder %s10, 3
      %p76 = por %p74, %p75
      %p77 = scmp.ne.s32.totalorder %s69, %s72
      %p78 = scmp.eq.s32.totalorder %s10, 0
      %p79 = por %p77, %p78
      %p80 = scmp.ne.s32.totalorder %s69, %s72
      %p81 = scmp.eq.s32.totalorder %s15, 3
      %p82 = por %p80, %p81
      %p83 = scmp.ne.s32.totalorder %s72, %s73
      %p84 = scmp.eq.s32.totalorder %s15, 0
      %p85 = por %p83, %p84
      %p86 = scmp.ne.s32.totalorder %s72, %s73
      %p87 = scmp.eq.s32.totalorder %s16, 3
      %p88 = por %p86, %p87
      %p90 = scmp.ne.s32.totalorder %s73, %s89
      %p91 = scmp.eq.s32.totalorder %s16, 0
      %p92 = por %p90, %p91
      %s93 = ssub.s32 %s18, %s32
      %p94 = scmp.eq.s32.totalorder %s93, 0
      %s96 = sadd.s32 %s95, 1
      %s97 = scalar_select %p94, %s95, %s96
      %p100 = pneg %p94
      %p101 = scmp.eq.s32.totalorder %s10, 3
      %p102 = por %p100, %p101
      %p103 = scmp.ne.s32.totalorder %s95, %s98
      %p104 = scmp.eq.s32.totalorder %s10, 0
      %p105 = por %p103, %p104
      %p106 = scmp.ne.s32.totalorder %s95, %s98
      %p107 = scmp.eq.s32.totalorder %s15, 3
      %p108 = por %p106, %p107
      %p109 = scmp.ne.s32.totalorder %s98, %s99
      %p110 = scmp.eq.s32.totalorder %s15, 0
      %p111 = por %p109, %p110
      %p112 = scmp.ne.s32.totalorder %s98, %s99
      %p113 = scmp.eq.s32.totalorder %s16, 3
      %p114 = por %p112, %p113
      %p116 = scmp.ne.s32.totalorder %s99, %s115
      %p117 = scmp.eq.s32.totalorder %s16, 0
      %p118 = por %p116, %p117
      %s119 = ssub.s32 %s18, %s32
      %p120 = scmp.eq.s32.totalorder %s119, 0
      %s122 = sadd.s32 %s121, 1
      %s123 = scalar_select %p120, %s121, %s122
      %p126 = pneg %p120
      %p127 = scmp.eq.s32.totalorder %s10, 3
      %p128 = por %p126, %p127
      %p129 = scmp.ne.s32.totalorder %s121, %s124
      %p130 = scmp.eq.s32.totalorder %s10, 0
      %p131 = por %p129, %p130
      %p132 = scmp.ne.s32.totalorder %s121, %s124
      %p133 = scmp.eq.s32.totalorder %s15, 3
      %p134 = por %p132, %p133
      %p135 = scmp.ne.s32.totalorder %s124, %s125
      %p136 = scmp.eq.s32.totalorder %s15, 0
      %p137 = por %p135, %p136
      %p138 = scmp.ne.s32.totalorder %s124, %s125
      %p139 = scmp.eq.s32.totalorder %s16, 3
      %p140 = por %p138, %p139
      %p142 = scmp.ne.s32.totalorder %s125, %s141
      %p143 = scmp.eq.s32.totalorder %s16, 0
      %p144 = por %p142, %p143
      %s145 = ssub.s32 %s17, %s36
      %s146 = ssub.s32 %s18, %s32
      %s147 = sor.u32 %s145, %s146
      %p148 = scmp.eq.s32.totalorder %s147, 0
      %s150 = sadd.s32 %s149, 1
      %s151 = scalar_select %p148, %s149, %s150
      %p154 = pneg %p148
      %p155 = scmp.eq.s32.totalorder %s10, 3
      %p156 = por %p154, %p155
      %p157 = scmp.ne.s32.totalorder %s149, %s152
      %p158 = scmp.eq.s32.totalorder %s10, 0
      %p159 = por %p157, %p158
      %p160 = scmp.ne.s32.totalorder %s149, %s152
      %p161 = scmp.eq.s32.totalorder %s15, 3
      %p162 = por %p160, %p161
      %p163 = scmp.ne.s32.totalorder %s152, %s153
      %p164 = scmp.eq.s32.totalorder %s15, 0
      %p165 = por %p163, %p164
      %p166 = scmp.ne.s32.totalorder %s152, %s153
      %p167 = scmp.eq.s32.totalorder %s16, 3
      %p168 = por %p166, %p167
      %p170 = scmp.ne.s32.totalorder %s153, %s169
      %p171 = scmp.eq.s32.totalorder %s16, 0
      %p172 = por %p170, %p171
      %p173 = scmp.le.s32.totalorder 1, %s10
      %p174 = scmp.lt.s32.totalorder %s10, 5
      %p175 = pnand %p173, %p174
      %p176 = pneg %p175
      // Predicated region
      $region9: #{inception_b_forward.7} parent=5 // pred_check
        _
      $region10: #{inception_b_forward.7} parent=5 // pred_check_branch
        %178 = sbr.rel (%p175) target = $region12
      $region11: #{inception_b_forward.7} parent=5 // pred_region
        %s179 = ssub.s32 %s10, 1
        // Predicated region
        $region13: #{inception_b_forward.7} parent=11 // pred_check
          %p180 = pneg %p111
        $region14: #{inception_b_forward.7} parent=11 // pred_check_branch
          %182 = sbr.rel (%p180) target = $region16
        $region15: #{inception_b_forward.7} parent=11 // pred_region
          %p183 = scmp.lt.s32.totalorder %s21, 0
          %s184 = scalar_select %p183, %s21, 0
          %s185 = scalar_lea.vmem %s2, %s184
        $region16: #{inception_b_forward.7} parent=11 // pred_fallthru
          _
        // Predicated region
        $region17: #{inception_b_forward.7} parent=11 // pred_check
          %p186 = pneg %p137
        $region18: #{inception_b_forward.7} parent=11 // pred_check_branch
          %188 = sbr.rel (%p186) target = $region20
        $region19: #{inception_b_forward.7} parent=11 // pred_region
          %p189 = scmp.lt.s32.totalorder %s21, 0
          %s190 = scalar_select %p189, %s21, 0
          %s191 = scalar_lea.vmem %s3, %s190
        $region20: #{inception_b_forward.7} parent=11 // pred_fallthru
          _
      $region12: #{inception_b_forward.7} parent=5 // pred_fallthru
        _
      %p192 = scmp.lt.s32.totalorder %s10, 4
      // Predicated region
      $region21: #{inception_b_forward.7} parent=5 // pred_check
        %p193 = pneg %p192
      $region22: #{inception_b_forward.7} parent=5 // pred_check_branch
        %195 = sbr.rel (%p193) target = $region24
      $region23: #{inception_b_forward.7} parent=5 // pred_region
        // Predicated region
        $region25: #{inception_b_forward.7} parent=23 // pred_check
          %p196 = pneg %p51
        $region26: #{inception_b_forward.7} parent=23 // pred_check_branch
          %198 = sbr.rel (%p196) target = $region28
        $region27: #{inception_b_forward.7} parent=23 // pred_region
          %s199 = sand.u32 %s41, 1
          %s200 = sand.u32 %s41, 1
          %s201 = smul.addr %s200, 384
          %s202 = scalar_lea.vmem [#allocation3], %s201
          %s203 = smul.u32 32, %s17
          %s204 = smul.u32 3, %s19
          %s205 = smul.addr %s203, 6
          %s206 = sadd.s32 %s204, %s205
          %s207 = smul.addr %s206, 4
          %s208 = scalar_lea.vmem %s0, %s207
          // Predicated region
          $region29: #{inception_b_forward.7} parent=27 // pred_check
            _
          $region30: #{inception_b_forward.7} parent=27 // pred_check_branch
            %210 = sbr.rel (0) target = $region32
          $region31: #{inception_b_forward.7} parent=27 // pred_region
            // Predicated region
            $region33: #{inception_b_forward.7} parent=31 // pred_check
              _
            $region34: #{inception_b_forward.7} parent=31 // pred_check_branch
              %212 = sbr.rel (0) target = $region36
            $region35: #{inception_b_forward.7} parent=31 // pred_region
              %s213 = scalar_lea.vmem %s208, 8
              %s214 = scalar_lea.vmem %s202, 8 [#allocation3]
              loop: start=0, step=1, limit=1
              $region37: #{inception_b_forward.7} parent=35 // loop_pre_header
                _
              $region38: #{inception_b_forward.7} parent=35 // loop_header
                %s216 = sphi 0, %s220
                %p217 = scmp.ge.s32.totalorder %s216, 1
                %s221 = sphi %s208, %s208
                %s222 = sphi %s202, %s202
              $region39: #{inception_b_forward.7} parent=35 // loop_header_branch
                %219 = sbr.rel (%p217) target = $region43
              $region40: #{inception_b_forward.7} parent=35 // loop_body
                %v223 = vld [vmem:[%s221] sm:$0xff]
                %224 = vst [vmem:[%s222] sm:$0xff] %v223
                %v225 = vld [vmem:[%s221 + $0x18] sm:$0xff]
                %226 = vst [vmem:[%s222 + $0xc] sm:$0xff] %v225
                %v227 = vld [vmem:[%s221 + $0x30] sm:$0xff]
                %228 = vst [vmem:[%s222 + $0x18] sm:$0xff] %v227
                %v229 = vld [vmem:[%s221 + $0x48] sm:$0xff]
                %230 = vst [vmem:[%s222 + $0x24] sm:$0xff] %v229
                %v231 = vld [vmem:[%s221 + $0x60] sm:$0xff]
                %232 = vst [vmem:[%s222 + $0x30] sm:$0xff] %v231
                %v233 = vld [vmem:[%s221 + $0x78] sm:$0xff]
                %234 = vst [vmem:[%s222 + $0x3c] sm:$0xff] %v233
                %v235 = vld [vmem:[%s221 + $0x90] sm:$0xff]
                %236 = vst [vmem:[%s222 + $0x48] sm:$0xff] %v235
                %v237 = vld [vmem:[%s221 + $0xa8] sm:$0xff]
                %238 = vst [vmem:[%s222 + $0x54] sm:$0xff] %v237
                %v239 = vld [vmem:[%s221 + $0xc0] sm:$0xff]
                %240 = vst [vmem:[%s222 + $0x60] sm:$0xff] %v239
                %v241 = vld [vmem:[%s221 + $0xd8] sm:$0xff]
                %242 = vst [vmem:[%s222 + $0x6c] sm:$0xff] %v241
                %v243 = vld [vmem:[%s221 + $0xf0] sm:$0xff]
                %244 = vst [vmem:[%s222 + $0x78] sm:$0xff] %v243
                %v245 = vld [vmem:[%s221 + $0x108] sm:$0xff]
                %246 = vst [vmem:[%s222 + $0x84] sm:$0xff] %v245
                %v247 = vld [vmem:[%s221 + $0x120] sm:$0xff]
                %248 = vst [vmem:[%s222 + $0x90] sm:$0xff] %v247
                %v249 = vld [vmem:[%s221 + $0x138] sm:$0xff]
                %250 = vst [vmem:[%s222 + $0x9c] sm:$0xff] %v249
                %v251 = vld [vmem:[%s221 + $0x150] sm:$0xff]
                %252 = vst [vmem:[%s222 + $0xa8] sm:$0xff] %v251
                %v253 = vld [vmem:[%s221 + $0x168] sm:$0xff]
                %254 = vst [vmem:[%s222 + $0xb4] sm:$0xff] %v253
                %v255 = vld [vmem:[%s221 + $0x180] sm:$0xff]
                %256 = vst [vmem:[%s222 + $0xc0] sm:$0xff] %v255
                %v257 = vld [vmem:[%s221 + $0x198] sm:$0xff]
                %258 = vst [vmem:[%s222 + $0xcc] sm:$0xff] %v257
                %v259 = vld [vmem:[%s221 + $0x1b0] sm:$0xff]
                %260 = vst [vmem:[%s222 + $0xd8] sm:$0xff] %v259
                %v261 = vld [vmem:[%s221 + $0x1c8] sm:$0xff]
                %262 = vst [vmem:[%s222 + $0xe4] sm:$0xff] %v261
                %v263 = vld [vmem:[%s221 + $0x1e0] sm:$0xff]
                %264 = vst [vmem:[%s222 + $0xf0] sm:$0xff] %v263
                %v265 = vld [vmem:[%s221 + $0x1f8] sm:$0xff]
                %266 = vst [vmem:[%s222 + $0xfc] sm:$0xff] %v265
                %v267 = vld [vmem:[%s221 + $0x210] sm:$0xff]
                %268 = vst [vmem:[%s222 + $0x108] sm:$0xff] %v267
                %v269 = vld [vmem:[%s221 + $0x228] sm:$0xff]
                %270 = vst [vmem:[%s222 + $0x114] sm:$0xff] %v269
                %v271 = vld [vmem:[%s221 + $0x240] sm:$0xff]
                %272 = vst [vmem:[%s222 + $0x120] sm:$0xff] %v271
                %v273 = vld [vmem:[%s221 + $0x258] sm:$0xff]
                %274 = vst [vmem:[%s222 + $0x12c] sm:$0xff] %v273
                %v275 = vld [vmem:[%s221 + $0x270] sm:$0xff]
                %276 = vst [vmem:[%s222 + $0x138] sm:$0xff] %v275
                %v277 = vld [vmem:[%s221 + $0x288] sm:$0xff]
                %278 = vst [vmem:[%s222 + $0x144] sm:$0xff] %v277
                %v279 = vld [vmem:[%s221 + $0x2a0] sm:$0xff]
                %280 = vst [vmem:[%s222 + $0x150] sm:$0xff] %v279
                %v281 = vld [vmem:[%s221 + $0x2b8] sm:$0xff]
                %282 = vst [vmem:[%s222 + $0x15c] sm:$0xff] %v281
                %v283 = vld [vmem:[%s221 + $0x2d0] sm:$0xff]
                %284 = vst [vmem:[%s222 + $0x168] sm:$0xff] %v283
                %v285 = vld [vmem:[%s221 + $0x2e8] sm:$0xff]
                %286 = vst [vmem:[%s222 + $0x174] sm:$0xff] %v285
              $region41: #{inception_b_forward.7} parent=35 // loop_footer
                %s220 = sadd.s32 1, %s216
              $region42: #{inception_b_forward.7} parent=35 // loop_footer_branch
                %215 = sbr.rel target = $region38
              $region43: #{inception_b_forward.7} parent=35 // loop_exit
                _
              %s288 = ssub.s32 16, 1
              loop: start=0, step=1, limit=1
              $region44: #{inception_b_forward.7} parent=35 // loop_pre_header
                _
              $region45: #{inception_b_forward.7} parent=35 // loop_header
                %s290 = sphi 0, %s294
                %p291 = scmp.ge.s32.totalorder %s290, 1
                %s295 = sphi %s213, %s213
                %s296 = sphi %s214, %s214
              $region46: #{inception_b_forward.7} parent=35 // loop_header_branch
                %293 = sbr.rel (%p291) target = $region50
              $region47: #{inception_b_forward.7} parent=35 // loop_body
                %v297 = vld [vmem:[%s295] sm:%s288]
                %298 = vst [vmem:[%s296] sm:%s288] %v297
                %v299 = vld [vmem:[%s295 + $0x18] sm:%s288]
                %300 = vst [vmem:[%s296 + $0xc] sm:%s288] %v299
                %v301 = vld [vmem:[%s295 + $0x30] sm:%s288]
                %302 = vst [vmem:[%s296 + $0x18] sm:%s288] %v301
                %v303 = vld [vmem:[%s295 + $0x48] sm:%s288]
                %304 = vst [vmem:[%s296 + $0x24] sm:%s288] %v303
                %v305 = vld [vmem:[%s295 + $0x60] sm:%s288]
                %306 = vst [vmem:[%s296 + $0x30] sm:%s288] %v305
                %v307 = vld [vmem:[%s295 + $0x78] sm:%s288]
                %308 = vst [vmem:[%s296 + $0x3c] sm:%s288] %v307
                %v309 = vld [vmem:[%s295 + $0x90] sm:%s288]
                %310 = vst [vmem:[%s296 + $0x48] sm:%s288] %v309
                %v311 = vld [vmem:[%s295 + $0xa8] sm:%s288]
                %312 = vst [vmem:[%s296 + $0x54] sm:%s288] %v311
                %v313 = vld [vmem:[%s295 + $0xc0] sm:%s288]
                %314 = vst [vmem:[%s296 + $0x60] sm:%s288] %v313
                %v315 = vld [vmem:[%s295 + $0xd8] sm:%s288]
                %316 = vst [vmem:[%s296 + $0x6c] sm:%s288] %v315
                %v317 = vld [vmem:[%s295 + $0xf0] sm:%s288]
                %318 = vst [vmem:[%s296 + $0x78] sm:%s288] %v317
                %v319 = vld [vmem:[%s295 + $0x108] sm:%s288]
                %320 = vst [vmem:[%s296 + $0x84] sm:%s288] %v319
                %v321 = vld [vmem:[%s295 + $0x120] sm:%s288]
                %322 = vst [vmem:[%s296 + $0x90] sm:%s288] %v321
                %v323 = vld [vmem:[%s295 + $0x138] sm:%s288]
                %324 = vst [vmem:[%s296 + $0x9c] sm:%s288] %v323
                %v325 = vld [vmem:[%s295 + $0x150] sm:%s288]
                %326 = vst [vmem:[%s296 + $0xa8] sm:%s288] %v325
                %v327 = vld [vmem:[%s295 + $0x168] sm:%s288]
                %328 = vst [vmem:[%s296 + $0xb4] sm:%s288] %v327
                %v329 = vld [vmem:[%s295 + $0x180] sm:%s288]
                %330 = vst [vmem:[%s296 + $0xc0] sm:%s288] %v329
                %v331 = vld [vmem:[%s295 + $0x198] sm:%s288]
                %332 = vst [vmem:[%s296 + $0xcc] sm:%s288] %v331
                %v333 = vld [vmem:[%s295 + $0x1b0] sm:%s288]
                %334 = vst [vmem:[%s296 + $0xd8] sm:%s288] %v333
                %v335 = vld [vmem:[%s295 + $0x1c8] sm:%s288]
                %336 = vst [vmem:[%s296 + $0xe4] sm:%s288] %v335
                %v337 = vld [vmem:[%s295 + $0x1e0] sm:%s288]
                %338 = vst [vmem:[%s296 + $0xf0] sm:%s288] %v337
                %v339 = vld [vmem:[%s295 + $0x1f8] sm:%s288]
                %340 = vst [vmem:[%s296 + $0xfc] sm:%s288] %v339
                %v341 = vld [vmem:[%s295 + $0x210] sm:%s288]
                %342 = vst [vmem:[%s296 + $0x108] sm:%s288] %v341
                %v343 = vld [vmem:[%s295 + $0x228] sm:%s288]
                %344 = vst [vmem:[%s296 + $0x114] sm:%s288] %v343
                %v345 = vld [vmem:[%s295 + $0x240] sm:%s288]
                %346 = vst [vmem:[%s296 + $0x120] sm:%s288] %v345
                %v347 = vld [vmem:[%s295 + $0x258] sm:%s288]
                %348 = vst [vmem:[%s296 + $0x12c] sm:%s288] %v347
                %v349 = vld [vmem:[%s295 + $0x270] sm:%s288]
                %350 = vst [vmem:[%s296 + $0x138] sm:%s288] %v349
                %v351 = vld [vmem:[%s295 + $0x288] sm:%s288]
                %352 = vst [vmem:[%s296 + $0x144] sm:%s288] %v351
                %v353 = vld [vmem:[%s295 + $0x2a0] sm:%s288]
                %354 = vst [vmem:[%s296 + $0x150] sm:%s288] %v353
                %v355 = vld [vmem:[%s295 + $0x2b8] sm:%s288]
                %356 = vst [vmem:[%s296 + $0x15c] sm:%s288] %v355
                %v357 = vld [vmem:[%s295 + $0x2d0] sm:%s288]
                %358 = vst [vmem:[%s296 + $0x168] sm:%s288] %v357
                %v359 = vld [vmem:[%s295 + $0x2e8] sm:%s288]
                %360 = vst [vmem:[%s296 + $0x174] sm:%s288] %v359
              $region48: #{inception_b_forward.7} parent=35 // loop_footer
                %s294 = sadd.s32 1, %s290
              $region49: #{inception_b_forward.7} parent=35 // loop_footer_branch
                %289 = sbr.rel target = $region45
              $region50: #{inception_b_forward.7} parent=35 // loop_exit
                _
            $region36: #{inception_b_forward.7} parent=31 // pred_fallthru
              _
          $region32: #{inception_b_forward.7} parent=27 // pred_fallthru
            _
          %361 = vnop
        $region28: #{inception_b_forward.7} parent=23 // pred_fallthru
          _
        // Predicated region
        $region51: #{inception_b_forward.7} parent=23 // pred_check
          %p362 = pneg %p79
        $region52: #{inception_b_forward.7} parent=23 // pred_check_branch
          %364 = sbr.rel (%p362) target = $region54
        $region53: #{inception_b_forward.7} parent=23 // pred_region
          %s365 = smul.u32 48, %s19
          %p366 = scmp.lt.s32.totalorder %s365, 95
          %s367 = scalar_select %p366, %s365, 95
          %p368 = scmp.lt.s32.totalorder %s18, 0
          %s369 = scalar_select %p368, %s18, 0
          %s370 = sadd.s32 %s369, %s367
          %s371 = smul.addr %s370, 4
          %s372 = scalar_lea.vmem %s1, %s371
          %s373 = smul.u32 48, %s19
        $region54: #{inception_b_forward.7} parent=23 // pred_fallthru
          _
      $region24: #{inception_b_forward.7} parent=5 // pred_fallthru
        _
      %p374 = scmp.le.s32.totalorder 1, %s10
      %p375 = scmp.lt.s32.totalorder %s10, 5
      %p376 = pnand %p374, %p375
      %p377 = pneg %p376
      // Predicated region
      $region55: #{inception_b_forward.7} parent=5 // pred_check
        _
      $region56: #{inception_b_forward.7} parent=5 // pred_check_branch
        %379 = sbr.rel (%p376) target = $region58
      $region57: #{inception_b_forward.7} parent=5 // pred_region
        %s380 = ssub.s32 %s10, 1
        %s381 = sand.u32 %s44, 1
        %s382 = sand.u32 %s44, 1
        %s383 = smul.addr %s382, 384
        %s384 = scalar_lea.vmem [#allocation3], %s383
        // Predicated region
        $region59: #{inception_b_forward.7} parent=57 // pred_check
          %p385 = pneg %p57
        $region60: #{inception_b_forward.7} parent=57 // pred_check_branch
          %387 = sbr.rel (%p385) target = $region62
        $region61: #{inception_b_forward.7} parent=57 // pred_region
          _
        $region62: #{inception_b_forward.7} parent=57 // pred_fallthru
          _
        %s388 = sand.u32 %s44, 1
        %s389 = sand.u32 %s44, 1
        %s390 = smul.addr %s389, 384
        %s391 = scalar_lea.vmem [#allocation3], %s390
        %p392 = pneg %p57
        %p393 = pneg %p54
        %s394 = smul.u32 48, %s22
        %p395 = scmp.lt.s32.totalorder %s394, 95
        %s396 = scalar_select %p395, %s394, 95
        %p397 = scmp.lt.s32.totalorder %s21, 0
        %s398 = scalar_select %p397, %s21, 0
        %s399 = sadd.s32 %s398, %s396
        %s400 = smul.addr %s399, 4
        %s401 = scalar_lea.vmem %s1, %s400
        %p402 = pneg %p85
        %p403 = pneg %p82
        %p404 = scmp.lt.s32.totalorder %s21, 0
        %s405 = scalar_select %p404, %s21, 0
        %s406 = scalar_lea.vmem %s2, %s405
        %p407 = pneg %p111
        %p408 = pneg %p108
        %p409 = scmp.lt.s32.totalorder %s21, 0
        %s410 = scalar_select %p409, %s21, 0
        %s411 = scalar_lea.vmem %s3, %s410
        %p412 = pneg %p137
        %p413 = pneg %p134
        %p414 = pneg %p165
        %p415 = pneg %p162
        %s416 = smul.u32 32, %s20
        %p417 = scmp.lt.s32.totalorder %s416, 63
        %s418 = scalar_select %p417, %s416, 63
        %p419 = scmp.lt.s32.totalorder %s21, 0
        %s420 = scalar_select %p419, %s21, 0
        %s421 = sadd.s32 %s420, %s418
        %s422 = smul.addr %s421, 4
        %s423 = scalar_lea.vmem %s4, %s422
        %s424 = smul.u32 32, %s20
        %s425 = smul.u32 3, %s22
        %s426 = smul.u32 48, %s22
        %p427 = scmp.lt.s32.totalorder %s426, 95
        %s428 = scalar_select %p427, %s426, 95
        %p429 = scmp.lt.s32.totalorder %s21, 0
        %s430 = scalar_select %p429, %s21, 0
        %s431 = sadd.s32 %s430, %s428
        %s432 = smul.addr %s431, 4
        %s433 = scalar_lea.vmem %s1, %s432
        %s434 = smul.u32 48, %s22
        %p435 = scmp.lt.s32.totalorder %s21, 0
        %s436 = scalar_select %p435, %s21, 0
        %s437 = scalar_lea.vmem %s2, %s436
        %p438 = scmp.lt.s32.totalorder %s21, 0
        %s439 = scalar_select %p438, %s21, 0
        %s440 = scalar_lea.vmem %s3, %s439
        %s441 = smul.u32 32, %s20
        %p442 = scmp.lt.s32.totalorder %s441, 63
        %s443 = scalar_select %p442, %s441, 63
        %p444 = scmp.lt.s32.totalorder %s21, 0
        %s445 = scalar_select %p444, %s21, 0
        %s446 = sadd.s32 %s445, %s443
        %s447 = smul.addr %s446, 4
        %s448 = scalar_lea.vmem %s4, %s447
        %s449 = smul.u32 32, %s20
        %p451 = scmp.eq.s32.totalorder %s22, 0
        // Predicated region
        $region63: #{inception_b_forward.7} parent=57 // pred_check
          %p452 = pneg %p451
        $region64: #{inception_b_forward.7} parent=57 // pred_check_branch
          %454 = sbr.rel (%p452) target = $region66
        $region65: #{inception_b_forward.7} parent=57 // pred_region
          %455 = vst [vmem:[#allocation2] sm:$0xff] 0.0
          %456 = vst [vmem:[#allocation2 + $0x8] sm:$0xff] 0.0
          %457 = vst [vmem:[#allocation2 + $0x10] sm:$0xff] 0.0
          %458 = vst [vmem:[#allocation2 + $0x18] sm:$0xff] 0.0
          %459 = vst [vmem:[#allocation2 + $0x20] sm:$0xff] 0.0
          %460 = vst [vmem:[#allocation2 + $0x28] sm:$0xff] 0.0
          %461 = vst [vmem:[#allocation2 + $0x30] sm:$0xff] 0.0
          %462 = vst [vmem:[#allocation2 + $0x38] sm:$0xff] 0.0
          %463 = vst [vmem:[#allocation2 + $0x40] sm:$0xff] 0.0
          %464 = vst [vmem:[#allocation2 + $0x48] sm:$0xff] 0.0
          %465 = vst [vmem:[#allocation2 + $0x50] sm:$0xff] 0.0
          %466 = vst [vmem:[#allocation2 + $0x58] sm:$0xff] 0.0
          %467 = vst [vmem:[#allocation2 + $0x60] sm:$0xff] 0.0
          %468 = vst [vmem:[#allocation2 + $0x68] sm:$0xff] 0.0
          %469 = vst [vmem:[#allocation2 + $0x70] sm:$0xff] 0.0
          %470 = vst [vmem:[#allocation2 + $0x78] sm:$0xff] 0.0
          %471 = vst [vmem:[#allocation2 + $0x80] sm:$0xff] 0.0
          %472 = vst [vmem:[#allocation2 + $0x88] sm:$0xff] 0.0
          %473 = vst [vmem:[#allocation2 + $0x90] sm:$0xff] 0.0
          %474 = vst [vmem:[#allocation2 + $0x98] sm:$0xff] 0.0
          %475 = vst [vmem:[#allocation2 + $0xa0] sm:$0xff] 0.0
          %476 = vst [vmem:[#allocation2 + $0xa8] sm:$0xff] 0.0
          %477 = vst [vmem:[#allocation2 + $0xb0] sm:$0xff] 0.0
          %478 = vst [vmem:[#allocation2 + $0xb8] sm:$0xff] 0.0
          %479 = vst [vmem:[#allocation2 + $0xc0] sm:$0xff] 0.0
          %480 = vst [vmem:[#allocation2 + $0xc8] sm:$0xff] 0.0
          %481 = vst [vmem:[#allocation2 + $0xd0] sm:$0xff] 0.0
          %482 = vst [vmem:[#allocation2 + $0xd8] sm:$0xff] 0.0
          %483 = vst [vmem:[#allocation2 + $0xe0] sm:$0xff] 0.0
          %484 = vst [vmem:[#allocation2 + $0xe8] sm:$0xff] 0.0
          %485 = vst [vmem:[#allocation2 + $0xf0] sm:$0xff] 0.0
          %486 = vst [vmem:[#allocation2 + $0xf8] sm:$0xff] 0.0
        $region66: #{inception_b_forward.7} parent=57 // pred_fallthru
          _
        %v487 = vld [vmem:[#allocation2] sm:$0xff]
        %v488 = vld [vmem:[#allocation2 + $0x8] sm:$0xff]
        %v489 = vld [vmem:[#allocation2 + $0x10] sm:$0xff]
        %v490 = vld [vmem:[#allocation2 + $0x18] sm:$0xff]
        %v491 = vld [vmem:[#allocation2 + $0x20] sm:$0xff]
        %v492 = vld [vmem:[#allocation2 + $0x28] sm:$0xff]
        %v493 = vld [vmem:[#allocation2 + $0x30] sm:$0xff]
        %v494 = vld [vmem:[#allocation2 + $0x38] sm:$0xff]
        %v495 = vld [vmem:[#allocation2 + $0x40] sm:$0xff]
        %v496 = vld [vmem:[#allocation2 + $0x48] sm:$0xff]
        %v497 = vld [vmem:[#allocation2 + $0x50] sm:$0xff]
        %v498 = vld [vmem:[#allocation2 + $0x58] sm:$0xff]
        %v499 = vld [vmem:[#allocation2 + $0x60] sm:$0xff]
        %v500 = vld [vmem:[#allocation2 + $0x68] sm:$0xff]
        %v501 = vld [vmem:[#allocation2 + $0x70] sm:$0xff]
        %v502 = vld [vmem:[#allocation2 + $0x78] sm:$0xff]
        %v503 = vld [vmem:[#allocation2 + $0x80] sm:$0xff]
        %v504 = vld [vmem:[#allocation2 + $0x88] sm:$0xff]
        %v505 = vld [vmem:[#allocation2 + $0x90] sm:$0xff]
        %v506 = vld [vmem:[#allocation2 + $0x98] sm:$0xff]
        %v507 = vld [vmem:[#allocation2 + $0xa0] sm:$0xff]
        %v508 = vld [vmem:[#allocation2 + $0xa8] sm:$0xff]
        %v509 = vld [vmem:[#allocation2 + $0xb0] sm:$0xff]
        %v510 = vld [vmem:[#allocation2 + $0xb8] sm:$0xff]
        %v511 = vld [vmem:[#allocation2 + $0xc0] sm:$0xff]
        %v512 = vld [vmem:[#allocation2 + $0xc8] sm:$0xff]
        %v513 = vld [vmem:[#allocation2 + $0xd0] sm:$0xff]
        %v514 = vld [vmem:[#allocation2 + $0xd8] sm:$0xff]
        %v515 = vld [vmem:[#allocation2 + $0xe0] sm:$0xff]
        %v516 = vld [vmem:[#allocation2 + $0xe8] sm:$0xff]
        %v517 = vld [vmem:[#allocation2 + $0xf0] sm:$0xff]
        %v518 = vld [vmem:[#allocation2 + $0xf8] sm:$0xff]
        %v519 = vld [vmem:[%s384] sm:$0xff]
        %v520 = vld [vmem:[%s384 + $0x8] sm:$0xf]
        %v521 = vld [vmem:[%s384 + $0xc] sm:$0xff]
        %v522 = vld [vmem:[%s384 + $0x14] sm:$0xf]
        %v523 = vld [vmem:[%s384 + $0x18] sm:$0xff]
        %v524 = vld [vmem:[%s384 + $0x20] sm:$0xf]
        %v525 = vld [vmem:[%s384 + $0x24] sm:$0xff]
        %v526 = vld [vmem:[%s384 + $0x2c] sm:$0xf]
        %v527 = vld [vmem:[%s384 + $0x30] sm:$0xff]
        %v528 = vld [vmem:[%s384 + $0x38] sm:$0xf]
        %v529 = vld [vmem:[%s384 + $0x3c] sm:$0xff]
        %v530 = vld [vmem:[%s384 + $0x44] sm:$0xf]
        %v531 = vld [vmem:[%s384 + $0x48] sm:$0xff]
        %v532 = vld [vmem:[%s384 + $0x50] sm:$0xf]
        %v533 = vld [vmem:[%s384 + $0x54] sm:$0xff]
        %v534 = vld [vmem:[%s384 + $0x5c] sm:$0xf]
        %v535 = vld [vmem:[%s384 + $0x60] sm:$0xff]
        %v536 = vld [vmem:[%s384 + $0x68] sm:$0xf]
        %v537 = vld [vmem:[%s384 + $0x6c] sm:$0xff]
        %v538 = vld [vmem:[%s384 + $0x74] sm:$0xf]
        %v539 = vld [vmem:[%s384 + $0x78] sm:$0xff]
        %v540 = vld [vmem:[%s384 + $0x80] sm:$0xf]
        %v541 = vld [vmem:[%s384 + $0x84] sm:$0xff]
        %v542 = vld [vmem:[%s384 + $0x8c] sm:$0xf]
        %v543 = vld [vmem:[%s384 + $0x90] sm:$0xff]
        %v544 = vld [vmem:[%s384 + $0x98] sm:$0xf]
        %v545 = vld [vmem:[%s384 + $0x9c] sm:$0xff]
        %v546 = vld [vmem:[%s384 + $0xa4] sm:$0xf]
        %v547 = vld [vmem:[%s384 + $0xa8] sm:$0xff]
        %v548 = vld [vmem:[%s384 + $0xb0] sm:$0xf]
        %v549 = vld [vmem:[%s384 + $0xb4] sm:$0xff]
        %v550 = vld [vmem:[%s384 + $0xbc] sm:$0xf]
        %v551 = vld [vmem:[%s384 + $0xc0] sm:$0xff]
        %v552 = vld [vmem:[%s384 + $0xc8] sm:$0xf]
        %v553 = vld [vmem:[%s384 + $0xcc] sm:$0xff]
        %v554 = vld [vmem:[%s384 + $0xd4] sm:$0xf]
        %v555 = vld [vmem:[%s384 + $0xd8] sm:$0xff]
        %v556 = vld [vmem:[%s384 + $0xe0] sm:$0xf]
        %v557 = vld [vmem:[%s384 + $0xe4] sm:$0xff]
        %v558 = vld [vmem:[%s384 + $0xec] sm:$0xf]
        %v559 = vld [vmem:[%s384 + $0xf0] sm:$0xff]
        %v560 = vld [vmem:[%s384 + $0xf8] sm:$0xf]
        %v561 = vld [vmem:[%s384 + $0xfc] sm:$0xff]
        %v562 = vld [vmem:[%s384 + $0x104] sm:$0xf]
        %v563 = vld [vmem:[%s384 + $0x108] sm:$0xff]
        %v564 = vld [vmem:[%s384 + $0x110] sm:$0xf]
        %v565 = vld [vmem:[%s384 + $0x114] sm:$0xff]
        %v566 = vld [vmem:[%s384 + $0x11c] sm:$0xf]
        %v567 = vld [vmem:[%s384 + $0x120] sm:$0xff]
        %v568 = vld [vmem:[%s384 + $0x128] sm:$0xf]
        %v569 = vld [vmem:[%s384 + $0x12c] sm:$0xff]
        %v570 = vld [vmem:[%s384 + $0x134] sm:$0xf]
        %v571 = vld [vmem:[%s384 + $0x138] sm:$0xff]
        %v572 = vld [vmem:[%s384 + $0x140] sm:$0xf]
        %v573 = vld [vmem:[%s384 + $0x144] sm:$0xff]
        %v574 = vld [vmem:[%s384 + $0x14c] sm:$0xf]
        %v575 = vld [vmem:[%s384 + $0x150] sm:$0xff]
        %v576 = vld [vmem:[%s384 + $0x158] sm:$0xf]
        %v577 = vld [vmem:[%s384 + $0x15c] sm:$0xff]
        %v578 = vld [vmem:[%s384 + $0x164] sm:$0xf]
        %v579 = vld [vmem:[%s384 + $0x168] sm:$0xff]
        %v580 = vld [vmem:[%s384 + $0x170] sm:$0xf]
        %v581 = vld [vmem:[%s384 + $0x174] sm:$0xff]
        %v582 = vld [vmem:[%s384 + $0x17c] sm:$0xf]
        %v583 = vld [vmem:[%s433] sm:$0xf]
        %v584 = vld [vmem:[%s433 + $0x4] sm:$0xf]
        %v585 = vld [vmem:[%s433 + $0x8] sm:$0xf]
        %v586 = vld [vmem:[%s433 + $0xc] sm:$0xf]
        %v587 = vld [vmem:[%s433 + $0x10] sm:$0xf]
        %v588 = vld [vmem:[%s433 + $0x14] sm:$0xf]
        %v589 = vld [vmem:[%s433 + $0x18] sm:$0xf]
        %v590 = vld [vmem:[%s433 + $0x1c] sm:$0xf]
        %v591 = vld [vmem:[%s433 + $0x20] sm:$0xf]
        %v592 = vld [vmem:[%s433 + $0x24] sm:$0xf]
        %v593 = vld [vmem:[%s433 + $0x28] sm:$0xf]
        %v594 = vld [vmem:[%s433 + $0x2c] sm:$0xf]
        %v595 = vld [vmem:[%s433 + $0x30] sm:$0xf]
        %v596 = vld [vmem:[%s433 + $0x34] sm:$0xf]
        %v597 = vld [vmem:[%s433 + $0x38] sm:$0xf]
        %v598 = vld [vmem:[%s433 + $0x3c] sm:$0xf]
        %v599 = vld [vmem:[%s433 + $0x40] sm:$0xf]
        %v600 = vld [vmem:[%s433 + $0x44] sm:$0xf]
        %v601 = vld [vmem:[%s433 + $0x48] sm:$0xf]
        %v602 = vld [vmem:[%s433 + $0x4c] sm:$0xf]
        %v603 = vld [vmem:[%s433 + $0x50] sm:$0xf]
        %v604 = vld [vmem:[%s433 + $0x54] sm:$0xf]
        %v605 = vld [vmem:[%s433 + $0x58] sm:$0xf]
        %v606 = vld [vmem:[%s433 + $0x5c] sm:$0xf]
        %v607 = vld [vmem:[%s433 + $0x60] sm:$0xf]
        %v608 = vld [vmem:[%s433 + $0x64] sm:$0xf]
        %v609 = vld [vmem:[%s433 + $0x68] sm:$0xf]
        %v610 = vld [vmem:[%s433 + $0x6c] sm:$0xf]
        %v611 = vld [vmem:[%s433 + $0x70] sm:$0xf]
        %v612 = vld [vmem:[%s433 + $0x74] sm:$0xf]
        %v613 = vld [vmem:[%s433 + $0x78] sm:$0xf]
        %v614 = vld [vmem:[%s433 + $0x7c] sm:$0xf]
        %v615 = vld [vmem:[%s433 + $0x80] sm:$0xf]
        %v616 = vld [vmem:[%s433 + $0x84] sm:$0xf]
        %v617 = vld [vmem:[%s433 + $0x88] sm:$0xf]
        %v618 = vld [vmem:[%s433 + $0x8c] sm:$0xf]
        %v619 = vld [vmem:[%s433 + $0x90] sm:$0xf]
        %v620 = vld [vmem:[%s433 + $0x94] sm:$0xf]
        %v621 = vld [vmem:[%s433 + $0x98] sm:$0xf]
        %v622 = vld [vmem:[%s433 + $0x9c] sm:$0xf]
        %v623 = vld [vmem:[%s433 + $0xa0] sm:$0xf]
        %v624 = vld [vmem:[%s433 + $0xa4] sm:$0xf]
        %v625 = vld [vmem:[%s433 + $0xa8] sm:$0xf]
        %v626 = vld [vmem:[%s433 + $0xac] sm:$0xf]
        %v627 = vld [vmem:[%s433 + $0xb0] sm:$0xf]
        %v628 = vld [vmem:[%s433 + $0xb4] sm:$0xf]
        %v629 = vld [vmem:[%s433 + $0xb8] sm:$0xf]
        %v630 = vld [vmem:[%s433 + $0xbc] sm:$0xf]
        %v695 = vunpack.c.l.b16 %v519
        %v696 = vunpack.c.h.b16 %v519
        %v697 = vunpack.c.l.b16 %v520
        %v698 = vunpack.c.l.b16 %v521
        %v699 = vunpack.c.h.b16 %v521
        %v700 = vunpack.c.l.b16 %v522
        %v701 = vunpack.c.l.b16 %v523
        %v702 = vunpack.c.h.b16 %v523
        %v703 = vunpack.c.l.b16 %v524
        %v704 = vunpack.c.l.b16 %v525
        %v705 = vunpack.c.h.b16 %v525
        %v706 = vunpack.c.l.b16 %v526
        %v707 = vunpack.c.l.b16 %v527
        %v708 = vunpack.c.h.b16 %v527
        %v709 = vunpack.c.l.b16 %v528
        %v710 = vunpack.c.l.b16 %v529
        %v711 = vunpack.c.h.b16 %v529
        %v712 = vunpack.c.l.b16 %v530
        %v713 = vunpack.c.l.b16 %v531
        %v714 = vunpack.c.h.b16 %v531
        %v715 = vunpack.c.l.b16 %v532
        %v716 = vunpack.c.l.b16 %v533
        %v717 = vunpack.c.h.b16 %v533
        %v718 = vunpack.c.l.b16 %v534
        %v719 = vunpack.c.l.b16 %v535
        %v720 = vunpack.c.h.b16 %v535
        %v721 = vunpack.c.l.b16 %v536
        %v722 = vunpack.c.l.b16 %v537
        %v723 = vunpack.c.h.b16 %v537
        %v724 = vunpack.c.l.b16 %v538
        %v725 = vunpack.c.l.b16 %v539
        %v726 = vunpack.c.h.b16 %v539
        %v727 = vunpack.c.l.b16 %v540
        %v728 = vunpack.c.l.b16 %v541
        %v729 = vunpack.c.h.b16 %v541
        %v730 = vunpack.c.l.b16 %v542
        %v731 = vunpack.c.l.b16 %v543
        %v732 = vunpack.c.h.b16 %v543
        %v733 = vunpack.c.l.b16 %v544
        %v734 = vunpack.c.l.b16 %v545
        %v735 = vunpack.c.h.b16 %v545
        %v736 = vunpack.c.l.b16 %v546
        %v737 = vunpack.c.l.b16 %v547
        %v738 = vunpack.c.h.b16 %v547
        %v739 = vunpack.c.l.b16 %v548
        %v740 = vunpack.c.l.b16 %v549
        %v741 = vunpack.c.h.b16 %v549
        %v742 = vunpack.c.l.b16 %v550
        %v743 = vunpack.c.l.b16 %v551
        %v744 = vunpack.c.h.b16 %v551
        %v745 = vunpack.c.l.b16 %v552
        %v746 = vunpack.c.l.b16 %v553
        %v747 = vunpack.c.h.b16 %v553
        %v748 = vunpack.c.l.b16 %v554
        %v749 = vunpack.c.l.b16 %v555
        %v750 = vunpack.c.h.b16 %v555
        %v751 = vunpack.c.l.b16 %v556
        %v752 = vunpack.c.l.b16 %v557
        %v753 = vunpack.c.h.b16 %v557
        %v754 = vunpack.c.l.b16 %v558
        %v755 = vunpack.c.l.b16 %v559
        %v756 = vunpack.c.h.b16 %v559
        %v757 = vunpack.c.l.b16 %v560
        %v758 = vunpack.c.l.b16 %v561
        %v759 = vunpack.c.h.b16 %v561
        %v760 = vunpack.c.l.b16 %v562
        %v761 = vunpack.c.l.b16 %v563
        %v762 = vunpack.c.h.b16 %v563
        %v763 = vunpack.c.l.b16 %v564
        %v764 = vunpack.c.l.b16 %v565
        %v765 = vunpack.c.h.b16 %v565
        %v766 = vunpack.c.l.b16 %v566
        %v767 = vunpack.c.l.b16 %v567
        %v768 = vunpack.c.h.b16 %v567
        %v769 = vunpack.c.l.b16 %v568
        %v770 = vunpack.c.l.b16 %v569
        %v771 = vunpack.c.h.b16 %v569
        %v772 = vunpack.c.l.b16 %v570
        %v773 = vunpack.c.l.b16 %v571
        %v774 = vunpack.c.h.b16 %v571
        %v775 = vunpack.c.l.b16 %v572
        %v776 = vunpack.c.l.b16 %v573
        %v777 = vunpack.c.h.b16 %v573
        %v778 = vunpack.c.l.b16 %v574
        %v779 = vunpack.c.l.b16 %v575
        %v780 = vunpack.c.h.b16 %v575
        %v781 = vunpack.c.l.b16 %v576
        %v782 = vunpack.c.l.b16 %v577
        %v783 = vunpack.c.h.b16 %v577
        %v784 = vunpack.c.l.b16 %v578
        %v785 = vunpack.c.l.b16 %v579
        %v786 = vunpack.c.h.b16 %v579
        %v787 = vunpack.c.l.b16 %v580
        %v788 = vunpack.c.l.b16 %v581
        %v789 = vunpack.c.h.b16 %v581
        %v790 = vunpack.c.l.b16 %v582
        %v791 = vpack.c.b16 %v698, %v695
        %v792 = vpack.c.b16 %v699, %v696
        %v793 = vpack.c.b16 %v700, %v697
        %v794 = vpack.c.b16 %v704, %v701
        %v795 = vpack.c.b16 %v705, %v702
        %v796 = vpack.c.b16 %v706, %v703
        %v797 = vpack.c.b16 %v710, %v707
        %v798 = vpack.c.b16 %v711, %v708
        %v799 = vpack.c.b16 %v712, %v709
        %v800 = vpack.c.b16 %v716, %v713
        %v801 = vpack.c.b16 %v717, %v714
        %v802 = vpack.c.b16 %v718, %v715
        %v803 = vpack.c.b16 %v722, %v719
        %v804 = vpack.c.b16 %v723, %v720
        %v805 = vpack.c.b16 %v724, %v721
        %v806 = vpack.c.b16 %v728, %v725
        %v807 = vpack.c.b16 %v729, %v726
        %v808 = vpack.c.b16 %v730, %v727
        %v809 = vpack.c.b16 %v734, %v731
        %v810 = vpack.c.b16 %v735, %v732
        %v811 = vpack.c.b16 %v736, %v733
        %v812 = vpack.c.b16 %v740, %v737
        %v813 = vpack.c.b16 %v741, %v738
        %v814 = vpack.c.b16 %v742, %v739
        %v815 = vpack.c.b16 %v746, %v743
        %v816 = vpack.c.b16 %v747, %v744
        %v817 = vpack.c.b16 %v748, %v745
        %v818 = vpack.c.b16 %v752, %v749
        %v819 = vpack.c.b16 %v753, %v750
        %v820 = vpack.c.b16 %v754, %v751
        %v821 = vpack.c.b16 %v758, %v755
        %v822 = vpack.c.b16 %v759, %v756
        %v823 = vpack.c.b16 %v760, %v757
        %v824 = vpack.c.b16 %v764, %v761
        %v825 = vpack.c.b16 %v765, %v762
        %v826 = vpack.c.b16 %v766, %v763
        %v827 = vpack.c.b16 %v770, %v767
        %v828 = vpack.c.b16 %v771, %v768
        %v829 = vpack.c.b16 %v772, %v769
        %v830 = vpack.c.b16 %v776, %v773
        %v831 = vpack.c.b16 %v777, %v774
        %v832 = vpack.c.b16 %v778, %v775
        %v833 = vpack.c.b16 %v782, %v779
        %v834 = vpack.c.b16 %v783, %v780
        %v835 = vpack.c.b16 %v784, %v781
        %v836 = vpack.c.b16 %v788, %v785
        %v837 = vpack.c.b16 %v789, %v786
        %v838 = vpack.c.b16 %v790, %v787
        %v935 = vunpack.c.l.b16 %v583
        %v936 = vunpack.c.l.b16 %v584
        %v937 = vunpack.c.l.b16 %v585
        %v938 = vunpack.c.l.b16 %v586
        %v939 = vunpack.c.l.b16 %v587
        %v940 = vunpack.c.l.b16 %v588
        %v941 = vunpack.c.l.b16 %v589
        %v942 = vunpack.c.l.b16 %v590
        %v943 = vunpack.c.l.b16 %v591
        %v944 = vunpack.c.l.b16 %v592
        %v945 = vunpack.c.l.b16 %v593
        %v946 = vunpack.c.l.b16 %v594
        %v947 = vunpack.c.l.b16 %v595
        %v948 = vunpack.c.l.b16 %v596
        %v949 = vunpack.c.l.b16 %v597
        %v950 = vunpack.c.l.b16 %v598
        %v951 = vunpack.c.l.b16 %v599
        %v952 = vunpack.c.l.b16 %v600
        %v953 = vunpack.c.l.b16 %v601
        %v954 = vunpack.c.l.b16 %v602
        %v955 = vunpack.c.l.b16 %v603
        %v956 = vunpack.c.l.b16 %v604
        %v957 = vunpack.c.l.b16 %v605
        %v958 = vunpack.c.l.b16 %v606
        %v959 = vunpack.c.l.b16 %v607
        %v960 = vunpack.c.l.b16 %v608
        %v961 = vunpack.c.l.b16 %v609
        %v962 = vunpack.c.l.b16 %v610
        %v963 = vunpack.c.l.b16 %v611
        %v964 = vunpack.c.l.b16 %v612
        %v965 = vunpack.c.l.b16 %v613
        %v966 = vunpack.c.l.b16 %v614
        %v967 = vunpack.c.l.b16 %v615
        %v968 = vunpack.c.l.b16 %v616
        %v969 = vunpack.c.l.b16 %v617
        %v970 = vunpack.c.l.b16 %v618
        %v971 = vunpack.c.l.b16 %v619
        %v972 = vunpack.c.l.b16 %v620
        %v973 = vunpack.c.l.b16 %v621
        %v974 = vunpack.c.l.b16 %v622
        %v975 = vunpack.c.l.b16 %v623
        %v976 = vunpack.c.l.b16 %v624
        %v977 = vunpack.c.l.b16 %v625
        %v978 = vunpack.c.l.b16 %v626
        %v979 = vunpack.c.l.b16 %v627
        %v980 = vunpack.c.l.b16 %v628
        %v981 = vunpack.c.l.b16 %v629
        %v982 = vunpack.c.l.b16 %v630
        %v983 = vpack.c.b16 %v936, %v935
        %v984 = vpack.c.b16 %v938, %v937
        %v985 = vpack.c.b16 %v940, %v939
        %v986 = vpack.c.b16 %v942, %v941
        %v987 = vpack.c.b16 %v944, %v943
        %v988 = vpack.c.b16 %v946, %v945
        %v989 = vpack.c.b16 %v948, %v947
        %v990 = vpack.c.b16 %v950, %v949
        %v991 = vpack.c.b16 %v952, %v951
        %v992 = vpack.c.b16 %v954, %v953
        %v993 = vpack.c.b16 %v956, %v955
        %v994 = vpack.c.b16 %v958, %v957
        %v995 = vpack.c.b16 %v960, %v959
        %v996 = vpack.c.b16 %v962, %v961
        %v997 = vpack.c.b16 %v964, %v963
        %v998 = vpack.c.b16 %v966, %v965
        %v999 = vpack.c.b16 %v968, %v967
        %v1000 = vpack.c.b16 %v970, %v969
        %v1001 = vpack.c.b16 %v972, %v971
        %v1002 = vpack.c.b16 %v974, %v973
        %v1003 = vpack.c.b16 %v976, %v975
        %v1004 = vpack.c.b16 %v978, %v977
        %v1005 = vpack.c.b16 %v980, %v979
        %v1006 = vpack.c.b16 %v982, %v981
        %1031 = vmatprep.subr.bf16.mxu0 0
        %1032 = vmatpush1.bf16.msra.mxu0 %v990
        %1033 = vmatprep.subr.bf16.mxu0 0
        %1034 = vmatpush1.bf16.msra.mxu0 %v989
        %1035 = vmatprep.subr.bf16.mxu0 0
        %1036 = vmatpush1.bf16.msra.mxu0 %v988
        %1037 = vmatprep.subr.bf16.mxu0 0
        %1038 = vmatpush1.bf16.msra.mxu0 %v987
        %1039 = vmatprep.subr.bf16.mxu0 0
        %1040 = vmatpush1.bf16.msra.mxu0 %v986
        %1041 = vmatprep.subr.bf16.mxu0 0
        %1042 = vmatpush1.bf16.msra.mxu0 %v985
        %1043 = vmatprep.subr.bf16.mxu0 0
        %1044 = vmatpush1.bf16.msra.mxu0 %v984
        %1045 = vmatprep.subr.bf16.mxu0 0
        %1046 = vmatpush1.bf16.msra.mxu0 %v983
        %1047 = vmatprep.subr.bf16.mxu0 0
        %1048 = vmatpush2.bf16.msra.mxu0 %v998
        %1049 = vmatprep.subr.bf16.mxu0 0
        %1050 = vmatpush2.bf16.msra.mxu0 %v997
        %1051 = vmatprep.subr.bf16.mxu0 0
        %1052 = vmatpush2.bf16.msra.mxu0 %v996
        %1053 = vmatprep.subr.bf16.mxu0 0
        %1054 = vmatpush2.bf16.msra.mxu0 %v995
        %1055 = vmatprep.subr.bf16.mxu0 0
        %1056 = vmatpush2.bf16.msra.mxu0 %v994
        %1057 = vmatprep.subr.bf16.mxu0 0
        %1058 = vmatpush2.bf16.msra.mxu0 %v993
        %1059 = vmatprep.subr.bf16.mxu0 0
        %1060 = vmatpush2.bf16.msra.mxu0 %v992
        %1061 = vmatprep.subr.bf16.mxu0 0
        %1062 = vmatpush2.bf16.msra.mxu0 %v991
        %1063 = vmatprep.mubr.bf16.mxu0 %v792
        %1064 = vmatmul.mubr.bf16.gmra.mxu0 %v791
        %v1065 = vpop.f32.mrf.mxu0
        %v1066 = vadd.f32 0.0, %v1065
        %v1067 = vpop.f32.mrf.mxu0
        %v1068 = vpop.f32.mrf.mxu0
        %v1069 = vadd.f32 0.0, %v1068
        %v1070 = vpop.f32.mrf.mxu0
        %1071 = vmatprep.mubr.bf16.mxu0 %v795
        %1072 = vmatmul.mubr.bf16.gmra.mxu0 %v794
        %v1073 = vpop.f32.mrf.mxu0
        %v1074 = vadd.f32 0.0, %v1073
        %v1075 = vpop.f32.mrf.mxu0
        %v1076 = vpop.f32.mrf.mxu0
        %v1077 = vadd.f32 0.0, %v1076
        %v1078 = vpop.f32.mrf.mxu0
        %1079 = vmatprep.mubr.bf16.mxu0 %v798
        %1080 = vmatmul.mubr.bf16.gmra.mxu0 %v797
        %v1081 = vpop.f32.mrf.mxu0
        %v1082 = vadd.f32 0.0, %v1081
        %v1083 = vpop.f32.mrf.mxu0
        %v1084 = vpop.f32.mrf.mxu0
        %v1085 = vadd.f32 0.0, %v1084
        %v1086 = vpop.f32.mrf.mxu0
        %1087 = vmatprep.mubr.bf16.mxu0 %v801
        %1088 = vmatmul.mubr.bf16.gmra.mxu0 %v800
        %v1089 = vpop.f32.mrf.mxu0
        %v1090 = vadd.f32 0.0, %v1089
        %v1091 = vpop.f32.mrf.mxu0
        %v1092 = vpop.f32.mrf.mxu0
        %v1093 = vadd.f32 0.0, %v1092
        %v1094 = vpop.f32.mrf.mxu0
        %1095 = vmatprep.mubr.bf16.mxu0 %v804
        %1096 = vmatmul.mubr.bf16.gmra.mxu0 %v803
        %v1097 = vpop.f32.mrf.mxu0
        %v1098 = vadd.f32 0.0, %v1097
        %v1099 = vpop.f32.mrf.mxu0
        %v1100 = vpop.f32.mrf.mxu0
        %v1101 = vadd.f32 0.0, %v1100
        %v1102 = vpop.f32.mrf.mxu0
        %1103 = vmatprep.mubr.bf16.mxu0 %v807
        %1104 = vmatmul.mubr.bf16.gmra.mxu0 %v806
        %v1105 = vpop.f32.mrf.mxu0
        %v1106 = vadd.f32 0.0, %v1105
        %v1107 = vpop.f32.mrf.mxu0
        %v1108 = vpop.f32.mrf.mxu0
        %v1109 = vadd.f32 0.0, %v1108
        %v1110 = vpop.f32.mrf.mxu0
        %1111 = vmatprep.mubr.bf16.mxu0 %v810
        %1112 = vmatmul.mubr.bf16.gmra.mxu0 %v809
        %v1113 = vpop.f32.mrf.mxu0
        %v1114 = vadd.f32 0.0, %v1113
        %v1115 = vpop.f32.mrf.mxu0
        %v1116 = vpop.f32.mrf.mxu0
        %v1117 = vadd.f32 0.0, %v1116
        %v1118 = vpop.f32.mrf.mxu0
        %1119 = vmatprep.mubr.bf16.mxu0 %v813
        %1120 = vmatmul.mubr.bf16.gmra.mxu0 %v812
        %v1121 = vpop.f32.mrf.mxu0
        %v1122 = vadd.f32 0.0, %v1121
        %v1123 = vpop.f32.mrf.mxu0
        %v1124 = vpop.f32.mrf.mxu0
        %v1125 = vadd.f32 0.0, %v1124
        %v1126 = vpop.f32.mrf.mxu0
        %1127 = vmatprep.mubr.bf16.mxu0 %v816
        %1128 = vmatmul.mubr.bf16.gmra.mxu0 %v815
        %v1129 = vpop.f32.mrf.mxu0
        %v1130 = vadd.f32 0.0, %v1129
        %v1131 = vpop.f32.mrf.mxu0
        %v1132 = vpop.f32.mrf.mxu0
        %v1133 = vadd.f32 0.0, %v1132
        %v1134 = vpop.f32.mrf.mxu0
        %1135 = vmatprep.mubr.bf16.mxu0 %v819
        %1136 = vmatmul.mubr.bf16.gmra.mxu0 %v818
        %v1137 = vpop.f32.mrf.mxu0
        %v1138 = vadd.f32 0.0, %v1137
        %v1139 = vpop.f32.mrf.mxu0
        %v1140 = vpop.f32.mrf.mxu0
        %v1141 = vadd.f32 0.0, %v1140
        %v1142 = vpop.f32.mrf.mxu0
        %1143 = vmatprep.mubr.bf16.mxu0 %v822
        %1144 = vmatmul.mubr.bf16.gmra.mxu0 %v821
        %v1145 = vpop.f32.mrf.mxu0
        %v1146 = vadd.f32 0.0, %v1145
        %v1147 = vpop.f32.mrf.mxu0
        %v1148 = vpop.f32.mrf.mxu0
        %v1149 = vadd.f32 0.0, %v1148
        %v1150 = vpop.f32.mrf.mxu0
        %1151 = vmatprep.mubr.bf16.mxu0 %v825
        %1152 = vmatmul.mubr.bf16.gmra.mxu0 %v824
        %v1153 = vpop.f32.mrf.mxu0
        %v1154 = vadd.f32 0.0, %v1153
        %v1155 = vpop.f32.mrf.mxu0
        %v1156 = vpop.f32.mrf.mxu0
        %v1157 = vadd.f32 0.0, %v1156
        %v1158 = vpop.f32.mrf.mxu0
        %1159 = vmatprep.mubr.bf16.mxu0 %v828
        %1160 = vmatmul.mubr.bf16.gmra.mxu0 %v827
        %v1161 = vpop.f32.mrf.mxu0
        %v1162 = vadd.f32 0.0, %v1161
        %v1163 = vpop.f32.mrf.mxu0
        %v1164 = vpop.f32.mrf.mxu0
        %v1165 = vadd.f32 0.0, %v1164
        %v1166 = vpop.f32.mrf.mxu0
        %1167 = vmatprep.mubr.bf16.mxu0 %v831
        %1168 = vmatmul.mubr.bf16.gmra.mxu0 %v830
        %v1169 = vpop.f32.mrf.mxu0
        %v1170 = vadd.f32 0.0, %v1169
        %v1171 = vpop.f32.mrf.mxu0
        %v1172 = vpop.f32.mrf.mxu0
        %v1173 = vadd.f32 0.0, %v1172
        %v1174 = vpop.f32.mrf.mxu0
        %1175 = vmatprep.mubr.bf16.mxu0 %v834
        %1176 = vmatmul.mubr.bf16.gmra.mxu0 %v833
        %v1177 = vpop.f32.mrf.mxu0
        %v1178 = vadd.f32 0.0, %v1177
        %v1179 = vpop.f32.mrf.mxu0
        %v1180 = vpop.f32.mrf.mxu0
        %v1181 = vadd.f32 0.0, %v1180
        %v1182 = vpop.f32.mrf.mxu0
        %1183 = vmatprep.mubr.bf16.mxu0 %v837
        %1184 = vmatmul.mubr.bf16.gmra.mxu0 %v836
        %v1185 = vpop.f32.mrf.mxu0
        %v1186 = vadd.f32 0.0, %v1185
        %v1187 = vpop.f32.mrf.mxu0
        %v1188 = vpop.f32.mrf.mxu0
        %v1189 = vadd.f32 0.0, %v1188
        %v1190 = vpop.f32.mrf.mxu0
        %1191 = vdwg.mxu0
        %1192 = vmatprep.subr.bf16.mxu0 0
        %1193 = vmatpush1.bf16.msra.mxu0 %v1006
        %1194 = vmatprep.subr.bf16.mxu0 0
        %1195 = vmatpush1.bf16.msra.mxu0 %v1005
        %1196 = vmatprep.subr.bf16.mxu0 0
        %1197 = vmatpush1.bf16.msra.mxu0 %v1004
        %1198 = vmatprep.subr.bf16.mxu0 0
        %1199 = vmatpush1.bf16.msra.mxu0 %v1003
        %1200 = vmatprep.subr.bf16.mxu0 0
        %1201 = vmatpush1.bf16.msra.mxu0 %v1002
        %1202 = vmatprep.subr.bf16.mxu0 0
        %1203 = vmatpush1.bf16.msra.mxu0 %v1001
        %1204 = vmatprep.subr.bf16.mxu0 0
        %1205 = vmatpush1.bf16.msra.mxu0 %v1000
        %1206 = vmatprep.subr.bf16.mxu0 0
        %1207 = vmatpush1.bf16.msra.mxu0 %v999
        %1208 = vmatprep.subr.bf16.mxu0 0
        %1209 = vmatpush2.bf16.msra.mxu0 0
        %1210 = vmatprep.subr.bf16.mxu0 0
        %1211 = vmatpush2.bf16.msra.mxu0 0
        %1212 = vmatprep.subr.bf16.mxu0 0
        %1213 = vmatpush2.bf16.msra.mxu0 0
        %1214 = vmatprep.subr.bf16.mxu0 0
        %1215 = vmatpush2.bf16.msra.mxu0 0
        %1216 = vmatprep.subr.bf16.mxu0 0
        %1217 = vmatpush2.bf16.msra.mxu0 0
        %1218 = vmatprep.subr.bf16.mxu0 0
        %1219 = vmatpush2.bf16.msra.mxu0 0
        %1220 = vmatprep.subr.bf16.mxu0 0
        %1221 = vmatpush2.bf16.msra.mxu0 0
        %1222 = vmatprep.subr.bf16.mxu0 0
        %1223 = vmatpush2.bf16.msra.mxu0 0
        %1224 = vmatprep.mubr.bf16.mxu0 0
        %1225 = vmatmul.mubr.bf16.gmra.mxu0 %v793
        %v1226 = vpop.f32.mrf.mxu0
        %v1227 = vadd.f32 %v1066, %v1226
        %v1228 = vpop.f32.mrf.mxu0
        %v1229 = vpop.f32.mrf.mxu0
        %v1230 = vadd.f32 %v1069, %v1229
        %v1231 = vpop.f32.mrf.mxu0
        %1232 = vmatprep.mubr.bf16.mxu0 0
        %1233 = vmatmul.mubr.bf16.gmra.mxu0 %v796
        %v1234 = vpop.f32.mrf.mxu0
        %v1235 = vadd.f32 %v1074, %v1234
        %v1236 = vpop.f32.mrf.mxu0
        %v1237 = vpop.f32.mrf.mxu0
        %v1238 = vadd.f32 %v1077, %v1237
        %v1239 = vpop.f32.mrf.mxu0
        %1240 = vmatprep.mubr.bf16.mxu0 0
        %1241 = vmatmul.mubr.bf16.gmra.mxu0 %v799
        %v1242 = vpop.f32.mrf.mxu0
        %v1243 = vadd.f32 %v1082, %v1242
        %v1244 = vpop.f32.mrf.mxu0
        %v1245 = vpop.f32.mrf.mxu0
        %v1246 = vadd.f32 %v1085, %v1245
        %v1247 = vpop.f32.mrf.mxu0
        %1248 = vmatprep.mubr.bf16.mxu0 0
        %1249 = vmatmul.mubr.bf16.gmra.mxu0 %v802
        %v1250 = vpop.f32.mrf.mxu0
        %v1251 = vadd.f32 %v1090, %v1250
        %v1252 = vpop.f32.mrf.mxu0
        %v1253 = vpop.f32.mrf.mxu0
        %v1254 = vadd.f32 %v1093, %v1253
        %v1255 = vpop.f32.mrf.mxu0
        %1256 = vmatprep.mubr.bf16.mxu0 0
        %1257 = vmatmul.mubr.bf16.gmra.mxu0 %v805
        %v1258 = vpop.f32.mrf.mxu0
        %v1259 = vadd.f32 %v1098, %v1258
        %v1260 = vpop.f32.mrf.mxu0
        %v1261 = vpop.f32.mrf.mxu0
        %v1262 = vadd.f32 %v1101, %v1261
        %v1263 = vpop.f32.mrf.mxu0
        %1264 = vmatprep.mubr.bf16.mxu0 0
        %1265 = vmatmul.mubr.bf16.gmra.mxu0 %v808
        %v1266 = vpop.f32.mrf.mxu0
        %v1267 = vadd.f32 %v1106, %v1266
        %v1268 = vpop.f32.mrf.mxu0
        %v1269 = vpop.f32.mrf.mxu0
        %v1270 = vadd.f32 %v1109, %v1269
        %v1271 = vpop.f32.mrf.mxu0
        %1272 = vmatprep.mubr.bf16.mxu0 0
        %1273 = vmatmul.mubr.bf16.gmra.mxu0 %v811
        %v1274 = vpop.f32.mrf.mxu0
        %v1275 = vadd.f32 %v1114, %v1274
        %v1276 = vpop.f32.mrf.mxu0
        %v1277 = vpop.f32.mrf.mxu0
        %v1278 = vadd.f32 %v1117, %v1277
        %v1279 = vpop.f32.mrf.mxu0
        %1280 = vmatprep.mubr.bf16.mxu0 0
        %1281 = vmatmul.mubr.bf16.gmra.mxu0 %v814
        %v1282 = vpop.f32.mrf.mxu0
        %v1283 = vadd.f32 %v1122, %v1282
        %v1284 = vpop.f32.mrf.mxu0
        %v1285 = vpop.f32.mrf.mxu0
        %v1286 = vadd.f32 %v1125, %v1285
        %v1287 = vpop.f32.mrf.mxu0
        %1288 = vmatprep.mubr.bf16.mxu0 0
        %1289 = vmatmul.mubr.bf16.gmra.mxu0 %v817
        %v1290 = vpop.f32.mrf.mxu0
        %v1291 = vadd.f32 %v1130, %v1290
        %v1292 = vpop.f32.mrf.mxu0
        %v1293 = vpop.f32.mrf.mxu0
        %v1294 = vadd.f32 %v1133, %v1293
        %v1295 = vpop.f32.mrf.mxu0
        %1296 = vmatprep.mubr.bf16.mxu0 0
        %1297 = vmatmul.mubr.bf16.gmra.mxu0 %v820
        %v1298 = vpop.f32.mrf.mxu0
        %v1299 = vadd.f32 %v1138, %v1298
        %v1300 = vpop.f32.mrf.mxu0
        %v1301 = vpop.f32.mrf.mxu0
        %v1302 = vadd.f32 %v1141, %v1301
        %v1303 = vpop.f32.mrf.mxu0
        %1304 = vmatprep.mubr.bf16.mxu0 0
        %1305 = vmatmul.mubr.bf16.gmra.mxu0 %v823
        %v1306 = vpop.f32.mrf.mxu0
        %v1307 = vadd.f32 %v1146, %v1306
        %v1308 = vpop.f32.mrf.mxu0
        %v1309 = vpop.f32.mrf.mxu0
        %v1310 = vadd.f32 %v1149, %v1309
        %v1311 = vpop.f32.mrf.mxu0
        %1312 = vmatprep.mubr.bf16.mxu0 0
        %1313 = vmatmul.mubr.bf16.gmra.mxu0 %v826
        %v1314 = vpop.f32.mrf.mxu0
        %v1315 = vadd.f32 %v1154, %v1314
        %v1316 = vpop.f32.mrf.mxu0
        %v1317 = vpop.f32.mrf.mxu0
        %v1318 = vadd.f32 %v1157, %v1317
        %v1319 = vpop.f32.mrf.mxu0
        %1320 = vmatprep.mubr.bf16.mxu0 0
        %1321 = vmatmul.mubr.bf16.gmra.mxu0 %v829
        %v1322 = vpop.f32.mrf.mxu0
        %v1323 = vadd.f32 %v1162, %v1322
        %v1324 = vpop.f32.mrf.mxu0
        %v1325 = vpop.f32.mrf.mxu0
        %v1326 = vadd.f32 %v1165, %v1325
        %v1327 = vpop.f32.mrf.mxu0
        %1328 = vmatprep.mubr.bf16.mxu0 0
        %1329 = vmatmul.mubr.bf16.gmra.mxu0 %v832
        %v1330 = vpop.f32.mrf.mxu0
        %v1331 = vadd.f32 %v1170, %v1330
        %v1332 = vpop.f32.mrf.mxu0
        %v1333 = vpop.f32.mrf.mxu0
        %v1334 = vadd.f32 %v1173, %v1333
        %v1335 = vpop.f32.mrf.mxu0
        %1336 = vmatprep.mubr.bf16.mxu0 0
        %1337 = vmatmul.mubr.bf16.gmra.mxu0 %v835
        %v1338 = vpop.f32.mrf.mxu0
        %v1339 = vadd.f32 %v1178, %v1338
        %v1340 = vpop.f32.mrf.mxu0
        %v1341 = vpop.f32.mrf.mxu0
        %v1342 = vadd.f32 %v1181, %v1341
        %v1343 = vpop.f32.mrf.mxu0
        %1344 = vmatprep.mubr.bf16.mxu0 0
        %1345 = vmatmul.mubr.bf16.gmra.mxu0 %v838
        %v1346 = vpop.f32.mrf.mxu0
        %v1347 = vadd.f32 %v1186, %v1346
        %v1348 = vpop.f32.mrf.mxu0
        %v1349 = vpop.f32.mrf.mxu0
        %v1350 = vadd.f32 %v1189, %v1349
        %v1351 = vpop.f32.mrf.mxu0
        %1352 = vdwg.mxu0
        %v1353 = vadd.f32 %v487, %v1227
        %v1354 = vadd.f32 %v488, %v1230
        %v1355 = vadd.f32 %v489, %v1235
        %v1356 = vadd.f32 %v490, %v1238
        %v1357 = vadd.f32 %v491, %v1243
        %v1358 = vadd.f32 %v492, %v1246
        %v1359 = vadd.f32 %v493, %v1251
        %v1360 = vadd.f32 %v494, %v1254
        %v1361 = vadd.f32 %v495, %v1259
        %v1362 = vadd.f32 %v496, %v1262
        %v1363 = vadd.f32 %v497, %v1267
        %v1364 = vadd.f32 %v498, %v1270
        %v1365 = vadd.f32 %v499, %v1275
        %v1366 = vadd.f32 %v500, %v1278
        %v1367 = vadd.f32 %v501, %v1283
        %v1368 = vadd.f32 %v502, %v1286
        %v1369 = vadd.f32 %v503, %v1291
        %v1370 = vadd.f32 %v504, %v1294
        %v1371 = vadd.f32 %v505, %v1299
        %v1372 = vadd.f32 %v506, %v1302
        %v1373 = vadd.f32 %v507, %v1307
        %v1374 = vadd.f32 %v508, %v1310
        %v1375 = vadd.f32 %v509, %v1315
        %v1376 = vadd.f32 %v510, %v1318
        %v1377 = vadd.f32 %v511, %v1323
        %v1378 = vadd.f32 %v512, %v1326
        %v1379 = vadd.f32 %v513, %v1331
        %v1380 = vadd.f32 %v514, %v1334
        %v1381 = vadd.f32 %v515, %v1339
        %v1382 = vadd.f32 %v516, %v1342
        %v1383 = vadd.f32 %v517, %v1347
        %v1384 = vadd.f32 %v518, %v1350
        %1385 = vst [vmem:[#allocation2] sm:$0xff] %v1353
        %1386 = vst [vmem:[#allocation2 + $0x8] sm:$0xff] %v1354
        %1387 = vst [vmem:[#allocation2 + $0x10] sm:$0xff] %v1355
        %1388 = vst [vmem:[#allocation2 + $0x18] sm:$0xff] %v1356
        %1389 = vst [vmem:[#allocation2 + $0x20] sm:$0xff] %v1357
        %1390 = vst [vmem:[#allocation2 + $0x28] sm:$0xff] %v1358
        %1391 = vst [vmem:[#allocation2 + $0x30] sm:$0xff] %v1359
        %1392 = vst [vmem:[#allocation2 + $0x38] sm:$0xff] %v1360
        %1393 = vst [vmem:[#allocation2 + $0x40] sm:$0xff] %v1361
        %1394 = vst [vmem:[#allocation2 + $0x48] sm:$0xff] %v1362
        %1395 = vst [vmem:[#allocation2 + $0x50] sm:$0xff] %v1363
        %1396 = vst [vmem:[#allocation2 + $0x58] sm:$0xff] %v1364
        %1397 = vst [vmem:[#allocation2 + $0x60] sm:$0xff] %v1365
        %1398 = vst [vmem:[#allocation2 + $0x68] sm:$0xff] %v1366
        %1399 = vst [vmem:[#allocation2 + $0x70] sm:$0xff] %v1367
        %1400 = vst [vmem:[#allocation2 + $0x78] sm:$0xff] %v1368
        %1401 = vst [vmem:[#allocation2 + $0x80] sm:$0xff] %v1369
        %1402 = vst [vmem:[#allocation2 + $0x88] sm:$0xff] %v1370
        %1403 = vst [vmem:[#allocation2 + $0x90] sm:$0xff] %v1371
        %1404 = vst [vmem:[#allocation2 + $0x98] sm:$0xff] %v1372
        %1405 = vst [vmem:[#allocation2 + $0xa0] sm:$0xff] %v1373
        %1406 = vst [vmem:[#allocation2 + $0xa8] sm:$0xff] %v1374
        %1407 = vst [vmem:[#allocation2 + $0xb0] sm:$0xff] %v1375
        %1408 = vst [vmem:[#allocation2 + $0xb8] sm:$0xff] %v1376
        %1409 = vst [vmem:[#allocation2 + $0xc0] sm:$0xff] %v1377
        %1410 = vst [vmem:[#allocation2 + $0xc8] sm:$0xff] %v1378
        %1411 = vst [vmem:[#allocation2 + $0xd0] sm:$0xff] %v1379
        %1412 = vst [vmem:[#allocation2 + $0xd8] sm:$0xff] %v1380
        %1413 = vst [vmem:[#allocation2 + $0xe0] sm:$0xff] %v1381
        %1414 = vst [vmem:[#allocation2 + $0xe8] sm:$0xff] %v1382
        %1415 = vst [vmem:[#allocation2 + $0xf0] sm:$0xff] %v1383
        %1416 = vst [vmem:[#allocation2 + $0xf8] sm:$0xff] %v1384
        %p1417 = scmp.eq.s32.totalorder %s22, 1
        // Predicated region
        $region67: #{inception_b_forward.7} parent=57 // pred_check
          %p1418 = pneg %p1417
        $region68: #{inception_b_forward.7} parent=57 // pred_check_branch
          %1420 = sbr.rel (%p1418) target = $region70
        $region69: #{inception_b_forward.7} parent=57 // pred_region
          %v1421 = vld [vmem:[#allocation2] sm:$0xff]
          %v1422 = vld [vmem:[#allocation2 + $0x8] sm:$0xff]
          %v1423 = vld [vmem:[#allocation2 + $0x10] sm:$0xff]
          %v1424 = vld [vmem:[#allocation2 + $0x18] sm:$0xff]
          %v1425 = vld [vmem:[#allocation2 + $0x20] sm:$0xff]
          %v1426 = vld [vmem:[#allocation2 + $0x28] sm:$0xff]
          %v1427 = vld [vmem:[#allocation2 + $0x30] sm:$0xff]
          %v1428 = vld [vmem:[#allocation2 + $0x38] sm:$0xff]
          %v1429 = vld [vmem:[#allocation2 + $0x40] sm:$0xff]
          %v1430 = vld [vmem:[#allocation2 + $0x48] sm:$0xff]
          %v1431 = vld [vmem:[#allocation2 + $0x50] sm:$0xff]
          %v1432 = vld [vmem:[#allocation2 + $0x58] sm:$0xff]
          %v1433 = vld [vmem:[#allocation2 + $0x60] sm:$0xff]
          %v1434 = vld [vmem:[#allocation2 + $0x68] sm:$0xff]
          %v1435 = vld [vmem:[#allocation2 + $0x70] sm:$0xff]
          %v1436 = vld [vmem:[#allocation2 + $0x78] sm:$0xff]
          %v1437 = vld [vmem:[#allocation2 + $0x80] sm:$0xff]
          %v1438 = vld [vmem:[#allocation2 + $0x88] sm:$0xff]
          %v1439 = vld [vmem:[#allocation2 + $0x90] sm:$0xff]
          %v1440 = vld [vmem:[#allocation2 + $0x98] sm:$0xff]
          %v1441 = vld [vmem:[#allocation2 + $0xa0] sm:$0xff]
          %v1442 = vld [vmem:[#allocation2 + $0xa8] sm:$0xff]
          %v1443 = vld [vmem:[#allocation2 + $0xb0] sm:$0xff]
          %v1444 = vld [vmem:[#allocation2 + $0xb8] sm:$0xff]
          %v1445 = vld [vmem:[#allocation2 + $0xc0] sm:$0xff]
          %v1446 = vld [vmem:[#allocation2 + $0xc8] sm:$0xff]
          %v1447 = vld [vmem:[#allocation2 + $0xd0] sm:$0xff]
          %v1448 = vld [vmem:[#allocation2 + $0xd8] sm:$0xff]
          %v1449 = vld [vmem:[#allocation2 + $0xe0] sm:$0xff]
          %v1450 = vld [vmem:[#allocation2 + $0xe8] sm:$0xff]
          %v1451 = vld [vmem:[#allocation2 + $0xf0] sm:$0xff]
          %v1452 = vld [vmem:[#allocation2 + $0xf8] sm:$0xff]
          %v1453 = vld [vmem:[%s437] sm:$0x1]
          %v1455 = vlaneseq
          %v1456 = vshrl.u32 %v1455, 7
          %v1457 = vsub.s32 0, %v1456
          %v1458 = vrot.slane %v1453, %v1457
          %v1460 = vmul.f32 %v1421, %v1458
          %v1461 = vmul.f32 %v1422, %v1458
          %v1462 = vmul.f32 %v1423, %v1458
          %v1463 = vmul.f32 %v1424, %v1458
          %v1464 = vmul.f32 %v1425, %v1458
          %v1465 = vmul.f32 %v1426, %v1458
          %v1466 = vmul.f32 %v1427, %v1458
          %v1467 = vmul.f32 %v1428, %v1458
          %v1468 = vmul.f32 %v1429, %v1458
          %v1469 = vmul.f32 %v1430, %v1458
          %v1470 = vmul.f32 %v1431, %v1458
          %v1471 = vmul.f32 %v1432, %v1458
          %v1472 = vmul.f32 %v1433, %v1458
          %v1473 = vmul.f32 %v1434, %v1458
          %v1474 = vmul.f32 %v1435, %v1458
          %v1475 = vmul.f32 %v1436, %v1458
          %v1476 = vmul.f32 %v1437, %v1458
          %v1477 = vmul.f32 %v1438, %v1458
          %v1478 = vmul.f32 %v1439, %v1458
          %v1479 = vmul.f32 %v1440, %v1458
          %v1480 = vmul.f32 %v1441, %v1458
          %v1481 = vmul.f32 %v1442, %v1458
          %v1482 = vmul.f32 %v1443, %v1458
          %v1483 = vmul.f32 %v1444, %v1458
          %v1484 = vmul.f32 %v1445, %v1458
          %v1485 = vmul.f32 %v1446, %v1458
          %v1486 = vmul.f32 %v1447, %v1458
          %v1487 = vmul.f32 %v1448, %v1458
          %v1488 = vmul.f32 %v1449, %v1458
          %v1489 = vmul.f32 %v1450, %v1458
          %v1490 = vmul.f32 %v1451, %v1458
          %v1491 = vmul.f32 %v1452, %v1458
          %v1492 = vld [vmem:[%s440] sm:$0x1]
          %v1494 = vlaneseq
          %v1495 = vshrl.u32 %v1494, 7
          %v1496 = vsub.s32 0, %v1495
          %v1497 = vrot.slane %v1492, %v1496
          %v1499 = vadd.f32 %v1460, %v1497
          %v1500 = vadd.f32 %v1461, %v1497
          %v1501 = vadd.f32 %v1462, %v1497
          %v1502 = vadd.f32 %v1463, %v1497
          %v1503 = vadd.f32 %v1464, %v1497
          %v1504 = vadd.f32 %v1465, %v1497
          %v1505 = vadd.f32 %v1466, %v1497
          %v1506 = vadd.f32 %v1467, %v1497
          %v1507 = vadd.f32 %v1468, %v1497
          %v1508 = vadd.f32 %v1469, %v1497
          %v1509 = vadd.f32 %v1470, %v1497
          %v1510 = vadd.f32 %v1471, %v1497
          %v1511 = vadd.f32 %v1472, %v1497
          %v1512 = vadd.f32 %v1473, %v1497
          %v1513 = vadd.f32 %v1474, %v1497
          %v1514 = vadd.f32 %v1475, %v1497
          %v1515 = vadd.f32 %v1476, %v1497
          %v1516 = vadd.f32 %v1477, %v1497
          %v1517 = vadd.f32 %v1478, %v1497
          %v1518 = vadd.f32 %v1479, %v1497
          %v1519 = vadd.f32 %v1480, %v1497
          %v1520 = vadd.f32 %v1481, %v1497
          %v1521 = vadd.f32 %v1482, %v1497
          %v1522 = vadd.f32 %v1483, %v1497
          %v1523 = vadd.f32 %v1484, %v1497
          %v1524 = vadd.f32 %v1485, %v1497
          %v1525 = vadd.f32 %v1486, %v1497
          %v1526 = vadd.f32 %v1487, %v1497
          %v1527 = vadd.f32 %v1488, %v1497
          %v1528 = vadd.f32 %v1489, %v1497
          %v1529 = vadd.f32 %v1490, %v1497
          %v1530 = vadd.f32 %v1491, %v1497
          %v1531 = vmax.f32 %v1499, 0.0
          %v1532 = vmax.f32 %v1500, 0.0
          %v1533 = vmax.f32 %v1501, 0.0
          %v1534 = vmax.f32 %v1502, 0.0
          %v1535 = vmax.f32 %v1503, 0.0
          %v1536 = vmax.f32 %v1504, 0.0
          %v1537 = vmax.f32 %v1505, 0.0
          %v1538 = vmax.f32 %v1506, 0.0
          %v1539 = vmax.f32 %v1507, 0.0
          %v1540 = vmax.f32 %v1508, 0.0
          %v1541 = vmax.f32 %v1509, 0.0
          %v1542 = vmax.f32 %v1510, 0.0
          %v1543 = vmax.f32 %v1511, 0.0
          %v1544 = vmax.f32 %v1512, 0.0
          %v1545 = vmax.f32 %v1513, 0.0
          %v1546 = vmax.f32 %v1514, 0.0
          %v1547 = vmax.f32 %v1515, 0.0
          %v1548 = vmax.f32 %v1516, 0.0
          %v1549 = vmax.f32 %v1517, 0.0
          %v1550 = vmax.f32 %v1518, 0.0
          %v1551 = vmax.f32 %v1519, 0.0
          %v1552 = vmax.f32 %v1520, 0.0
          %v1553 = vmax.f32 %v1521, 0.0
          %v1554 = vmax.f32 %v1522, 0.0
          %v1555 = vmax.f32 %v1523, 0.0
          %v1556 = vmax.f32 %v1524, 0.0
          %v1557 = vmax.f32 %v1525, 0.0
          %v1558 = vmax.f32 %v1526, 0.0
          %v1559 = vmax.f32 %v1527, 0.0
          %v1560 = vmax.f32 %v1528, 0.0
          %v1561 = vmax.f32 %v1529, 0.0
          %v1562 = vmax.f32 %v1530, 0.0
          %v1563 = vpack.c.bf16 %v1532, %v1531
          %v1564 = vpack.c.bf16 %v1534, %v1533
          %v1565 = vpack.c.bf16 %v1536, %v1535
          %v1566 = vpack.c.bf16 %v1538, %v1537
          %v1567 = vpack.c.bf16 %v1540, %v1539
          %v1568 = vpack.c.bf16 %v1542, %v1541
          %v1569 = vpack.c.bf16 %v1544, %v1543
          %v1570 = vpack.c.bf16 %v1546, %v1545
          %v1571 = vpack.c.bf16 %v1548, %v1547
          %v1572 = vpack.c.bf16 %v1550, %v1549
          %v1573 = vpack.c.bf16 %v1552, %v1551
          %v1574 = vpack.c.bf16 %v1554, %v1553
          %v1575 = vpack.c.bf16 %v1556, %v1555
          %v1576 = vpack.c.bf16 %v1558, %v1557
          %v1577 = vpack.c.bf16 %v1560, %v1559
          %v1578 = vpack.c.bf16 %v1562, %v1561
          %v1595 = vunpack.c.l.b16 %v1563
          %v1596 = vunpack.c.h.b16 %v1563
          %v1597 = vunpack.c.l.b16 %v1564
          %v1598 = vunpack.c.h.b16 %v1564
          %v1599 = vunpack.c.l.b16 %v1565
          %v1600 = vunpack.c.h.b16 %v1565
          %v1601 = vunpack.c.l.b16 %v1566
          %v1602 = vunpack.c.h.b16 %v1566
          %v1603 = vunpack.c.l.b16 %v1567
          %v1604 = vunpack.c.h.b16 %v1567
          %v1605 = vunpack.c.l.b16 %v1568
          %v1606 = vunpack.c.h.b16 %v1568
          %v1607 = vunpack.c.l.b16 %v1569
          %v1608 = vunpack.c.h.b16 %v1569
          %v1609 = vunpack.c.l.b16 %v1570
          %v1610 = vunpack.c.h.b16 %v1570
          %v1611 = vunpack.c.l.b16 %v1571
          %v1612 = vunpack.c.h.b16 %v1571
          %v1613 = vunpack.c.l.b16 %v1572
          %v1614 = vunpack.c.h.b16 %v1572
          %v1615 = vunpack.c.l.b16 %v1573
          %v1616 = vunpack.c.h.b16 %v1573
          %v1617 = vunpack.c.l.b16 %v1574
          %v1618 = vunpack.c.h.b16 %v1574
          %v1619 = vunpack.c.l.b16 %v1575
          %v1620 = vunpack.c.h.b16 %v1575
          %v1621 = vunpack.c.l.b16 %v1576
          %v1622 = vunpack.c.h.b16 %v1576
          %v1623 = vunpack.c.l.b16 %v1577
          %v1624 = vunpack.c.h.b16 %v1577
          %v1625 = vunpack.c.l.b16 %v1578
          %v1626 = vunpack.c.h.b16 %v1578
          %v1627 = vpack.c.b16 %v1595, %v1595
          %v1628 = vpack.c.b16 %v1596, %v1596
          %v1629 = vpack.c.b16 %v1597, %v1597
          %v1630 = vpack.c.b16 %v1598, %v1598
          %v1631 = vpack.c.b16 %v1599, %v1599
          %v1632 = vpack.c.b16 %v1600, %v1600
          %v1633 = vpack.c.b16 %v1601, %v1601
          %v1634 = vpack.c.b16 %v1602, %v1602
          %v1635 = vpack.c.b16 %v1603, %v1603
          %v1636 = vpack.c.b16 %v1604, %v1604
          %v1637 = vpack.c.b16 %v1605, %v1605
          %v1638 = vpack.c.b16 %v1606, %v1606
          %v1639 = vpack.c.b16 %v1607, %v1607
          %v1640 = vpack.c.b16 %v1608, %v1608
          %v1641 = vpack.c.b16 %v1609, %v1609
          %v1642 = vpack.c.b16 %v1610, %v1610
          %v1643 = vpack.c.b16 %v1611, %v1611
          %v1644 = vpack.c.b16 %v1612, %v1612
          %v1645 = vpack.c.b16 %v1613, %v1613
          %v1646 = vpack.c.b16 %v1614, %v1614
          %v1647 = vpack.c.b16 %v1615, %v1615
          %v1648 = vpack.c.b16 %v1616, %v1616
          %v1649 = vpack.c.b16 %v1617, %v1617
          %v1650 = vpack.c.b16 %v1618, %v1618
          %v1651 = vpack.c.b16 %v1619, %v1619
          %v1652 = vpack.c.b16 %v1620, %v1620
          %v1653 = vpack.c.b16 %v1621, %v1621
          %v1654 = vpack.c.b16 %v1622, %v1622
          %v1655 = vpack.c.b16 %v1623, %v1623
          %v1656 = vpack.c.b16 %v1624, %v1624
          %v1657 = vpack.c.b16 %v1625, %v1625
          %v1658 = vpack.c.b16 %v1626, %v1626
          %1691 = vst [vmem:[%s448] sm:$0xf] %v1627
          %1692 = vst [vmem:[%s448 + $0x4] sm:$0xf] %v1628
          %1693 = vst [vmem:[%s448 + $0x8] sm:$0xf] %v1629
          %1694 = vst [vmem:[%s448 + $0xc] sm:$0xf] %v1630
          %1695 = vst [vmem:[%s448 + $0x10] sm:$0xf] %v1631
          %1696 = vst [vmem:[%s448 + $0x14] sm:$0xf] %v1632
          %1697 = vst [vmem:[%s448 + $0x18] sm:$0xf] %v1633
          %1698 = vst [vmem:[%s448 + $0x1c] sm:$0xf] %v1634
          %1699 = vst [vmem:[%s448 + $0x20] sm:$0xf] %v1635
          %1700 = vst [vmem:[%s448 + $0x24] sm:$0xf] %v1636
          %1701 = vst [vmem:[%s448 + $0x28] sm:$0xf] %v1637
          %1702 = vst [vmem:[%s448 + $0x2c] sm:$0xf] %v1638
          %1703 = vst [vmem:[%s448 + $0x30] sm:$0xf] %v1639
          %1704 = vst [vmem:[%s448 + $0x34] sm:$0xf] %v1640
          %1705 = vst [vmem:[%s448 + $0x38] sm:$0xf] %v1641
          %1706 = vst [vmem:[%s448 + $0x3c] sm:$0xf] %v1642
          %1707 = vst [vmem:[%s448 + $0x40] sm:$0xf] %v1643
          %1708 = vst [vmem:[%s448 + $0x44] sm:$0xf] %v1644
          %1709 = vst [vmem:[%s448 + $0x48] sm:$0xf] %v1645
          %1710 = vst [vmem:[%s448 + $0x4c] sm:$0xf] %v1646
          %1711 = vst [vmem:[%s448 + $0x50] sm:$0xf] %v1647
          %1712 = vst [vmem:[%s448 + $0x54] sm:$0xf] %v1648
          %1713 = vst [vmem:[%s448 + $0x58] sm:$0xf] %v1649
          %1714 = vst [vmem:[%s448 + $0x5c] sm:$0xf] %v1650
          %1715 = vst [vmem:[%s448 + $0x60] sm:$0xf] %v1651
          %1716 = vst [vmem:[%s448 + $0x64] sm:$0xf] %v1652
          %1717 = vst [vmem:[%s448 + $0x68] sm:$0xf] %v1653
          %1718 = vst [vmem:[%s448 + $0x6c] sm:$0xf] %v1654
          %1719 = vst [vmem:[%s448 + $0x70] sm:$0xf] %v1655
          %1720 = vst [vmem:[%s448 + $0x74] sm:$0xf] %v1656
          %1721 = vst [vmem:[%s448 + $0x78] sm:$0xf] %v1657
          %1722 = vst [vmem:[%s448 + $0x7c] sm:$0xf] %v1658
        $region70: #{inception_b_forward.7} parent=57 // pred_fallthru
          _
        %s1723 = smul.u32 32, %s20
        %p1724 = scmp.lt.s32.totalorder %s1723, 63
        %s1725 = scalar_select %p1724, %s1723, 63
        %p1726 = scmp.lt.s32.totalorder %s21, 0
        %s1727 = scalar_select %p1726, %s21, 0
        %s1728 = sadd.s32 %s1727, %s1725
        %s1729 = smul.addr %s1728, 4
        %s1730 = scalar_lea.vmem %s4, %s1729
        // Predicated region
        $region71: #{inception_b_forward.7} parent=57 // pred_check
          %p1731 = pneg %p162
        $region72: #{inception_b_forward.7} parent=57 // pred_check_branch
          %1733 = sbr.rel (%p1731) target = $region74
        $region73: #{inception_b_forward.7} parent=57 // pred_region
          %s1734 = smul.u32 32, %s20
        $region74: #{inception_b_forward.7} parent=57 // pred_fallthru
          _
      $region58: #{inception_b_forward.7} parent=5 // pred_fallthru
        _
      %p1735 = scmp.le.s32.totalorder 2, %s10
      // Predicated region
      $region75: #{inception_b_forward.7} parent=5 // pred_check
        %p1736 = pneg %p1735
      $region76: #{inception_b_forward.7} parent=5 // pred_check_branch
        %1738 = sbr.rel (%p1736) target = $region78
      $region77: #{inception_b_forward.7} parent=5 // pred_region
        %s1739 = ssub.s32 %s10, 2
        // Predicated region
        $region79: #{inception_b_forward.7} parent=77 // pred_check
          %p1740 = pneg %p168
        $region80: #{inception_b_forward.7} parent=77 // pred_check_branch
          %1742 = sbr.rel (%p1740) target = $region82
        $region81: #{inception_b_forward.7} parent=77 // pred_region
          %s1743 = smul.u32 32, %s23
          %p1744 = scmp.lt.s32.totalorder %s1743, 63
          %s1745 = scalar_select %p1744, %s1743, 63
          %p1746 = scmp.lt.s32.totalorder %s24, 0
          %s1747 = scalar_select %p1746, %s24, 0
          %s1748 = sadd.s32 %s1747, %s1745
          %s1749 = smul.addr %s1748, 4
          %s1750 = scalar_lea.vmem %s4, %s1749
        $region82: #{inception_b_forward.7} parent=77 // pred_fallthru
          _
      $region78: #{inception_b_forward.7} parent=5 // pred_fallthru
        _
    $region6: #{inception_b_forward.7} parent=1 // loop_footer
      %s14 = sadd.s32 1, %s10
    $region7: #{inception_b_forward.7} parent=1 // loop_footer_branch
      %9 = sbr.rel target = $region3
    $region8: #{inception_b_forward.7} parent=1 // loop_exit
      _

// kernel: inception_b_forward.8
$region0: #{inception_b_forward.8}
  #allocation0 [shape = 'u32[]', space=smem, size = 0x4, offset = 0x4, fixed_abs, tag = 'smem constant byte address 0x4 - core index']
  #allocation1 [shape = 'u32[144,128]{1,0:T(1,128)}', space=vmem, size = 0x12000, scoped, tag = 'internal scratch']
  #allocation2 [shape = 'f32[56,128]{1,0:T(8,128)}', space=vmem, size = 0x7000, scoped, tag = 'scratch operand']
  %s0 = inlined_call_operand.vmem [shape: bf16[112,1024], index: 0, kind: input, shape index: {}]
  %s1 = inlined_call_operand.vmem [shape: bf16[1024,128], index: 1, kind: input, shape index: {}]
  %s2 = inlined_call_operand.vmem [shape: f32[1,128], index: 2, kind: input, shape index: {}]
  %s3 = inlined_call_operand.vmem [shape: f32[1,128], index: 3, kind: input, shape index: {}]
  %s4 = inlined_call_operand.vmem [shape: f32[112,128], index: 4, kind: output, shape index: {}]
  %s5 = sld [smem:[#allocation0]]
  $region80: #{inception_b_forward.8} parent=0
    _
  %s7 = ssub.s32 1, %s5
  %s8 = scalar_select 0, %s7, %s5
  $region1: #{inception_b_forward.8} parent=0
    #allocation3 [shape = 'u8[114688]{0}', space=vmem, size = 0x1c000, scoped, tag = 'input window, operand 0']
    loop: start=0, step=1, limit=6
    $region2: #{inception_b_forward.8} parent=1 // loop_pre_header
      _
    $region3: #{inception_b_forward.8} parent=1 // loop_header
      %s10 = sphi 0, %s14
      %p11 = scmp.ge.s32.totalorder %s10, 6
      %s17 = sphi 0, %s36
      %s18 = sphi 0, %s32
      %s19 = sphi 0, %s28
      %s20 = sphi 0, %s17
      %s21 = sphi 0, %s18
      %s22 = sphi 0, %s19
      %s23 = sphi 0, %s20
      %s24 = sphi 0, %s21
      %s25 = sphi 0, %s22
      %s41 = sphi 0, %s43
      %s44 = sphi 0, %s41
      %s45 = sphi 0, %s44
      %s61 = sphi 0, %s45
      %s69 = sphi 0, %s71
      %s72 = sphi 0, %s69
      %s73 = sphi 0, %s72
      %s89 = sphi 0, %s73
      %s95 = sphi 0, %s97
      %s98 = sphi 0, %s95
      %s99 = sphi 0, %s98
      %s115 = sphi 0, %s99
      %s121 = sphi 0, %s123
      %s124 = sphi 0, %s121
      %s125 = sphi 0, %s124
      %s141 = sphi 0, %s125
      %s149 = sphi 0, %s151
      %s152 = sphi 0, %s149
      %s153 = sphi 0, %s152
      %s169 = sphi 0, %s153
    $region4: #{inception_b_forward.8} parent=1 // loop_header_branch
      %13 = sbr.rel (%p11) target = $region8
    $region5: #{inception_b_forward.8} parent=1 // loop_body
      %s15 = ssub.s32 %s10, 1
      %s16 = ssub.s32 %s10, 2
      %s26 = sadd.s32 1, %s19
      %p27 = scmp.ge.s32.totalorder %s26, 2
      %s28 = scalar_select %p27, 0, %s26
      %s29 = sadd.s32 1, %s18
      %s30 = scalar_select %p27, %s29, %s18
      %p31 = scmp.ge.s32.totalorder %s30, 1
      %s32 = scalar_select %p31, 0, %s30
      %s33 = sadd.s32 1, %s17
      %s34 = scalar_select %p31, %s33, %s17
      %p35 = scmp.ge.s32.totalorder %s34, 2
      %s36 = scalar_select %p35, 0, %s34
      %s37 = ssub.s32 %s17, %s36
      %s38 = ssub.s32 %s19, %s28
      %s39 = sor.u32 %s37, %s38
      %p40 = scmp.eq.s32.totalorder %s39, 0
      %s42 = sadd.s32 %s41, 1
      %s43 = scalar_select %p40, %s41, %s42
      %p46 = pneg %p40
      %p47 = scmp.eq.s32.totalorder %s10, 3
      %p48 = por %p46, %p47
      %p49 = scmp.ne.s32.totalorder %s41, %s44
      %p50 = scmp.eq.s32.totalorder %s10, 0
      %p51 = por %p49, %p50
      %p52 = scmp.ne.s32.totalorder %s41, %s44
      %p53 = scmp.eq.s32.totalorder %s15, 3
      %p54 = por %p52, %p53
      %p55 = scmp.ne.s32.totalorder %s44, %s45
      %p56 = scmp.eq.s32.totalorder %s15, 0
      %p57 = por %p55, %p56
      %p58 = scmp.ne.s32.totalorder %s44, %s45
      %p59 = scmp.eq.s32.totalorder %s16, 3
      %p60 = por %p58, %p59
      %p62 = scmp.ne.s32.totalorder %s45, %s61
      %p63 = scmp.eq.s32.totalorder %s16, 0
      %p64 = por %p62, %p63
      %s65 = ssub.s32 %s19, %s28
      %s66 = ssub.s32 %s18, %s32
      %s67 = sor.u32 %s65, %s66
      %p68 = scmp.eq.s32.totalorder %s67, 0
      %s70 = sadd.s32 %s69, 1
      %s71 = scalar_select %p68, %s69, %s70
      %p74 = pneg %p68
      %p75 = scmp.eq.s32.totalorder %s10, 3
      %p76 = por %p74, %p75
      %p77 = scmp.ne.s32.totalorder %s69, %s72
      %p78 = scmp.eq.s32.totalorder %s10, 0
      %p79 = por %p77, %p78
      %p80 = scmp.ne.s32.totalorder %s69, %s72
      %p81 = scmp.eq.s32.totalorder %s15, 3
      %p82 = por %p80, %p81
      %p83 = scmp.ne.s32.totalorder %s72, %s73
      %p84 = scmp.eq.s32.totalorder %s15, 0
      %p85 = por %p83, %p84
      %p86 = scmp.ne.s32.totalorder %s72, %s73
      %p87 = scmp.eq.s32.totalorder %s16, 3
      %p88 = por %p86, %p87
      %p90 = scmp.ne.s32.totalorder %s73, %s89
      %p91 = scmp.eq.s32.totalorder %s16, 0
      %p92 = por %p90, %p91
      %s93 = ssub.s32 %s18, %s32
      %p94 = scmp.eq.s32.totalorder %s93, 0
      %s96 = sadd.s32 %s95, 1
      %s97 = scalar_select %p94, %s95, %s96
      %p100 = pneg %p94
      %p101 = scmp.eq.s32.totalorder %s10, 3
      %p102 = por %p100, %p101
      %p103 = scmp.ne.s32.totalorder %s95, %s98
      %p104 = scmp.eq.s32.totalorder %s10, 0
      %p105 = por %p103, %p104
      %p106 = scmp.ne.s32.totalorder %s95, %s98
      %p107 = scmp.eq.s32.totalorder %s15, 3
      %p108 = por %p106, %p107
      %p109 = scmp.ne.s32.totalorder %s98, %s99
      %p110 = scmp.eq.s32.totalorder %s15, 0
      %p111 = por %p109, %p110
      %p112 = scmp.ne.s32.totalorder %s98, %s99
      %p113 = scmp.eq.s32.totalorder %s16, 3
      %p114 = por %p112, %p113
      %p116 = scmp.ne.s32.totalorder %s99, %s115
      %p117 = scmp.eq.s32.totalorder %s16, 0
      %p118 = por %p116, %p117
      %s119 = ssub.s32 %s18, %s32
      %p120 = scmp.eq.s32.totalorder %s119, 0
      %s122 = sadd.s32 %s121, 1
      %s123 = scalar_select %p120, %s121, %s122
      %p126 = pneg %p120
      %p127 = scmp.eq.s32.totalorder %s10, 3
      %p128 = por %p126, %p127
      %p129 = scmp.ne.s32.totalorder %s121, %s124
      %p130 = scmp.eq.s32.totalorder %s10, 0
      %p131 = por %p129, %p130
      %p132 = scmp.ne.s32.totalorder %s121, %s124
      %p133 = scmp.eq.s32.totalorder %s15, 3
      %p134 = por %p132, %p133
      %p135 = scmp.ne.s32.totalorder %s124, %s125
      %p136 = scmp.eq.s32.totalorder %s15, 0
      %p137 = por %p135, %p136
      %p138 = scmp.ne.s32.totalorder %s124, %s125
      %p139 = scmp.eq.s32.totalorder %s16, 3
      %p140 = por %p138, %p139
      %p142 = scmp.ne.s32.totalorder %s125, %s141
      %p143 = scmp.eq.s32.totalorder %s16, 0
      %p144 = por %p142, %p143
      %s145 = ssub.s32 %s17, %s36
      %s146 = ssub.s32 %s18, %s32
      %s147 = sor.u32 %s145, %s146
      %p148 = scmp.eq.s32.totalorder %s147, 0
      %s150 = sadd.s32 %s149, 1
      %s151 = scalar_select %p148, %s149, %s150
      %p154 = pneg %p148
      %p155 = scmp.eq.s32.totalorder %s10, 3
      %p156 = por %p154, %p155
      %p157 = scmp.ne.s32.totalorder %s149, %s152
      %p158 = scmp.eq.s32.totalorder %s10, 0
      %p159 = por %p157, %p158
      %p160 = scmp.ne.s32.totalorder %s149, %s152
      %p161 = scmp.eq.s32.totalorder %s15, 3
      %p162 = por %p160, %p161
      %p163 = scmp.ne.s32.totalorder %s152, %s153
      %p164 = scmp.eq.s32.totalorder %s15, 0
      %p165 = por %p163, %p164
      %p166 = scmp.ne.s32.totalorder %s152, %s153
      %p167 = scmp.eq.s32.totalorder %s16, 3
      %p168 = por %p166, %p167
      %p170 = scmp.ne.s32.totalorder %s153, %s169
      %p171 = scmp.eq.s32.totalorder %s16, 0
      %p172 = por %p170, %p171
      %p173 = scmp.le.s32.totalorder 1, %s10
      %p174 = scmp.lt.s32.totalorder %s10, 5
      %p175 = pnand %p173, %p174
      %p176 = pneg %p175
      // Predicated region
      $region9: #{inception_b_forward.8} parent=5 // pred_check
        _
      $region10: #{inception_b_forward.8} parent=5 // pred_check_branch
        %178 = sbr.rel (%p175) target = $region12
      $region11: #{inception_b_forward.8} parent=5 // pred_region
        %s179 = ssub.s32 %s10, 1
        // Predicated region
        $region13: #{inception_b_forward.8} parent=11 // pred_check
          %p180 = pneg %p111
        $region14: #{inception_b_forward.8} parent=11 // pred_check_branch
          %182 = sbr.rel (%p180) target = $region16
        $region15: #{inception_b_forward.8} parent=11 // pred_region
          %p183 = scmp.lt.s32.totalorder %s21, 0
          %s184 = scalar_select %p183, %s21, 0
          %s185 = scalar_lea.vmem %s2, %s184
        $region16: #{inception_b_forward.8} parent=11 // pred_fallthru
          _
        // Predicated region
        $region17: #{inception_b_forward.8} parent=11 // pred_check
          %p186 = pneg %p137
        $region18: #{inception_b_forward.8} parent=11 // pred_check_branch
          %188 = sbr.rel (%p186) target = $region20
        $region19: #{inception_b_forward.8} parent=11 // pred_region
          %p189 = scmp.lt.s32.totalorder %s21, 0
          %s190 = scalar_select %p189, %s21, 0
          %s191 = scalar_lea.vmem %s3, %s190
        $region20: #{inception_b_forward.8} parent=11 // pred_fallthru
          _
      $region12: #{inception_b_forward.8} parent=5 // pred_fallthru
        _
      %p192 = scmp.lt.s32.totalorder %s10, 4
      // Predicated region
      $region21: #{inception_b_forward.8} parent=5 // pred_check
        %p193 = pneg %p192
      $region22: #{inception_b_forward.8} parent=5 // pred_check_branch
        %195 = sbr.rel (%p193) target = $region24
      $region23: #{inception_b_forward.8} parent=5 // pred_region
        // Predicated region
        $region25: #{inception_b_forward.8} parent=23 // pred_check
          %p196 = pneg %p51
        $region26: #{inception_b_forward.8} parent=23 // pred_check_branch
          %198 = sbr.rel (%p196) target = $region28
        $region27: #{inception_b_forward.8} parent=23 // pred_region
          %s199 = sand.u32 %s41, 1
          %s200 = sand.u32 %s41, 1
          %s201 = smul.addr %s200, 112
          %s202 = scalar_lea.vmem [#allocation3], %s201
          %s203 = smul.u32 7, %s17
          %s204 = smul.u32 4, %s19
          %s205 = smul.addr %s203, 8
          %s206 = sadd.s32 %s204, %s205
          %s207 = smul.addr %s206, 4
          %s208 = scalar_lea.vmem %s0, %s207
          // Predicated region
          $region29: #{inception_b_forward.8} parent=27 // pred_check
            _
          $region30: #{inception_b_forward.8} parent=27 // pred_check_branch
            %210 = sbr.rel (0) target = $region32
          $region31: #{inception_b_forward.8} parent=27 // pred_region
            // Predicated region
            $region33: #{inception_b_forward.8} parent=31 // pred_check
              _
            $region34: #{inception_b_forward.8} parent=31 // pred_check_branch
              %212 = sbr.rel (0) target = $region36
            $region35: #{inception_b_forward.8} parent=31 // pred_region
              loop: start=0, step=1, limit=1
              $region37: #{inception_b_forward.8} parent=35 // loop_pre_header
                _
              $region38: #{inception_b_forward.8} parent=35 // loop_header
                %s214 = sphi 0, %s218
                %p215 = scmp.ge.s32.totalorder %s214, 1
                %s219 = sphi %s208, %s208
                %s220 = sphi %s202, %s202
              $region39: #{inception_b_forward.8} parent=35 // loop_header_branch
                %217 = sbr.rel (%p215) target = $region43
              $region40: #{inception_b_forward.8} parent=35 // loop_body
                %v221 = vld [vmem:[%s219] sm:$0xff]
                %222 = vst [vmem:[%s220] sm:$0xff] %v221
                %v223 = vld [vmem:[%s219 + $0x8] sm:$0xff]
                %224 = vst [vmem:[%s220 + $0x8] sm:$0xff] %v223
                %v225 = vld [vmem:[%s219 + $0x20] sm:$0xff]
                %226 = vst [vmem:[%s220 + $0x10] sm:$0xff] %v225
                %v227 = vld [vmem:[%s219 + $0x28] sm:$0xff]
                %228 = vst [vmem:[%s220 + $0x18] sm:$0xff] %v227
                %v229 = vld [vmem:[%s219 + $0x40] sm:$0xff]
                %230 = vst [vmem:[%s220 + $0x20] sm:$0xff] %v229
                %v231 = vld [vmem:[%s219 + $0x48] sm:$0xff]
                %232 = vst [vmem:[%s220 + $0x28] sm:$0xff] %v231
                %v233 = vld [vmem:[%s219 + $0x60] sm:$0xff]
                %234 = vst [vmem:[%s220 + $0x30] sm:$0xff] %v233
                %v235 = vld [vmem:[%s219 + $0x68] sm:$0xff]
                %236 = vst [vmem:[%s220 + $0x38] sm:$0xff] %v235
                %v237 = vld [vmem:[%s219 + $0x80] sm:$0xff]
                %238 = vst [vmem:[%s220 + $0x40] sm:$0xff] %v237
                %v239 = vld [vmem:[%s219 + $0x88] sm:$0xff]
                %240 = vst [vmem:[%s220 + $0x48] sm:$0xff] %v239
                %v241 = vld [vmem:[%s219 + $0xa0] sm:$0xff]
                %242 = vst [vmem:[%s220 + $0x50] sm:$0xff] %v241
                %v243 = vld [vmem:[%s219 + $0xa8] sm:$0xff]
                %244 = vst [vmem:[%s220 + $0x58] sm:$0xff] %v243
                %v245 = vld [vmem:[%s219 + $0xc0] sm:$0xff]
                %246 = vst [vmem:[%s220 + $0x60] sm:$0xff] %v245
                %v247 = vld [vmem:[%s219 + $0xc8] sm:$0xff]
                %248 = vst [vmem:[%s220 + $0x68] sm:$0xff] %v247
              $region41: #{inception_b_forward.8} parent=35 // loop_footer
                %s218 = sadd.s32 1, %s214
              $region42: #{inception_b_forward.8} parent=35 // loop_footer_branch
                %213 = sbr.rel target = $region38
              $region43: #{inception_b_forward.8} parent=35 // loop_exit
                _
            $region36: #{inception_b_forward.8} parent=31 // pred_fallthru
              _
            // Predicated region
            $region44: #{inception_b_forward.8} parent=31 // pred_check
              _
            $region45: #{inception_b_forward.8} parent=31 // pred_check_branch
              %250 = sbr.rel target = $region47
            $region46: #{inception_b_forward.8} parent=31 // pred_region
              _
            $region47: #{inception_b_forward.8} parent=31 // pred_fallthru
              _
          $region32: #{inception_b_forward.8} parent=27 // pred_fallthru
            _
          %251 = vnop
        $region28: #{inception_b_forward.8} parent=23 // pred_fallthru
          _
        // Predicated region
        $region48: #{inception_b_forward.8} parent=23 // pred_check
          %p252 = pneg %p79
        $region49: #{inception_b_forward.8} parent=23 // pred_check_branch
          %254 = sbr.rel (%p252) target = $region51
        $region50: #{inception_b_forward.8} parent=23 // pred_region
          %s255 = smul.u32 64, %s19
          %p256 = scmp.lt.s32.totalorder %s255, 127
          %s257 = scalar_select %p256, %s255, 127
          %p258 = scmp.lt.s32.totalorder %s18, 0
          %s259 = scalar_select %p258, %s18, 0
          %s260 = sadd.s32 %s259, %s257
          %s261 = smul.addr %s260, 4
          %s262 = scalar_lea.vmem %s1, %s261
          %s263 = smul.u32 64, %s19
        $region51: #{inception_b_forward.8} parent=23 // pred_fallthru
          _
      $region24: #{inception_b_forward.8} parent=5 // pred_fallthru
        _
      %p264 = scmp.le.s32.totalorder 1, %s10
      %p265 = scmp.lt.s32.totalorder %s10, 5
      %p266 = pnand %p264, %p265
      %p267 = pneg %p266
      // Predicated region
      $region52: #{inception_b_forward.8} parent=5 // pred_check
        _
      $region53: #{inception_b_forward.8} parent=5 // pred_check_branch
        %269 = sbr.rel (%p266) target = $region55
      $region54: #{inception_b_forward.8} parent=5 // pred_region
        %s270 = ssub.s32 %s10, 1
        %s271 = sand.u32 %s44, 1
        %s272 = sand.u32 %s44, 1
        %s273 = smul.addr %s272, 112
        %s274 = scalar_lea.vmem [#allocation3], %s273
        // Predicated region
        $region56: #{inception_b_forward.8} parent=54 // pred_check
          %p275 = pneg %p57
        $region57: #{inception_b_forward.8} parent=54 // pred_check_branch
          %277 = sbr.rel (%p275) target = $region59
        $region58: #{inception_b_forward.8} parent=54 // pred_region
          _
        $region59: #{inception_b_forward.8} parent=54 // pred_fallthru
          _
        %s278 = sand.u32 %s44, 1
        %s279 = sand.u32 %s44, 1
        %s280 = smul.addr %s279, 112
        %s281 = scalar_lea.vmem [#allocation3], %s280
        %p282 = pneg %p57
        %p283 = pneg %p54
        %s284 = smul.u32 64, %s22
        %p285 = scmp.lt.s32.totalorder %s284, 127
        %s286 = scalar_select %p285, %s284, 127
        %p287 = scmp.lt.s32.totalorder %s21, 0
        %s288 = scalar_select %p287, %s21, 0
        %s289 = sadd.s32 %s288, %s286
        %s290 = smul.addr %s289, 4
        %s291 = scalar_lea.vmem %s1, %s290
        %p292 = pneg %p85
        %p293 = pneg %p82
        %p294 = scmp.lt.s32.totalorder %s21, 0
        %s295 = scalar_select %p294, %s21, 0
        %s296 = scalar_lea.vmem %s2, %s295
        %p297 = pneg %p111
        %p298 = pneg %p108
        %p299 = scmp.lt.s32.totalorder %s21, 0
        %s300 = scalar_select %p299, %s21, 0
        %s301 = scalar_lea.vmem %s3, %s300
        %p302 = pneg %p137
        %p303 = pneg %p134
        %p304 = pneg %p165
        %p305 = pneg %p162
        %s306 = smul.u32 7, %s20
        %p307 = scmp.lt.s32.totalorder %s306, 13
        %s308 = scalar_select %p307, %s306, 13
        %p309 = scmp.lt.s32.totalorder %s21, 0
        %s310 = scalar_select %p309, %s21, 0
        %s311 = sadd.s32 %s310, %s308
        %s312 = smul.addr %s311, 8
        %s313 = scalar_lea.vmem %s4, %s312
        %s314 = smul.u32 7, %s20
        %s315 = smul.u32 4, %s22
        %s316 = smul.u32 64, %s22
        %p317 = scmp.lt.s32.totalorder %s316, 127
        %s318 = scalar_select %p317, %s316, 127
        %p319 = scmp.lt.s32.totalorder %s21, 0
        %s320 = scalar_select %p319, %s21, 0
        %s321 = sadd.s32 %s320, %s318
        %s322 = smul.addr %s321, 4
        %s323 = scalar_lea.vmem %s1, %s322
        %s324 = smul.u32 64, %s22
        %p325 = scmp.lt.s32.totalorder %s21, 0
        %s326 = scalar_select %p325, %s21, 0
        %s327 = scalar_lea.vmem %s2, %s326
        %p328 = scmp.lt.s32.totalorder %s21, 0
        %s329 = scalar_select %p328, %s21, 0
        %s330 = scalar_lea.vmem %s3, %s329
        %s331 = smul.u32 7, %s20
        %p332 = scmp.lt.s32.totalorder %s331, 13
        %s333 = scalar_select %p332, %s331, 13
        %p334 = scmp.lt.s32.totalorder %s21, 0
        %s335 = scalar_select %p334, %s21, 0
        %s336 = sadd.s32 %s335, %s333
        %s337 = smul.addr %s336, 8
        %s338 = scalar_lea.vmem %s4, %s337
        %s339 = smul.u32 7, %s20
        %p341 = scmp.eq.s32.totalorder %s22, 0
        // Predicated region
        $region60: #{inception_b_forward.8} parent=54 // pred_check
          %p342 = pneg %p341
        $region61: #{inception_b_forward.8} parent=54 // pred_check_branch
          %344 = sbr.rel (%p342) target = $region63
        $region62: #{inception_b_forward.8} parent=54 // pred_region
          %345 = vst [vmem:[#allocation2] sm:$0xff] 0.0
          %346 = vst [vmem:[#allocation2 + $0x8] sm:$0xff] 0.0
          %347 = vst [vmem:[#allocation2 + $0x10] sm:$0xff] 0.0
          %348 = vst [vmem:[#allocation2 + $0x18] sm:$0xff] 0.0
          %349 = vst [vmem:[#allocation2 + $0x20] sm:$0xff] 0.0
          %350 = vst [vmem:[#allocation2 + $0x28] sm:$0xff] 0.0
          %351 = vst [vmem:[#allocation2 + $0x30] sm:$0xff] 0.0
        $region63: #{inception_b_forward.8} parent=54 // pred_fallthru
          _
        %v352 = vld [vmem:[#allocation2] sm:$0xff]
        %v353 = vld [vmem:[#allocation2 + $0x8] sm:$0xff]
        %v354 = vld [vmem:[#allocation2 + $0x10] sm:$0xff]
        %v355 = vld [vmem:[#allocation2 + $0x18] sm:$0xff]
        %v356 = vld [vmem:[#allocation2 + $0x20] sm:$0xff]
        %v357 = vld [vmem:[#allocation2 + $0x28] sm:$0xff]
        %v358 = vld [vmem:[#allocation2 + $0x30] sm:$0xff]
        %v359 = vld [vmem:[%s274] sm:$0xff]
        %v360 = vld [vmem:[%s274 + $0x8] sm:$0xff]
        %v361 = vld [vmem:[%s274 + $0x10] sm:$0xff]
        %v362 = vld [vmem:[%s274 + $0x18] sm:$0xff]
        %v363 = vld [vmem:[%s274 + $0x20] sm:$0xff]
        %v364 = vld [vmem:[%s274 + $0x28] sm:$0xff]
        %v365 = vld [vmem:[%s274 + $0x30] sm:$0xff]
        %v366 = vld [vmem:[%s274 + $0x38] sm:$0xff]
        %v367 = vld [vmem:[%s274 + $0x40] sm:$0xff]
        %v368 = vld [vmem:[%s274 + $0x48] sm:$0xff]
        %v369 = vld [vmem:[%s274 + $0x50] sm:$0xff]
        %v370 = vld [vmem:[%s274 + $0x58] sm:$0xff]
        %v371 = vld [vmem:[%s274 + $0x60] sm:$0xff]
        %v372 = vld [vmem:[%s274 + $0x68] sm:$0xff]
        %v373 = vld [vmem:[%s323] sm:$0xf]
        %v374 = vld [vmem:[%s323 + $0x4] sm:$0xf]
        %v375 = vld [vmem:[%s323 + $0x8] sm:$0xf]
        %v376 = vld [vmem:[%s323 + $0xc] sm:$0xf]
        %v377 = vld [vmem:[%s323 + $0x10] sm:$0xf]
        %v378 = vld [vmem:[%s323 + $0x14] sm:$0xf]
        %v379 = vld [vmem:[%s323 + $0x18] sm:$0xf]
        %v380 = vld [vmem:[%s323 + $0x1c] sm:$0xf]
        %v381 = vld [vmem:[%s323 + $0x20] sm:$0xf]
        %v382 = vld [vmem:[%s323 + $0x24] sm:$0xf]
        %v383 = vld [vmem:[%s323 + $0x28] sm:$0xf]
        %v384 = vld [vmem:[%s323 + $0x2c] sm:$0xf]
        %v385 = vld [vmem:[%s323 + $0x30] sm:$0xf]
        %v386 = vld [vmem:[%s323 + $0x34] sm:$0xf]
        %v387 = vld [vmem:[%s323 + $0x38] sm:$0xf]
        %v388 = vld [vmem:[%s323 + $0x3c] sm:$0xf]
        %v389 = vld [vmem:[%s323 + $0x40] sm:$0xf]
        %v390 = vld [vmem:[%s323 + $0x44] sm:$0xf]
        %v391 = vld [vmem:[%s323 + $0x48] sm:$0xf]
        %v392 = vld [vmem:[%s323 + $0x4c] sm:$0xf]
        %v393 = vld [vmem:[%s323 + $0x50] sm:$0xf]
        %v394 = vld [vmem:[%s323 + $0x54] sm:$0xf]
        %v395 = vld [vmem:[%s323 + $0x58] sm:$0xf]
        %v396 = vld [vmem:[%s323 + $0x5c] sm:$0xf]
        %v397 = vld [vmem:[%s323 + $0x60] sm:$0xf]
        %v398 = vld [vmem:[%s323 + $0x64] sm:$0xf]
        %v399 = vld [vmem:[%s323 + $0x68] sm:$0xf]
        %v400 = vld [vmem:[%s323 + $0x6c] sm:$0xf]
        %v401 = vld [vmem:[%s323 + $0x70] sm:$0xf]
        %v402 = vld [vmem:[%s323 + $0x74] sm:$0xf]
        %v403 = vld [vmem:[%s323 + $0x78] sm:$0xf]
        %v404 = vld [vmem:[%s323 + $0x7c] sm:$0xf]
        %v405 = vld [vmem:[%s323 + $0x80] sm:$0xf]
        %v406 = vld [vmem:[%s323 + $0x84] sm:$0xf]
        %v407 = vld [vmem:[%s323 + $0x88] sm:$0xf]
        %v408 = vld [vmem:[%s323 + $0x8c] sm:$0xf]
        %v409 = vld [vmem:[%s323 + $0x90] sm:$0xf]
        %v410 = vld [vmem:[%s323 + $0x94] sm:$0xf]
        %v411 = vld [vmem:[%s323 + $0x98] sm:$0xf]
        %v412 = vld [vmem:[%s323 + $0x9c] sm:$0xf]
        %v413 = vld [vmem:[%s323 + $0xa0] sm:$0xf]
        %v414 = vld [vmem:[%s323 + $0xa4] sm:$0xf]
        %v415 = vld [vmem:[%s323 + $0xa8] sm:$0xf]
        %v416 = vld [vmem:[%s323 + $0xac] sm:$0xf]
        %v417 = vld [vmem:[%s323 + $0xb0] sm:$0xf]
        %v418 = vld [vmem:[%s323 + $0xb4] sm:$0xf]
        %v419 = vld [vmem:[%s323 + $0xb8] sm:$0xf]
        %v420 = vld [vmem:[%s323 + $0xbc] sm:$0xf]
        %v421 = vld [vmem:[%s323 + $0xc0] sm:$0xf]
        %v422 = vld [vmem:[%s323 + $0xc4] sm:$0xf]
        %v423 = vld [vmem:[%s323 + $0xc8] sm:$0xf]
        %v424 = vld [vmem:[%s323 + $0xcc] sm:$0xf]
        %v425 = vld [vmem:[%s323 + $0xd0] sm:$0xf]
        %v426 = vld [vmem:[%s323 + $0xd4] sm:$0xf]
        %v427 = vld [vmem:[%s323 + $0xd8] sm:$0xf]
        %v428 = vld [vmem:[%s323 + $0xdc] sm:$0xf]
        %v429 = vld [vmem:[%s323 + $0xe0] sm:$0xf]
        %v430 = vld [vmem:[%s323 + $0xe4] sm:$0xf]
        %v431 = vld [vmem:[%s323 + $0xe8] sm:$0xf]
        %v432 = vld [vmem:[%s323 + $0xec] sm:$0xf]
        %v433 = vld [vmem:[%s323 + $0xf0] sm:$0xf]
        %v434 = vld [vmem:[%s323 + $0xf4] sm:$0xf]
        %v435 = vld [vmem:[%s323 + $0xf8] sm:$0xf]
        %v436 = vld [vmem:[%s323 + $0xfc] sm:$0xf]
        %v451 = vunpack.c.l.b16 %v359
        %v452 = vunpack.c.h.b16 %v359
        %v453 = vunpack.c.l.b16 %v360
        %v454 = vunpack.c.h.b16 %v360
        %v455 = vunpack.c.l.b16 %v361
        %v456 = vunpack.c.h.b16 %v361
        %v457 = vunpack.c.l.b16 %v362
        %v458 = vunpack.c.h.b16 %v362
        %v459 = vunpack.c.l.b16 %v363
        %v460 = vunpack.c.h.b16 %v363
        %v461 = vunpack.c.l.b16 %v364
        %v462 = vunpack.c.h.b16 %v364
        %v463 = vunpack.c.l.b16 %v365
        %v464 = vunpack.c.h.b16 %v365
        %v465 = vunpack.c.l.b16 %v366
        %v466 = vunpack.c.h.b16 %v366
        %v467 = vunpack.c.l.b16 %v367
        %v468 = vunpack.c.h.b16 %v367
        %v469 = vunpack.c.l.b16 %v368
        %v470 = vunpack.c.h.b16 %v368
        %v471 = vunpack.c.l.b16 %v369
        %v472 = vunpack.c.h.b16 %v369
        %v473 = vunpack.c.l.b16 %v370
        %v474 = vunpack.c.h.b16 %v370
        %v475 = vunpack.c.l.b16 %v371
        %v476 = vunpack.c.h.b16 %v371
        %v477 = vunpack.c.l.b16 %v372
        %v478 = vunpack.c.h.b16 %v372
        %v479 = vpack.c.b16 %v455, %v451
        %v480 = vpack.c.b16 %v456, %v452
        %v481 = vpack.c.b16 %v457, %v453
        %v482 = vpack.c.b16 %v458, %v454
        %v483 = vpack.c.b16 %v463, %v459
        %v484 = vpack.c.b16 %v464, %v460
        %v485 = vpack.c.b16 %v465, %v461
        %v486 = vpack.c.b16 %v466, %v462
        %v487 = vpack.c.b16 %v471, %v467
        %v488 = vpack.c.b16 %v472, %v468
        %v489 = vpack.c.b16 %v473, %v469
        %v490 = vpack.c.b16 %v474, %v470
        %v491 = vpack.c.b16 %v475, %v475
        %v492 = vpack.c.b16 %v476, %v476
        %v493 = vpack.c.b16 %v477, %v477
        %v494 = vpack.c.b16 %v478, %v478
        %v575 = vunpack.c.l.b16 %v373
        %v576 = vunpack.c.l.b16 %v374
        %v577 = vunpack.c.l.b16 %v375
        %v578 = vunpack.c.l.b16 %v376
        %v579 = vunpack.c.l.b16 %v377
        %v580 = vunpack.c.l.b16 %v378
        %v581 = vunpack.c.l.b16 %v379
        %v582 = vunpack.c.l.b16 %v380
        %v583 = vunpack.c.l.b16 %v381
        %v584 = vunpack.c.l.b16 %v382
        %v585 = vunpack.c.l.b16 %v383
        %v586 = vunpack.c.l.b16 %v384
        %v587 = vunpack.c.l.b16 %v385
        %v588 = vunpack.c.l.b16 %v386
        %v589 = vunpack.c.l.b16 %v387
        %v590 = vunpack.c.l.b16 %v388
        %v591 = vunpack.c.l.b16 %v389
        %v592 = vunpack.c.l.b16 %v390
        %v593 = vunpack.c.l.b16 %v391
        %v594 = vunpack.c.l.b16 %v392
        %v595 = vunpack.c.l.b16 %v393
        %v596 = vunpack.c.l.b16 %v394
        %v597 = vunpack.c.l.b16 %v395
        %v598 = vunpack.c.l.b16 %v396
        %v599 = vunpack.c.l.b16 %v397
        %v600 = vunpack.c.l.b16 %v398
        %v601 = vunpack.c.l.b16 %v399
        %v602 = vunpack.c.l.b16 %v400
        %v603 = vunpack.c.l.b16 %v401
        %v604 = vunpack.c.l.b16 %v402
        %v605 = vunpack.c.l.b16 %v403
        %v606 = vunpack.c.l.b16 %v404
        %v607 = vunpack.c.l.b16 %v405
        %v608 = vunpack.c.l.b16 %v406
        %v609 = vunpack.c.l.b16 %v407
        %v610 = vunpack.c.l.b16 %v408
        %v611 = vunpack.c.l.b16 %v409
        %v612 = vunpack.c.l.b16 %v410
        %v613 = vunpack.c.l.b16 %v411
        %v614 = vunpack.c.l.b16 %v412
        %v615 = vunpack.c.l.b16 %v413
        %v616 = vunpack.c.l.b16 %v414
        %v617 = vunpack.c.l.b16 %v415
        %v618 = vunpack.c.l.b16 %v416
        %v619 = vunpack.c.l.b16 %v417
        %v620 = vunpack.c.l.b16 %v418
        %v621 = vunpack.c.l.b16 %v419
        %v622 = vunpack.c.l.b16 %v420
        %v623 = vunpack.c.l.b16 %v421
        %v624 = vunpack.c.l.b16 %v422
        %v625 = vunpack.c.l.b16 %v423
        %v626 = vunpack.c.l.b16 %v424
        %v627 = vunpack.c.l.b16 %v425
        %v628 = vunpack.c.l.b16 %v426
        %v629 = vunpack.c.l.b16 %v427
        %v630 = vunpack.c.l.b16 %v428
        %v631 = vunpack.c.l.b16 %v429
        %v632 = vunpack.c.l.b16 %v430
        %v633 = vunpack.c.l.b16 %v431
        %v634 = vunpack.c.l.b16 %v432
        %v635 = vunpack.c.l.b16 %v433
        %v636 = vunpack.c.l.b16 %v434
        %v637 = vunpack.c.l.b16 %v435
        %v638 = vunpack.c.l.b16 %v436
        %v639 = vpack.c.b16 %v576, %v575
        %v640 = vpack.c.b16 %v578, %v577
        %v641 = vpack.c.b16 %v580, %v579
        %v642 = vpack.c.b16 %v582, %v581
        %v643 = vpack.c.b16 %v584, %v583
        %v644 = vpack.c.b16 %v586, %v585
        %v645 = vpack.c.b16 %v588, %v587
        %v646 = vpack.c.b16 %v590, %v589
        %v647 = vpack.c.b16 %v592, %v591
        %v648 = vpack.c.b16 %v594, %v593
        %v649 = vpack.c.b16 %v596, %v595
        %v650 = vpack.c.b16 %v598, %v597
        %v651 = vpack.c.b16 %v600, %v599
        %v652 = vpack.c.b16 %v602, %v601
        %v653 = vpack.c.b16 %v604, %v603
        %v654 = vpack.c.b16 %v606, %v605
        %v655 = vpack.c.b16 %v608, %v607
        %v656 = vpack.c.b16 %v610, %v609
        %v657 = vpack.c.b16 %v612, %v611
        %v658 = vpack.c.b16 %v614, %v613
        %v659 = vpack.c.b16 %v616, %v615
        %v660 = vpack.c.b16 %v618, %v617
        %v661 = vpack.c.b16 %v620, %v619
        %v662 = vpack.c.b16 %v622, %v621
        %v663 = vpack.c.b16 %v624, %v623
        %v664 = vpack.c.b16 %v626, %v625
        %v665 = vpack.c.b16 %v628, %v627
        %v666 = vpack.c.b16 %v630, %v629
        %v667 = vpack.c.b16 %v632, %v631
        %v668 = vpack.c.b16 %v634, %v633
        %v669 = vpack.c.b16 %v636, %v635
        %v670 = vpack.c.b16 %v638, %v637
        %703 = vmatprep.subr.bf16.mxu0 0
        %704 = vmatpush1.bf16.msra.mxu0 %v646
        %705 = vmatprep.subr.bf16.mxu0 0
        %706 = vmatpush1.bf16.msra.mxu0 %v645
        %707 = vmatprep.subr.bf16.mxu0 0
        %708 = vmatpush1.bf16.msra.mxu0 %v644
        %709 = vmatprep.subr.bf16.mxu0 0
        %710 = vmatpush1.bf16.msra.mxu0 %v643
        %711 = vmatprep.subr.bf16.mxu0 0
        %712 = vmatpush1.bf16.msra.mxu0 %v642
        %713 = vmatprep.subr.bf16.mxu0 0
        %714 = vmatpush1.bf16.msra.mxu0 %v641
        %715 = vmatprep.subr.bf16.mxu0 0
        %716 = vmatpush1.bf16.msra.mxu0 %v640
        %717 = vmatprep.subr.bf16.mxu0 0
        %718 = vmatpush1.bf16.msra.mxu0 %v639
        %719 = vmatprep.subr.bf16.mxu0 0
        %720 = vmatpush2.bf16.msra.mxu0 %v654
        %721 = vmatprep.subr.bf16.mxu0 0
        %722 = vmatpush2.bf16.msra.mxu0 %v653
        %723 = vmatprep.subr.bf16.mxu0 0
        %724 = vmatpush2.bf16.msra.mxu0 %v652
        %725 = vmatprep.subr.bf16.mxu0 0
        %726 = vmatpush2.bf16.msra.mxu0 %v651
        %727 = vmatprep.subr.bf16.mxu0 0
        %728 = vmatpush2.bf16.msra.mxu0 %v650
        %729 = vmatprep.subr.bf16.mxu0 0
        %730 = vmatpush2.bf16.msra.mxu0 %v649
        %731 = vmatprep.subr.bf16.mxu0 0
        %732 = vmatpush2.bf16.msra.mxu0 %v648
        %733 = vmatprep.subr.bf16.mxu0 0
        %734 = vmatpush2.bf16.msra.mxu0 %v647
        %735 = vmatprep.mubr.bf16.mxu0 %v480
        %736 = vmatmul.mubr.bf16.gmra.mxu0 %v479
        %v737 = vpop.f32.mrf.mxu0
        %v738 = vadd.f32 0.0, %v737
        %v739 = vpop.f32.mrf.mxu0
        %v740 = vpop.f32.mrf.mxu0
        %v741 = vadd.f32 0.0, %v740
        %v742 = vpop.f32.mrf.mxu0
        %743 = vmatprep.mubr.bf16.mxu0 %v484
        %744 = vmatmul.mubr.bf16.gmra.mxu0 %v483
        %v745 = vpop.f32.mrf.mxu0
        %v746 = vadd.f32 0.0, %v745
        %v747 = vpop.f32.mrf.mxu0
        %v748 = vpop.f32.mrf.mxu0
        %v749 = vadd.f32 0.0, %v748
        %v750 = vpop.f32.mrf.mxu0
        %751 = vmatprep.mubr.bf16.mxu0 %v488
        %752 = vmatmul.mubr.bf16.gmra.mxu0 %v487
        %v753 = vpop.f32.mrf.mxu0
        %v754 = vadd.f32 0.0, %v753
        %v755 = vpop.f32.mrf.mxu0
        %v756 = vpop.f32.mrf.mxu0
        %v757 = vadd.f32 0.0, %v756
        %v758 = vpop.f32.mrf.mxu0
        %759 = vmatprep.mubr.bf16.mxu0 %v492
        %760 = vmatmul.mubr.bf16.gmra.mxu0 %v491
        %v761 = vpop.f32.mrf.mxu0
        %v762 = vadd.f32 0.0, %v761
        %v763 = vpop.f32.mrf.mxu0
        %v764 = vpop.f32.mrf.mxu0
        %v765 = vpop.f32.mrf.mxu0
        %766 = vdwg.mxu0
        %767 = vmatprep.subr.bf16.mxu0 0
        %768 = vmatpush1.bf16.msra.mxu0 %v662
        %769 = vmatprep.subr.bf16.mxu0 0
        %770 = vmatpush1.bf16.msra.mxu0 %v661
        %771 = vmatprep.subr.bf16.mxu0 0
        %772 = vmatpush1.bf16.msra.mxu0 %v660
        %773 = vmatprep.subr.bf16.mxu0 0
        %774 = vmatpush1.bf16.msra.mxu0 %v659
        %775 = vmatprep.subr.bf16.mxu0 0
        %776 = vmatpush1.bf16.msra.mxu0 %v658
        %777 = vmatprep.subr.bf16.mxu0 0
        %778 = vmatpush1.bf16.msra.mxu0 %v657
        %779 = vmatprep.subr.bf16.mxu0 0
        %780 = vmatpush1.bf16.msra.mxu0 %v656
        %781 = vmatprep.subr.bf16.mxu0 0
        %782 = vmatpush1.bf16.msra.mxu0 %v655
        %783 = vmatprep.subr.bf16.mxu0 0
        %784 = vmatpush2.bf16.msra.mxu0 %v670
        %785 = vmatprep.subr.bf16.mxu0 0
        %786 = vmatpush2.bf16.msra.mxu0 %v669
        %787 = vmatprep.subr.bf16.mxu0 0
        %788 = vmatpush2.bf16.msra.mxu0 %v668
        %789 = vmatprep.subr.bf16.mxu0 0
        %790 = vmatpush2.bf16.msra.mxu0 %v667
        %791 = vmatprep.subr.bf16.mxu0 0
        %792 = vmatpush2.bf16.msra.mxu0 %v666
        %793 = vmatprep.subr.bf16.mxu0 0
        %794 = vmatpush2.bf16.msra.mxu0 %v665
        %795 = vmatprep.subr.bf16.mxu0 0
        %796 = vmatpush2.bf16.msra.mxu0 %v664
        %797 = vmatprep.subr.bf16.mxu0 0
        %798 = vmatpush2.bf16.msra.mxu0 %v663
        %799 = vmatprep.mubr.bf16.mxu0 %v482
        %800 = vmatmul.mubr.bf16.gmra.mxu0 %v481
        %v801 = vpop.f32.mrf.mxu0
        %v802 = vadd.f32 %v738, %v801
        %v803 = vpop.f32.mrf.mxu0
        %v804 = vpop.f32.mrf.mxu0
        %v805 = vadd.f32 %v741, %v804
        %v806 = vpop.f32.mrf.mxu0
        %807 = vmatprep.mubr.bf16.mxu0 %v486
        %808 = vmatmul.mubr.bf16.gmra.mxu0 %v485
        %v809 = vpop.f32.mrf.mxu0
        %v810 = vadd.f32 %v746, %v809
        %v811 = vpop.f32.mrf.mxu0
        %v812 = vpop.f32.mrf.mxu0
        %v813 = vadd.f32 %v749, %v812
        %v814 = vpop.f32.mrf.mxu0
        %815 = vmatprep.mubr.bf16.mxu0 %v490
        %816 = vmatmul.mubr.bf16.gmra.mxu0 %v489
        %v817 = vpop.f32.mrf.mxu0
        %v818 = vadd.f32 %v754, %v817
        %v819 = vpop.f32.mrf.mxu0
        %v820 = vpop.f32.mrf.mxu0
        %v821 = vadd.f32 %v757, %v820
        %v822 = vpop.f32.mrf.mxu0
        %823 = vmatprep.mubr.bf16.mxu0 %v494
        %824 = vmatmul.mubr.bf16.gmra.mxu0 %v493
        %v825 = vpop.f32.mrf.mxu0
        %v826 = vadd.f32 %v762, %v825
        %v827 = vpop.f32.mrf.mxu0
        %v828 = vpop.f32.mrf.mxu0
        %v829 = vpop.f32.mrf.mxu0
        %830 = vdwg.mxu0
        %v831 = vadd.f32 %v352, %v802
        %v832 = vadd.f32 %v353, %v805
        %v833 = vadd.f32 %v354, %v810
        %v834 = vadd.f32 %v355, %v813
        %v835 = vadd.f32 %v356, %v818
        %v836 = vadd.f32 %v357, %v821
        %v837 = vadd.f32 %v358, %v826
        %838 = vst [vmem:[#allocation2] sm:$0xff] %v831
        %839 = vst [vmem:[#allocation2 + $0x8] sm:$0xff] %v832
        %840 = vst [vmem:[#allocation2 + $0x10] sm:$0xff] %v833
        %841 = vst [vmem:[#allocation2 + $0x18] sm:$0xff] %v834
        %842 = vst [vmem:[#allocation2 + $0x20] sm:$0xff] %v835
        %843 = vst [vmem:[#allocation2 + $0x28] sm:$0xff] %v836
        %844 = vst [vmem:[#allocation2 + $0x30] sm:$0xff] %v837
        %p845 = scmp.eq.s32.totalorder %s22, 1
        // Predicated region
        $region64: #{inception_b_forward.8} parent=54 // pred_check
          %p846 = pneg %p845
        $region65: #{inception_b_forward.8} parent=54 // pred_check_branch
          %848 = sbr.rel (%p846) target = $region67
        $region66: #{inception_b_forward.8} parent=54 // pred_region
          %v849 = vld [vmem:[#allocation2] sm:$0xff]
          %v850 = vld [vmem:[#allocation2 + $0x8] sm:$0xff]
          %v851 = vld [vmem:[#allocation2 + $0x10] sm:$0xff]
          %v852 = vld [vmem:[#allocation2 + $0x18] sm:$0xff]
          %v853 = vld [vmem:[#allocation2 + $0x20] sm:$0xff]
          %v854 = vld [vmem:[#allocation2 + $0x28] sm:$0xff]
          %v855 = vld [vmem:[#allocation2 + $0x30] sm:$0xff]
          %v856 = vld [vmem:[%s327] sm:$0x1]
          %v858 = vlaneseq
          %v859 = vshrl.u32 %v858, 7
          %v860 = vsub.s32 0, %v859
          %v861 = vrot.slane %v856, %v860
          %v863 = vmul.f32 %v849, %v861
          %v864 = vmul.f32 %v850, %v861
          %v865 = vmul.f32 %v851, %v861
          %v866 = vmul.f32 %v852, %v861
          %v867 = vmul.f32 %v853, %v861
          %v868 = vmul.f32 %v854, %v861
          %v869 = vmul.f32 %v855, %v861
          %v870 = vld [vmem:[%s330] sm:$0x1]
          %v872 = vlaneseq
          %v873 = vshrl.u32 %v872, 7
          %v874 = vsub.s32 0, %v873
          %v875 = vrot.slane %v870, %v874
          %v877 = vadd.f32 %v863, %v875
          %v878 = vadd.f32 %v864, %v875
          %v879 = vadd.f32 %v865, %v875
          %v880 = vadd.f32 %v866, %v875
          %v881 = vadd.f32 %v867, %v875
          %v882 = vadd.f32 %v868, %v875
          %v883 = vadd.f32 %v869, %v875
          %v884 = vmax.f32 %v877, 0.0
          %v885 = vmax.f32 %v878, 0.0
          %v886 = vmax.f32 %v879, 0.0
          %v887 = vmax.f32 %v880, 0.0
          %v888 = vmax.f32 %v881, 0.0
          %v889 = vmax.f32 %v882, 0.0
          %v890 = vmax.f32 %v883, 0.0
          %891 = vst [vmem:[%s338] sm:$0xff] %v884
          %892 = vst [vmem:[%s338 + $0x8] sm:$0xff] %v885
          %893 = vst [vmem:[%s338 + $0x10] sm:$0xff] %v886
          %894 = vst [vmem:[%s338 + $0x18] sm:$0xff] %v887
          %895 = vst [vmem:[%s338 + $0x20] sm:$0xff] %v888
          %896 = vst [vmem:[%s338 + $0x28] sm:$0xff] %v889
          %897 = vst [vmem:[%s338 + $0x30] sm:$0xff] %v890
        $region67: #{inception_b_forward.8} parent=54 // pred_fallthru
          _
        %s898 = smul.u32 7, %s20
        %p899 = scmp.lt.s32.totalorder %s898, 13
        %s900 = scalar_select %p899, %s898, 13
        %p901 = scmp.lt.s32.totalorder %s21, 0
        %s902 = scalar_select %p901, %s21, 0
        %s903 = sadd.s32 %s902, %s900
        %s904 = smul.addr %s903, 8
        %s905 = scalar_lea.vmem %s4, %s904
        // Predicated region
        $region68: #{inception_b_forward.8} parent=54 // pred_check
          %p906 = pneg %p162
        $region69: #{inception_b_forward.8} parent=54 // pred_check_branch
          %908 = sbr.rel (%p906) target = $region71
        $region70: #{inception_b_forward.8} parent=54 // pred_region
          %s909 = smul.u32 7, %s20
        $region71: #{inception_b_forward.8} parent=54 // pred_fallthru
          _
      $region55: #{inception_b_forward.8} parent=5 // pred_fallthru
        _
      %p910 = scmp.le.s32.totalorder 2, %s10
      // Predicated region
      $region72: #{inception_b_forward.8} parent=5 // pred_check
        %p911 = pneg %p910
      $region73: #{inception_b_forward.8} parent=5 // pred_check_branch
        %913 = sbr.rel (%p911) target = $region75
      $region74: #{inception_b_forward.8} parent=5 // pred_region
        %s914 = ssub.s32 %s10, 2
        // Predicated region
        $region76: #{inception_b_forward.8} parent=74 // pred_check
          %p915 = pneg %p168
        $region77: #{inception_b_forward.8} parent=74 // pred_check_branch
          %917 = sbr.rel (%p915) target = $region79
        $region78: #{inception_b_forward.8} parent=74 // pred_region
          %s918 = smul.u32 7, %s23
          %p919 = scmp.lt.s32.totalorder %s918, 13
          %s920 = scalar_select %p919, %s918, 13
          %p921 = scmp.lt.s32.totalorder %s24, 0
          %s922 = scalar_select %p921, %s24, 0
          %s923 = sadd.s32 %s922, %s920
          %s924 = smul.addr %s923, 8
          %s925 = scalar_lea.vmem %s4, %s924
        $region79: #{inception_b_forward.8} parent=74 // pred_fallthru
          _
      $region75: #{inception_b_forward.8} parent=5 // pred_fallthru
        _
    $region6: #{inception_b_forward.8} parent=1 // loop_footer
      %s14 = sadd.s32 1, %s10
    $region7: #{inception_b_forward.8} parent=1 // loop_footer_branch
      %9 = sbr.rel target = $region3
    $region8: #{inception_b_forward.8} parent=1 // loop_exit
      _

// kernel: inception_b_forward.5
$region0: #{inception_b_forward.5}
  #allocation0 [shape = 'u32[]', space=smem, size = 0x4, offset = 0x4, fixed_abs, tag = 'smem constant byte address 0x4 - core index']
  #allocation1 [shape = 'u32[144,128]{1,0:T(1,128)}', space=vmem, size = 0x12000, scoped, tag = 'internal scratch']
  %s0 = inlined_call_operand.vmem [shape: bf16[112,128], index: 0, kind: input, shape index: {}]
  %s1 = inlined_call_operand.vmem [shape: bf16[128,384], index: 1, kind: input, shape index: {}]
  %s2 = inlined_call_operand.vmem [shape: f32[1,384], index: 2, kind: input, shape index: {}]
  %s3 = inlined_call_operand.vmem [shape: f32[1,384], index: 3, kind: input, shape index: {}]
  %s4 = inlined_call_operand.vmem [shape: f32[112,384], index: 4, kind: output, shape index: {}]
  %s5 = sld [smem:[#allocation0]]
  $region49: #{inception_b_forward.5} parent=0
    _
  %s7 = ssub.s32 1, %s5
  %s8 = scalar_select 0, %s7, %s5
  loop: start=0, step=1, limit=4
  $region2: #{inception_b_forward.5} parent=0 // loop_pre_header
    _
  $region3: #{inception_b_forward.5} parent=0 // loop_header
    %s10 = sphi 0, %s14
    %p11 = scmp.ge.s32.totalorder %s10, 4
    %s17 = sphi 0, %s29
    %s18 = sphi 0, %s25
    %s19 = sphi 0, %s17
    %s20 = sphi 0, %s18
    %s21 = sphi 0, %s19
    %s22 = sphi 0, %s20
    %s32 = sphi 0, %s34
    %s35 = sphi 0, %s32
    %s36 = sphi 0, %s35
    %s52 = sphi 0, %s36
    %s58 = sphi 0, %s60
    %s61 = sphi 0, %s58
    %s62 = sphi 0, %s61
    %s78 = sphi 0, %s62
    %s84 = sphi 0, %s86
    %s87 = sphi 0, %s84
    %s88 = sphi 0, %s87
    %s104 = sphi 0, %s88
    %s110 = sphi 0, %s112
    %s113 = sphi 0, %s110
    %s114 = sphi 0, %s113
    %s130 = sphi 0, %s114
    %s138 = sphi 0, %s140
    %s141 = sphi 0, %s138
    %s142 = sphi 0, %s141
    %s158 = sphi 0, %s142
  $region4: #{inception_b_forward.5} parent=0 // loop_header_branch
    %13 = sbr.rel (%p11) target = $region8
  $region5: #{inception_b_forward.5} parent=0 // loop_body
    %s15 = ssub.s32 %s10, 1
    %s16 = ssub.s32 %s10, 2
    %s23 = sadd.s32 1, %s18
    %p24 = scmp.ge.s32.totalorder %s23, 1
    %s25 = scalar_select %p24, 0, %s23
    %s26 = sadd.s32 1, %s17
    %s27 = scalar_select %p24, %s26, %s17
    %p28 = scmp.ge.s32.totalorder %s27, 2
    %s29 = scalar_select %p28, 0, %s27
    %s30 = ssub.s32 %s17, %s29
    %p31 = scmp.eq.s32.totalorder %s30, 0
    %s33 = sadd.s32 %s32, 1
    %s34 = scalar_select %p31, %s32, %s33
    %p37 = pneg %p31
    %p38 = scmp.eq.s32.totalorder %s10, 1
    %p39 = por %p37, %p38
    %p40 = scmp.ne.s32.totalorder %s32, %s35
    %p41 = scmp.eq.s32.totalorder %s10, 0
    %p42 = por %p40, %p41
    %p43 = scmp.ne.s32.totalorder %s32, %s35
    %p44 = scmp.eq.s32.totalorder %s15, 1
    %p45 = por %p43, %p44
    %p46 = scmp.ne.s32.totalorder %s35, %s36
    %p47 = scmp.eq.s32.totalorder %s15, 0
    %p48 = por %p46, %p47
    %p49 = scmp.ne.s32.totalorder %s35, %s36
    %p50 = scmp.eq.s32.totalorder %s16, 1
    %p51 = por %p49, %p50
    %p53 = scmp.ne.s32.totalorder %s36, %s52
    %p54 = scmp.eq.s32.totalorder %s16, 0
    %p55 = por %p53, %p54
    %s56 = ssub.s32 %s18, %s25
    %p57 = scmp.eq.s32.totalorder %s56, 0
    %s59 = sadd.s32 %s58, 1
    %s60 = scalar_select %p57, %s58, %s59
    %p63 = pneg %p57
    %p64 = scmp.eq.s32.totalorder %s10, 1
    %p65 = por %p63, %p64
    %p66 = scmp.ne.s32.totalorder %s58, %s61
    %p67 = scmp.eq.s32.totalorder %s10, 0
    %p68 = por %p66, %p67
    %p69 = scmp.ne.s32.totalorder %s58, %s61
    %p70 = scmp.eq.s32.totalorder %s15, 1
    %p71 = por %p69, %p70
    %p72 = scmp.ne.s32.totalorder %s61, %s62
    %p73 = scmp.eq.s32.totalorder %s15, 0
    %p74 = por %p72, %p73
    %p75 = scmp.ne.s32.totalorder %s61, %s62
    %p76 = scmp.eq.s32.totalorder %s16, 1
    %p77 = por %p75, %p76
    %p79 = scmp.ne.s32.totalorder %s62, %s78
    %p80 = scmp.eq.s32.totalorder %s16, 0
    %p81 = por %p79, %p80
    %s82 = ssub.s32 %s18, %s25
    %p83 = scmp.eq.s32.totalorder %s82, 0
    %s85 = sadd.s32 %s84, 1
    %s86 = scalar_select %p83, %s84, %s85
    %p89 = pneg %p83
    %p90 = scmp.eq.s32.totalorder %s10, 1
    %p91 = por %p89, %p90
    %p92 = scmp.ne.s32.totalorder %s84, %s87
    %p93 = scmp.eq.s32.totalorder %s10, 0
    %p94 = por %p92, %p93
    %p95 = scmp.ne.s32.totalorder %s84, %s87
    %p96 = scmp.eq.s32.totalorder %s15, 1
    %p97 = por %p95, %p96
    %p98 = scmp.ne.s32.totalorder %s87, %s88
    %p99 = scmp.eq.s32.totalorder %s15, 0
    %p100 = por %p98, %p99
    %p101 = scmp.ne.s32.totalorder %s87, %s88
    %p102 = scmp.eq.s32.totalorder %s16, 1
    %p103 = por %p101, %p102
    %p105 = scmp.ne.s32.totalorder %s88, %s104
    %p106 = scmp.eq.s32.totalorder %s16, 0
    %p107 = por %p105, %p106
    %s108 = ssub.s32 %s18, %s25
    %p109 = scmp.eq.s32.totalorder %s108, 0
    %s111 = sadd.s32 %s110, 1
    %s112 = scalar_select %p109, %s110, %s111
    %p115 = pneg %p109
    %p116 = scmp.eq.s32.totalorder %s10, 1
    %p117 = por %p115, %p116
    %p118 = scmp.ne.s32.totalorder %s110, %s113
    %p119 = scmp.eq.s32.totalorder %s10, 0
    %p120 = por %p118, %p119
    %p121 = scmp.ne.s32.totalorder %s110, %s113
    %p122 = scmp.eq.s32.totalorder %s15, 1
    %p123 = por %p121, %p122
    %p124 = scmp.ne.s32.totalorder %s113, %s114
    %p125 = scmp.eq.s32.totalorder %s15, 0
    %p126 = por %p124, %p125
    %p127 = scmp.ne.s32.totalorder %s113, %s114
    %p128 = scmp.eq.s32.totalorder %s16, 1
    %p129 = por %p127, %p128
    %p131 = scmp.ne.s32.totalorder %s114, %s130
    %p132 = scmp.eq.s32.totalorder %s16, 0
    %p133 = por %p131, %p132
    %s134 = ssub.s32 %s17, %s29
    %s135 = ssub.s32 %s18, %s25
    %s136 = sor.u32 %s134, %s135
    %p137 = scmp.eq.s32.totalorder %s136, 0
    %s139 = sadd.s32 %s138, 1
    %s140 = scalar_select %p137, %s138, %s139
    %p143 = pneg %p137
    %p144 = scmp.eq.s32.totalorder %s10, 1
    %p145 = por %p143, %p144
    %p146 = scmp.ne.s32.totalorder %s138, %s141
    %p147 = scmp.eq.s32.totalorder %s10, 0
    %p148 = por %p146, %p147
    %p149 = scmp.ne.s32.totalorder %s138, %s141
    %p150 = scmp.eq.s32.totalorder %s15, 1
    %p151 = por %p149, %p150
    %p152 = scmp.ne.s32.totalorder %s141, %s142
    %p153 = scmp.eq.s32.totalorder %s15, 0
    %p154 = por %p152, %p153
    %p155 = scmp.ne.s32.totalorder %s141, %s142
    %p156 = scmp.eq.s32.totalorder %s16, 1
    %p157 = por %p155, %p156
    %p159 = scmp.ne.s32.totalorder %s142, %s158
    %p160 = scmp.eq.s32.totalorder %s16, 0
    %p161 = por %p159, %p160
    %p162 = scmp.le.s32.totalorder 1, %s10
    %p163 = scmp.lt.s32.totalorder %s10, 3
    %p164 = pnand %p162, %p163
    %p165 = pneg %p164
    // Predicated region
    $region9: #{inception_b_forward.5} parent=5 // pred_check
      _
    $region10: #{inception_b_forward.5} parent=5 // pred_check_branch
      %167 = sbr.rel (%p164) target = $region12
    $region11: #{inception_b_forward.5} parent=5 // pred_region
      %s168 = ssub.s32 %s10, 1
      // Predicated region
      $region13: #{inception_b_forward.5} parent=11 // pred_check
        %p169 = pneg %p74
      $region14: #{inception_b_forward.5} parent=11 // pred_check_branch
        %171 = sbr.rel (%p169) target = $region16
      $region15: #{inception_b_forward.5} parent=11 // pred_region
        %s172 = smul.u32 3, %s20
        %p173 = scmp.lt.s32.totalorder %s172, 2
        %s174 = scalar_select %p173, %s172, 2
        %s175 = smul.addr %s174, 4
        %s176 = scalar_lea.vmem %s1, %s175
        %s177 = smul.u32 3, %s20
      $region16: #{inception_b_forward.5} parent=11 // pred_fallthru
        _
      // Predicated region
      $region17: #{inception_b_forward.5} parent=11 // pred_check
        %p178 = pneg %p100
      $region18: #{inception_b_forward.5} parent=11 // pred_check_branch
        %180 = sbr.rel (%p178) target = $region20
      $region19: #{inception_b_forward.5} parent=11 // pred_region
        %s181 = smul.u32 3, %s20
        %p182 = scmp.lt.s32.totalorder %s181, 2
        %s183 = scalar_select %p182, %s181, 2
        %s184 = scalar_lea.vmem %s2, %s183
        %s185 = smul.u32 3, %s20
      $region20: #{inception_b_forward.5} parent=11 // pred_fallthru
        _
      // Predicated region
      $region21: #{inception_b_forward.5} parent=11 // pred_check
        %p186 = pneg %p126
      $region22: #{inception_b_forward.5} parent=11 // pred_check_branch
        %188 = sbr.rel (%p186) target = $region24
      $region23: #{inception_b_forward.5} parent=11 // pred_region
        %s189 = smul.u32 3, %s20
        %p190 = scmp.lt.s32.totalorder %s189, 2
        %s191 = scalar_select %p190, %s189, 2
        %s192 = scalar_lea.vmem %s3, %s191
        %s193 = smul.u32 3, %s20
      $region24: #{inception_b_forward.5} parent=11 // pred_fallthru
        _
    $region12: #{inception_b_forward.5} parent=5 // pred_fallthru
      _
    %p194 = scmp.lt.s32.totalorder %s10, 2
    // Predicated region
    $region25: #{inception_b_forward.5} parent=5 // pred_check
      %p195 = pneg %p194
    $region26: #{inception_b_forward.5} parent=5 // pred_check_branch
      %197 = sbr.rel (%p195) target = $region28
    $region27: #{inception_b_forward.5} parent=5 // pred_region
      // Predicated region
      $region29: #{inception_b_forward.5} parent=27 // pred_check
        %p198 = pneg %p42
      $region30: #{inception_b_forward.5} parent=27 // pred_check_branch
        %200 = sbr.rel (%p198) target = $region32
      $region31: #{inception_b_forward.5} parent=27 // pred_region
        %s201 = smul.u32 7, %s17
        %p202 = scmp.lt.s32.totalorder %s201, 13
        %s203 = scalar_select %p202, %s201, 13
        %s204 = smul.addr %s203, 4
        %s205 = scalar_lea.vmem %s0, %s204
        %s206 = smul.u32 7, %s17
      $region32: #{inception_b_forward.5} parent=27 // pred_fallthru
        _
    $region28: #{inception_b_forward.5} parent=5 // pred_fallthru
      _
    %p207 = scmp.le.s32.totalorder 1, %s10
    %p208 = scmp.lt.s32.totalorder %s10, 3
    %p209 = pnand %p207, %p208
    %p210 = pneg %p209
    // Predicated region
    $region33: #{inception_b_forward.5} parent=5 // pred_check
      _
    $region34: #{inception_b_forward.5} parent=5 // pred_check_branch
      %212 = sbr.rel (%p209) target = $region36
    $region35: #{inception_b_forward.5} parent=5 // pred_region
      %s213 = ssub.s32 %s10, 1
      %s214 = smul.u32 7, %s19
      %p215 = scmp.lt.s32.totalorder %s214, 13
      %s216 = scalar_select %p215, %s214, 13
      %s217 = smul.addr %s216, 4
      %s218 = scalar_lea.vmem %s0, %s217
      %p219 = pneg %p48
      %p220 = pneg %p45
      %s221 = smul.u32 3, %s20
      %p222 = scmp.lt.s32.totalorder %s221, 2
      %s223 = scalar_select %p222, %s221, 2
      %s224 = smul.addr %s223, 4
      %s225 = scalar_lea.vmem %s1, %s224
      %p226 = pneg %p74
      %p227 = pneg %p71
      %s228 = smul.u32 3, %s20
      %p229 = scmp.lt.s32.totalorder %s228, 2
      %s230 = scalar_select %p229, %s228, 2
      %s231 = scalar_lea.vmem %s2, %s230
      %p232 = pneg %p100
      %p233 = pneg %p97
      %s234 = smul.u32 3, %s20
      %p235 = scmp.lt.s32.totalorder %s234, 2
      %s236 = scalar_select %p235, %s234, 2
      %s237 = scalar_lea.vmem %s3, %s236
      %p238 = pneg %p126
      %p239 = pneg %p123
      %p240 = pneg %p154
      %p241 = pneg %p151
      %s242 = smul.u32 7, %s19
      %s243 = smul.u32 3, %s20
      %p244 = scmp.lt.s32.totalorder %s242, 13
      %s245 = scalar_select %p244, %s242, 13
      %p246 = scmp.lt.s32.totalorder %s243, 2
      %s247 = scalar_select %p246, %s243, 2
      %s248 = smul.addr %s245, 3
      %s249 = sadd.s32 %s247, %s248
      %s250 = smul.addr %s249, 8
      %s251 = scalar_lea.vmem %s4, %s250
      %s252 = smul.u32 7, %s19
      %p253 = scmp.lt.s32.totalorder %s252, 13
      %s254 = scalar_select %p253, %s252, 13
      %s255 = smul.addr %s254, 4
      %s256 = scalar_lea.vmem %s0, %s255
      %s257 = smul.u32 7, %s19
      %s258 = smul.u32 3, %s20
      %p259 = scmp.lt.s32.totalorder %s258, 2
      %s260 = scalar_select %p259, %s258, 2
      %s261 = smul.addr %s260, 4
      %s262 = scalar_lea.vmem %s1, %s261
      %s263 = smul.u32 3, %s20
      %s264 = smul.u32 3, %s20
      %p265 = scmp.lt.s32.totalorder %s264, 2
      %s266 = scalar_select %p265, %s264, 2
      %s267 = scalar_lea.vmem %s2, %s266
      %s268 = smul.u32 3, %s20
      %s269 = smul.u32 3, %s20
      %p270 = scmp.lt.s32.totalorder %s269, 2
      %s271 = scalar_select %p270, %s269, 2
      %s272 = scalar_lea.vmem %s3, %s271
      %s273 = smul.u32 3, %s20
      %s274 = smul.u32 7, %s19
      %s275 = smul.u32 3, %s20
      %p276 = scmp.lt.s32.totalorder %s274, 13
      %s277 = scalar_select %p276, %s274, 13
      %p278 = scmp.lt.s32.totalorder %s275, 2
      %s279 = scalar_select %p278, %s275, 2
      %s280 = smul.addr %s277, 3
      %s281 = sadd.s32 %s279, %s280
      %s282 = smul.addr %s281, 8
      %s283 = scalar_lea.vmem %s4, %s282
      %s284 = smul.u32 7, %s19
      %s285 = smul.u32 3, %s20
      %v287 = vld [vmem:[%s256] sm:$0xf]
      %v288 = vld [vmem:[%s256 + $0x4] sm:$0xf]
      %v289 = vld [vmem:[%s256 + $0x8] sm:$0xf]
      %v290 = vld [vmem:[%s256 + $0xc] sm:$0xf]
      %v291 = vld [vmem:[%s256 + $0x10] sm:$0xf]
      %v292 = vld [vmem:[%s256 + $0x14] sm:$0xf]
      %v293 = vld [vmem:[%s256 + $0x18] sm:$0xf]
      %v294 = vld [vmem:[%s262] sm:$0xff]
      %v295 = vld [vmem:[%s262 + $0x8] sm:$0xf]
      %v296 = vld [vmem:[%s262 + $0xc] sm:$0xff]
      %v297 = vld [vmem:[%s262 + $0x14] sm:$0xf]
      %v298 = vld [vmem:[%s262 + $0x18] sm:$0xff]
      %v299 = vld [vmem:[%s262 + $0x20] sm:$0xf]
      %v300 = vld [vmem:[%s262 + $0x24] sm:$0xff]
      %v301 = vld [vmem:[%s262 + $0x2c] sm:$0xf]
      %v302 = vld [vmem:[%s262 + $0x30] sm:$0xff]
      %v303 = vld [vmem:[%s262 + $0x38] sm:$0xf]
      %v304 = vld [vmem:[%s262 + $0x3c] sm:$0xff]
      %v305 = vld [vmem:[%s262 + $0x44] sm:$0xf]
      %v306 = vld [vmem:[%s262 + $0x48] sm:$0xff]
      %v307 = vld [vmem:[%s262 + $0x50] sm:$0xf]
      %v308 = vld [vmem:[%s262 + $0x54] sm:$0xff]
      %v309 = vld [vmem:[%s262 + $0x5c] sm:$0xf]
      %v310 = vld [vmem:[%s262 + $0x60] sm:$0xff]
      %v311 = vld [vmem:[%s262 + $0x68] sm:$0xf]
      %v312 = vld [vmem:[%s262 + $0x6c] sm:$0xff]
      %v313 = vld [vmem:[%s262 + $0x74] sm:$0xf]
      %v314 = vld [vmem:[%s262 + $0x78] sm:$0xff]
      %v315 = vld [vmem:[%s262 + $0x80] sm:$0xf]
      %v316 = vld [vmem:[%s262 + $0x84] sm:$0xff]
      %v317 = vld [vmem:[%s262 + $0x8c] sm:$0xf]
      %v318 = vld [vmem:[%s262 + $0x90] sm:$0xff]
      %v319 = vld [vmem:[%s262 + $0x98] sm:$0xf]
      %v320 = vld [vmem:[%s262 + $0x9c] sm:$0xff]
      %v321 = vld [vmem:[%s262 + $0xa4] sm:$0xf]
      %v322 = vld [vmem:[%s262 + $0xa8] sm:$0xff]
      %v323 = vld [vmem:[%s262 + $0xb0] sm:$0xf]
      %v324 = vld [vmem:[%s262 + $0xb4] sm:$0xff]
      %v325 = vld [vmem:[%s262 + $0xbc] sm:$0xf]
      %v333 = vunpack.c.l.b16 %v287
      %v334 = vunpack.c.l.b16 %v288
      %v335 = vunpack.c.l.b16 %v289
      %v336 = vunpack.c.l.b16 %v290
      %v337 = vunpack.c.l.b16 %v291
      %v338 = vunpack.c.l.b16 %v292
      %v339 = vunpack.c.l.b16 %v293
      %v340 = vpack.c.b16 %v334, %v333
      %v341 = vpack.c.b16 %v336, %v335
      %v342 = vpack.c.b16 %v338, %v337
      %v343 = vpack.c.b16 %v339, %v339
      %v380 = vunpack.c.l.b16 %v294
      %v381 = vunpack.c.h.b16 %v294
      %v382 = vunpack.c.l.b16 %v295
      %v383 = vunpack.c.l.b16 %v296
      %v384 = vunpack.c.h.b16 %v296
      %v385 = vunpack.c.l.b16 %v297
      %v386 = vunpack.c.l.b16 %v298
      %v387 = vunpack.c.h.b16 %v298
      %v388 = vunpack.c.l.b16 %v299
      %v389 = vunpack.c.l.b16 %v300
      %v390 = vunpack.c.h.b16 %v300
      %v391 = vunpack.c.l.b16 %v301
      %v392 = vunpack.c.l.b16 %v302
      %v393 = vunpack.c.h.b16 %v302
      %v394 = vunpack.c.l.b16 %v303
      %v395 = vunpack.c.l.b16 %v304
      %v396 = vunpack.c.h.b16 %v304
      %v397 = vunpack.c.l.b16 %v305
      %v398 = vunpack.c.l.b16 %v306
      %v399 = vunpack.c.h.b16 %v306
      %v400 = vunpack.c.l.b16 %v307
      %v401 = vunpack.c.l.b16 %v308
      %v402 = vunpack.c.h.b16 %v308
      %v403 = vunpack.c.l.b16 %v309
      %v404 = vunpack.c.l.b16 %v310
      %v405 = vunpack.c.h.b16 %v310
      %v406 = vunpack.c.l.b16 %v311
      %v407 = vunpack.c.l.b16 %v312
      %v408 = vunpack.c.h.b16 %v312
      %v409 = vunpack.c.l.b16 %v313
      %v410 = vunpack.c.l.b16 %v314
      %v411 = vunpack.c.h.b16 %v314
      %v412 = vunpack.c.l.b16 %v315
      %v413 = vunpack.c.l.b16 %v316
      %v414 = vunpack.c.h.b16 %v316
      %v415 = vunpack.c.l.b16 %v317
      %v416 = vunpack.c.l.b16 %v318
      %v417 = vunpack.c.h.b16 %v318
      %v418 = vunpack.c.l.b16 %v319
      %v419 = vunpack.c.l.b16 %v320
      %v420 = vunpack.c.h.b16 %v320
      %v421 = vunpack.c.l.b16 %v321
      %v422 = vunpack.c.l.b16 %v322
      %v423 = vunpack.c.h.b16 %v322
      %v424 = vunpack.c.l.b16 %v323
      %v425 = vunpack.c.l.b16 %v324
      %v426 = vunpack.c.h.b16 %v324
      %v427 = vunpack.c.l.b16 %v325
      %v428 = vpack.c.b16 %v383, %v380
      %v429 = vpack.c.b16 %v384, %v381
      %v430 = vpack.c.b16 %v385, %v382
      %v431 = vpack.c.b16 %v389, %v386
      %v432 = vpack.c.b16 %v390, %v387
      %v433 = vpack.c.b16 %v391, %v388
      %v434 = vpack.c.b16 %v395, %v392
      %v435 = vpack.c.b16 %v396, %v393
      %v436 = vpack.c.b16 %v397, %v394
      %v437 = vpack.c.b16 %v401, %v398
      %v438 = vpack.c.b16 %v402, %v399
      %v439 = vpack.c.b16 %v403, %v400
      %v440 = vpack.c.b16 %v407, %v404
      %v441 = vpack.c.b16 %v408, %v405
      %v442 = vpack.c.b16 %v409, %v406
      %v443 = vpack.c.b16 %v413, %v410
      %v444 = vpack.c.b16 %v414, %v411
      %v445 = vpack.c.b16 %v415, %v412
      %v446 = vpack.c.b16 %v419, %v416
      %v447 = vpack.c.b16 %v420, %v417
      %v448 = vpack.c.b16 %v421, %v418
      %v449 = vpack.c.b16 %v425, %v422
      %v450 = vpack.c.b16 %v426, %v423
      %v451 = vpack.c.b16 %v427, %v424
      %476 = vmatprep.subr.bf16.mxu0 %v450
      %477 = vmatpush1.bf16.msra.mxu0 %v449
      %478 = vmatprep.subr.bf16.mxu0 %v447
      %479 = vmatpush1.bf16.msra.mxu0 %v446
      %480 = vmatprep.subr.bf16.mxu0 %v444
      %481 = vmatpush1.bf16.msra.mxu0 %v443
      %482 = vmatprep.subr.bf16.mxu0 %v441
      %483 = vmatpush1.bf16.msra.mxu0 %v440
      %484 = vmatprep.subr.bf16.mxu0 %v438
      %485 = vmatpush1.bf16.msra.mxu0 %v437
      %486 = vmatprep.subr.bf16.mxu0 %v435
      %487 = vmatpush1.bf16.msra.mxu0 %v434
      %488 = vmatprep.subr.bf16.mxu0 %v432
      %489 = vmatpush1.bf16.msra.mxu0 %v431
      %490 = vmatprep.subr.bf16.mxu0 %v429
      %491 = vmatpush1.bf16.msra.mxu0 %v428
      %492 = vmatprep.subr.bf16.mxu0 0
      %493 = vmatpush2.bf16.msra.mxu0 0
      %494 = vmatprep.subr.bf16.mxu0 0
      %495 = vmatpush2.bf16.msra.mxu0 0
      %496 = vmatprep.subr.bf16.mxu0 0
      %497 = vmatpush2.bf16.msra.mxu0 0
      %498 = vmatprep.subr.bf16.mxu0 0
      %499 = vmatpush2.bf16.msra.mxu0 0
      %500 = vmatprep.subr.bf16.mxu0 0
      %501 = vmatpush2.bf16.msra.mxu0 0
      %502 = vmatprep.subr.bf16.mxu0 0
      %503 = vmatpush2.bf16.msra.mxu0 0
      %504 = vmatprep.subr.bf16.mxu0 0
      %505 = vmatpush2.bf16.msra.mxu0 0
      %506 = vmatprep.subr.bf16.mxu0 0
      %507 = vmatpush2.bf16.msra.mxu0 0
      %508 = vmatprep.mubr.bf16.mxu0 0
      %509 = vmatmul.mubr.bf16.gmra.mxu0 %v340
      %v510 = vpop.f32.mrf.mxu0
      %v511 = vadd.f32 0.0, %v510
      %v512 = vpop.f32.mrf.mxu0
      %v513 = vadd.f32 0.0, %v512
      %v514 = vpop.f32.mrf.mxu0
      %v515 = vadd.f32 0.0, %v514
      %v516 = vpop.f32.mrf.mxu0
      %v517 = vadd.f32 0.0, %v516
      %518 = vmatprep.mubr.bf16.mxu0 0
      %519 = vmatmul.mubr.bf16.gmra.mxu0 %v341
      %v520 = vpop.f32.mrf.mxu0
      %v521 = vadd.f32 0.0, %v520
      %v522 = vpop.f32.mrf.mxu0
      %v523 = vadd.f32 0.0, %v522
      %v524 = vpop.f32.mrf.mxu0
      %v525 = vadd.f32 0.0, %v524
      %v526 = vpop.f32.mrf.mxu0
      %v527 = vadd.f32 0.0, %v526
      %528 = vmatprep.mubr.bf16.mxu0 0
      %529 = vmatmul.mubr.bf16.gmra.mxu0 %v342
      %v530 = vpop.f32.mrf.mxu0
      %v531 = vadd.f32 0.0, %v530
      %v532 = vpop.f32.mrf.mxu0
      %v533 = vadd.f32 0.0, %v532
      %v534 = vpop.f32.mrf.mxu0
      %v535 = vadd.f32 0.0, %v534
      %v536 = vpop.f32.mrf.mxu0
      %v537 = vadd.f32 0.0, %v536
      %538 = vmatprep.mubr.bf16.mxu0 0
      %539 = vmatmul.mubr.bf16.gmra.mxu0 %v343
      %v540 = vpop.f32.mrf.mxu0
      %v541 = vadd.f32 0.0, %v540
      %v542 = vpop.f32.mrf.mxu0
      %v543 = vadd.f32 0.0, %v542
      %v544 = vpop.f32.mrf.mxu0
      %v545 = vpop.f32.mrf.mxu0
      %546 = vdwg.mxu0
      %547 = vmatprep.subr.bf16.mxu0 0
      %548 = vmatpush1.bf16.msra.mxu0 %v451
      %549 = vmatprep.subr.bf16.mxu0 0
      %550 = vmatpush1.bf16.msra.mxu0 %v448
      %551 = vmatprep.subr.bf16.mxu0 0
      %552 = vmatpush1.bf16.msra.mxu0 %v445
      %553 = vmatprep.subr.bf16.mxu0 0
      %554 = vmatpush1.bf16.msra.mxu0 %v442
      %555 = vmatprep.subr.bf16.mxu0 0
      %556 = vmatpush1.bf16.msra.mxu0 %v439
      %557 = vmatprep.subr.bf16.mxu0 0
      %558 = vmatpush1.bf16.msra.mxu0 %v436
      %559 = vmatprep.subr.bf16.mxu0 0
      %560 = vmatpush1.bf16.msra.mxu0 %v433
      %561 = vmatprep.subr.bf16.mxu0 0
      %562 = vmatpush1.bf16.msra.mxu0 %v430
      %563 = vmatprep.subr.bf16.mxu0 0
      %564 = vmatpush2.bf16.msra.mxu0 0
      %565 = vmatprep.subr.bf16.mxu0 0
      %566 = vmatpush2.bf16.msra.mxu0 0
      %567 = vmatprep.subr.bf16.mxu0 0
      %568 = vmatpush2.bf16.msra.mxu0 0
      %569 = vmatprep.subr.bf16.mxu0 0
      %570 = vmatpush2.bf16.msra.mxu0 0
      %571 = vmatprep.subr.bf16.mxu0 0
      %572 = vmatpush2.bf16.msra.mxu0 0
      %573 = vmatprep.subr.bf16.mxu0 0
      %574 = vmatpush2.bf16.msra.mxu0 0
      %575 = vmatprep.subr.bf16.mxu0 0
      %576 = vmatpush2.bf16.msra.mxu0 0
      %577 = vmatprep.subr.bf16.mxu0 0
      %578 = vmatpush2.bf16.msra.mxu0 0
      %579 = vmatprep.mubr.bf16.mxu0 0
      %580 = vmatmul.mubr.bf16.gmra.mxu0 %v340
      %v581 = vpop.f32.mrf.mxu0
      %v582 = vadd.f32 0.0, %v581
      %v583 = vpop.f32.mrf.mxu0
      %v584 = vpop.f32.mrf.mxu0
      %v585 = vadd.f32 0.0, %v584
      %v586 = vpop.f32.mrf.mxu0
      %587 = vmatprep.mubr.bf16.mxu0 0
      %588 = vmatmul.mubr.bf16.gmra.mxu0 %v341
      %v589 = vpop.f32.mrf.mxu0
      %v590 = vadd.f32 0.0, %v589
      %v591 = vpop.f32.mrf.mxu0
      %v592 = vpop.f32.mrf.mxu0
      %v593 = vadd.f32 0.0, %v592
      %v594 = vpop.f32.mrf.mxu0
      %595 = vmatprep.mubr.bf16.mxu0 0
      %596 = vmatmul.mubr.bf16.gmra.mxu0 %v342
      %v597 = vpop.f32.mrf.mxu0
      %v598 = vadd.f32 0.0, %v597
      %v599 = vpop.f32.mrf.mxu0
      %v600 = vpop.f32.mrf.mxu0
      %v601 = vadd.f32 0.0, %v600
      %v602 = vpop.f32.mrf.mxu0
      %603 = vmatprep.mubr.bf16.mxu0 0
      %604 = vmatmul.mubr.bf16.gmra.mxu0 %v343
      %v605 = vpop.f32.mrf.mxu0
      %v606 = vadd.f32 0.0, %v605
      %v607 = vpop.f32.mrf.mxu0
      %v608 = vpop.f32.mrf.mxu0
      %v609 = vpop.f32.mrf.mxu0
      %610 = vdwg.mxu0
      %v611 = vld [vmem:[%s267] sm:$0x7]
      %v613 = vlaneseq
      %v614 = vshrl.u32 %v613, 7
      %v615 = vsub.s32 0, %v614
      %v616 = vrot.slane %v611, %v615
      %v617 = vlaneseq
      %v618 = vshrl.u32 %v617, 7
      %v619 = vsub.s32 1, %v618
      %v620 = vrot.slane %v611, %v619
      %v621 = vlaneseq
      %v622 = vshrl.u32 %v621, 7
      %v623 = vsub.s32 2, %v622
      %v624 = vrot.slane %v611, %v623
      %v628 = vmul.f32 %v511, %v616
      %v629 = vmul.f32 %v513, %v620
      %v630 = vmul.f32 %v582, %v624
      %v631 = vmul.f32 %v515, %v616
      %v632 = vmul.f32 %v517, %v620
      %v633 = vmul.f32 %v585, %v624
      %v634 = vmul.f32 %v521, %v616
      %v635 = vmul.f32 %v523, %v620
      %v636 = vmul.f32 %v590, %v624
      %v637 = vmul.f32 %v525, %v616
      %v638 = vmul.f32 %v527, %v620
      %v639 = vmul.f32 %v593, %v624
      %v640 = vmul.f32 %v531, %v616
      %v641 = vmul.f32 %v533, %v620
      %v642 = vmul.f32 %v598, %v624
      %v643 = vmul.f32 %v535, %v616
      %v644 = vmul.f32 %v537, %v620
      %v645 = vmul.f32 %v601, %v624
      %v646 = vmul.f32 %v541, %v616
      %v647 = vmul.f32 %v543, %v620
      %v648 = vmul.f32 %v606, %v624
      %v649 = vld [vmem:[%s272] sm:$0x7]
      %v651 = vlaneseq
      %v652 = vshrl.u32 %v651, 7
      %v653 = vsub.s32 0, %v652
      %v654 = vrot.slane %v649, %v653
      %v655 = vlaneseq
      %v656 = vshrl.u32 %v655, 7
      %v657 = vsub.s32 1, %v656
      %v658 = vrot.slane %v649, %v657
      %v659 = vlaneseq
      %v660 = vshrl.u32 %v659, 7
      %v661 = vsub.s32 2, %v660
      %v662 = vrot.slane %v649, %v661
      %v666 = vadd.f32 %v628, %v654
      %v667 = vadd.f32 %v629, %v658
      %v668 = vadd.f32 %v630, %v662
      %v669 = vadd.f32 %v631, %v654
      %v670 = vadd.f32 %v632, %v658
      %v671 = vadd.f32 %v633, %v662
      %v672 = vadd.f32 %v634, %v654
      %v673 = vadd.f32 %v635, %v658
      %v674 = vadd.f32 %v636, %v662
      %v675 = vadd.f32 %v637, %v654
      %v676 = vadd.f32 %v638, %v658
      %v677 = vadd.f32 %v639, %v662
      %v678 = vadd.f32 %v640, %v654
      %v679 = vadd.f32 %v641, %v658
      %v680 = vadd.f32 %v642, %v662
      %v681 = vadd.f32 %v643, %v654
      %v682 = vadd.f32 %v644, %v658
      %v683 = vadd.f32 %v645, %v662
      %v684 = vadd.f32 %v646, %v654
      %v685 = vadd.f32 %v647, %v658
      %v686 = vadd.f32 %v648, %v662
      %v687 = vmax.f32 %v666, 0.0
      %v688 = vmax.f32 %v667, 0.0
      %v689 = vmax.f32 %v668, 0.0
      %v690 = vmax.f32 %v669, 0.0
      %v691 = vmax.f32 %v670, 0.0
      %v692 = vmax.f32 %v671, 0.0
      %v693 = vmax.f32 %v672, 0.0
      %v694 = vmax.f32 %v673, 0.0
      %v695 = vmax.f32 %v674, 0.0
      %v696 = vmax.f32 %v675, 0.0
      %v697 = vmax.f32 %v676, 0.0
      %v698 = vmax.f32 %v677, 0.0
      %v699 = vmax.f32 %v678, 0.0
      %v700 = vmax.f32 %v679, 0.0
      %v701 = vmax.f32 %v680, 0.0
      %v702 = vmax.f32 %v681, 0.0
      %v703 = vmax.f32 %v682, 0.0
      %v704 = vmax.f32 %v683, 0.0
      %v705 = vmax.f32 %v684, 0.0
      %v706 = vmax.f32 %v685, 0.0
      %v707 = vmax.f32 %v686, 0.0
      %708 = vst [vmem:[%s283] sm:$0xff] %v687
      %709 = vst [vmem:[%s283 + $0x8] sm:$0xff] %v688
      %710 = vst [vmem:[%s283 + $0x10] sm:$0xff] %v689
      %711 = vst [vmem:[%s283 + $0x18] sm:$0xff] %v690
      %712 = vst [vmem:[%s283 + $0x20] sm:$0xff] %v691
      %713 = vst [vmem:[%s283 + $0x28] sm:$0xff] %v692
      %714 = vst [vmem:[%s283 + $0x30] sm:$0xff] %v693
      %715 = vst [vmem:[%s283 + $0x38] sm:$0xff] %v694
      %716 = vst [vmem:[%s283 + $0x40] sm:$0xff] %v695
      %717 = vst [vmem:[%s283 + $0x48] sm:$0xff] %v696
      %718 = vst [vmem:[%s283 + $0x50] sm:$0xff] %v697
      %719 = vst [vmem:[%s283 + $0x58] sm:$0xff] %v698
      %720 = vst [vmem:[%s283 + $0x60] sm:$0xff] %v699
      %721 = vst [vmem:[%s283 + $0x68] sm:$0xff] %v700
      %722 = vst [vmem:[%s283 + $0x70] sm:$0xff] %v701
      %723 = vst [vmem:[%s283 + $0x78] sm:$0xff] %v702
      %724 = vst [vmem:[%s283 + $0x80] sm:$0xff] %v703
      %725 = vst [vmem:[%s283 + $0x88] sm:$0xff] %v704
      %726 = vst [vmem:[%s283 + $0x90] sm:$0xff] %v705
      %727 = vst [vmem:[%s283 + $0x98] sm:$0xff] %v706
      %728 = vst [vmem:[%s283 + $0xa0] sm:$0xff] %v707
      %s729 = smul.u32 7, %s19
      %s730 = smul.u32 3, %s20
      %p731 = scmp.lt.s32.totalorder %s729, 13
      %s732 = scalar_select %p731, %s729, 13
      %p733 = scmp.lt.s32.totalorder %s730, 2
      %s734 = scalar_select %p733, %s730, 2
      %s735 = smul.addr %s732, 3
      %s736 = sadd.s32 %s734, %s735
      %s737 = smul.addr %s736, 8
      %s738 = scalar_lea.vmem %s4, %s737
      // Predicated region
      $region37: #{inception_b_forward.5} parent=35 // pred_check
        %p739 = pneg %p151
      $region38: #{inception_b_forward.5} parent=35 // pred_check_branch
        %741 = sbr.rel (%p739) target = $region40
      $region39: #{inception_b_forward.5} parent=35 // pred_region
        %s742 = smul.u32 7, %s19
        %s743 = smul.u32 3, %s20
      $region40: #{inception_b_forward.5} parent=35 // pred_fallthru
        _
    $region36: #{inception_b_forward.5} parent=5 // pred_fallthru
      _
    %p744 = scmp.le.s32.totalorder 2, %s10
    // Predicated region
    $region41: #{inception_b_forward.5} parent=5 // pred_check
      %p745 = pneg %p744
    $region42: #{inception_b_forward.5} parent=5 // pred_check_branch
      %747 = sbr.rel (%p745) target = $region44
    $region43: #{inception_b_forward.5} parent=5 // pred_region
      %s748 = ssub.s32 %s10, 2
      // Predicated region
      $region45: #{inception_b_forward.5} parent=43 // pred_check
        %p749 = pneg %p157
      $region46: #{inception_b_forward.5} parent=43 // pred_check_branch
        %751 = sbr.rel (%p749) target = $region48
      $region47: #{inception_b_forward.5} parent=43 // pred_region
        %s752 = smul.u32 7, %s21
        %s753 = smul.u32 3, %s22
        %p754 = scmp.lt.s32.totalorder %s752, 13
        %s755 = scalar_select %p754, %s752, 13
        %p756 = scmp.lt.s32.totalorder %s753, 2
        %s757 = scalar_select %p756, %s753, 2
        %s758 = smul.addr %s755, 3
        %s759 = sadd.s32 %s757, %s758
        %s760 = smul.addr %s759, 8
        %s761 = scalar_lea.vmem %s4, %s760
      $region48: #{inception_b_forward.5} parent=43 // pred_fallthru
        _
    $region44: #{inception_b_forward.5} parent=5 // pred_fallthru
      _
  $region6: #{inception_b_forward.5} parent=0 // loop_footer
    %s14 = sadd.s32 1, %s10
  $region7: #{inception_b_forward.5} parent=0 // loop_footer_branch
    %9 = sbr.rel target = $region3
  $region8: #{inception_b_forward.5} parent=0 // loop_exit
    _

// kernel: inception_b_forward.9
$region0: #{inception_b_forward.9}
  #allocation0 [shape = 'u32[]', space=smem, size = 0x4, offset = 0x4, fixed_abs, tag = 'smem constant byte address 0x4 - core index']
  #allocation1 [shape = 'u32[144,128]{1,0:T(1,128)}', space=vmem, size = 0x12000, scoped, tag = 'internal scratch']
  %s0 = inlined_call_operand.vmem [shape: f32[2,16,8,4], index: 0, kind: input, shape index: {}]
  %s1 = inlined_call_operand.vmem [shape: f32[2,16,8,4], index: 1, kind: input, shape index: {}]
  %s2 = inlined_call_operand.vmem [shape: f32[2,7,7,4], index: 2, kind: output, shape index: {}]
  %s3 = sld [smem:[#allocation0]]
  $region41: #{inception_b_forward.9} parent=0
    _
  %s5 = ssub.s32 1, %s3
  %s6 = scalar_select 0, %s5, %s3
  loop: start=0, step=1, limit=4
  $region2: #{inception_b_forward.9} parent=0 // loop_pre_header
    _
  $region3: #{inception_b_forward.9} parent=0 // loop_header
    %s8 = sphi 0, %s12
    %p9 = scmp.ge.s32.totalorder %s8, 4
    %s18 = sphi 0, %s20
    %s21 = sphi 0, %s18
    %s22 = sphi 0, %s21
    %s38 = sphi 0, %s22
    %s44 = sphi 0, %s46
    %s47 = sphi 0, %s44
    %s48 = sphi 0, %s47
    %s64 = sphi 0, %s48
    %s70 = sphi 0, %s72
    %s73 = sphi 0, %s70
    %s74 = sphi 0, %s73
    %s90 = sphi 0, %s74
  $region4: #{inception_b_forward.9} parent=0 // loop_header_branch
    %11 = sbr.rel (%p9) target = $region8
  $region5: #{inception_b_forward.9} parent=0 // loop_body
    %s13 = ssub.s32 %s8, 1
    %s14 = ssub.s32 %s8, 2
    %s15 = sadd.s32 %s8, 1
    %s16 = ssub.s32 %s8, %s15
    %p17 = scmp.eq.s32.totalorder %s16, 0
    %s19 = sadd.s32 %s18, 1
    %s20 = scalar_select %p17, %s18, %s19
    %p23 = pneg %p17
    %p24 = scmp.eq.s32.totalorder %s8, 1
    %p25 = por %p23, %p24
    %p26 = scmp.ne.s32.totalorder %s18, %s21
    %p27 = scmp.eq.s32.totalorder %s8, 0
    %p28 = por %p26, %p27
    %p29 = scmp.ne.s32.totalorder %s18, %s21
    %p30 = scmp.eq.s32.totalorder %s13, 1
    %p31 = por %p29, %p30
    %p32 = scmp.ne.s32.totalorder %s21, %s22
    %p33 = scmp.eq.s32.totalorder %s13, 0
    %p34 = por %p32, %p33
    %p35 = scmp.ne.s32.totalorder %s21, %s22
    %p36 = scmp.eq.s32.totalorder %s14, 1
    %p37 = por %p35, %p36
    %p39 = scmp.ne.s32.totalorder %s22, %s38
    %p40 = scmp.eq.s32.totalorder %s14, 0
    %p41 = por %p39, %p40
    %s42 = ssub.s32 %s8, %s15
    %p43 = scmp.eq.s32.totalorder %s42, 0
    %s45 = sadd.s32 %s44, 1
    %s46 = scalar_select %p43, %s44, %s45
    %p49 = pneg %p43
    %p50 = scmp.eq.s32.totalorder %s8, 1
    %p51 = por %p49, %p50
    %p52 = scmp.ne.s32.totalorder %s44, %s47
    %p53 = scmp.eq.s32.totalorder %s8, 0
    %p54 = por %p52, %p53
    %p55 = scmp.ne.s32.totalorder %s44, %s47
    %p56 = scmp.eq.s32.totalorder %s13, 1
    %p57 = por %p55, %p56
    %p58 = scmp.ne.s32.totalorder %s47, %s48
    %p59 = scmp.eq.s32.totalorder %s13, 0
    %p60 = por %p58, %p59
    %p61 = scmp.ne.s32.totalorder %s47, %s48
    %p62 = scmp.eq.s32.totalorder %s14, 1
    %p63 = por %p61, %p62
    %p65 = scmp.ne.s32.totalorder %s48, %s64
    %p66 = scmp.eq.s32.totalorder %s14, 0
    %p67 = por %p65, %p66
    %s68 = ssub.s32 %s8, %s15
    %p69 = scmp.eq.s32.totalorder %s68, 0
    %s71 = sadd.s32 %s70, 1
    %s72 = scalar_select %p69, %s70, %s71
    %p75 = pneg %p69
    %p76 = scmp.eq.s32.totalorder %s8, 1
    %p77 = por %p75, %p76
    %p78 = scmp.ne.s32.totalorder %s70, %s73
    %p79 = scmp.eq.s32.totalorder %s8, 0
    %p80 = por %p78, %p79
    %p81 = scmp.ne.s32.totalorder %s70, %s73
    %p82 = scmp.eq.s32.totalorder %s13, 1
    %p83 = por %p81, %p82
    %p84 = scmp.ne.s32.totalorder %s73, %s74
    %p85 = scmp.eq.s32.totalorder %s13, 0
    %p86 = por %p84, %p85
    %p87 = scmp.ne.s32.totalorder %s73, %s74
    %p88 = scmp.eq.s32.totalorder %s14, 1
    %p89 = por %p87, %p88
    %p91 = scmp.ne.s32.totalorder %s74, %s90
    %p92 = scmp.eq.s32.totalorder %s14, 0
    %p93 = por %p91, %p92
    %p94 = scmp.le.s32.totalorder 1, %s8
    %p95 = scmp.lt.s32.totalorder %s8, 3
    %p96 = pnand %p94, %p95
    %p97 = pneg %p96
    // Predicated region
    $region9: #{inception_b_forward.9} parent=5 // pred_check
      _
    $region10: #{inception_b_forward.9} parent=5 // pred_check_branch
      %99 = sbr.rel (%p96) target = $region12
    $region11: #{inception_b_forward.9} parent=5 // pred_region
      %s100 = ssub.s32 %s8, 1
    $region12: #{inception_b_forward.9} parent=5 // pred_fallthru
      _
    %p101 = scmp.lt.s32.totalorder %s8, 2
    // Predicated region
    $region13: #{inception_b_forward.9} parent=5 // pred_check
      %p102 = pneg %p101
    $region14: #{inception_b_forward.9} parent=5 // pred_check_branch
      %104 = sbr.rel (%p102) target = $region16
    $region15: #{inception_b_forward.9} parent=5 // pred_region
      // Predicated region
      $region17: #{inception_b_forward.9} parent=15 // pred_check
        %p105 = pneg %p28
      $region18: #{inception_b_forward.9} parent=15 // pred_check_branch
        %107 = sbr.rel (%p105) target = $region20
      $region19: #{inception_b_forward.9} parent=15 // pred_region
        %p108 = scmp.lt.s32.totalorder %s8, 1
        %s109 = scalar_select %p108, %s8, 1
        %s110 = smul.addr %s109, 16
        %s111 = smul.addr %s110, 8
        %s112 = scalar_lea.vmem %s0, %s111
      $region20: #{inception_b_forward.9} parent=15 // pred_fallthru
        _
      // Predicated region
      $region21: #{inception_b_forward.9} parent=15 // pred_check
        %p113 = pneg %p54
      $region22: #{inception_b_forward.9} parent=15 // pred_check_branch
        %115 = sbr.rel (%p113) target = $region24
      $region23: #{inception_b_forward.9} parent=15 // pred_region
        %p116 = scmp.lt.s32.totalorder %s8, 1
        %s117 = scalar_select %p116, %s8, 1
        %s118 = smul.addr %s117, 16
        %s119 = smul.addr %s118, 8
        %s120 = scalar_lea.vmem %s1, %s119
      $region24: #{inception_b_forward.9} parent=15 // pred_fallthru
        _
    $region16: #{inception_b_forward.9} parent=5 // pred_fallthru
      _
    %p121 = scmp.le.s32.totalorder 1, %s8
    %p122 = scmp.lt.s32.totalorder %s8, 3
    %p123 = pnand %p121, %p122
    %p124 = pneg %p123
    // Predicated region
    $region25: #{inception_b_forward.9} parent=5 // pred_check
      _
    $region26: #{inception_b_forward.9} parent=5 // pred_check_branch
      %126 = sbr.rel (%p123) target = $region28
    $region27: #{inception_b_forward.9} parent=5 // pred_region
      %s127 = ssub.s32 %s8, 1
      %p128 = scmp.lt.s32.totalorder %s13, 1
      %s129 = scalar_select %p128, %s13, 1
      %s130 = smul.addr %s129, 16
      %s131 = smul.addr %s130, 8
      %s132 = scalar_lea.vmem %s0, %s131
      %p133 = pneg %p34
      %p134 = pneg %p31
      %p135 = scmp.lt.s32.totalorder %s13, 1
      %s136 = scalar_select %p135, %s13, 1
      %s137 = smul.addr %s136, 16
      %s138 = smul.addr %s137, 8
      %s139 = scalar_lea.vmem %s1, %s138
      %p140 = pneg %p60
      %p141 = pneg %p57
      %p142 = pneg %p86
      %p143 = pneg %p83
      %p144 = scmp.lt.s32.totalorder %s13, 1
      %s145 = scalar_select %p144, %s13, 1
      %s146 = smul.addr %s145, 7
      %s147 = smul.addr %s146, 8
      %s148 = scalar_lea.vmem %s2, %s147
      %p149 = scmp.lt.s32.totalorder %s13, 1
      %s150 = scalar_select %p149, %s13, 1
      %s151 = smul.addr %s150, 16
      %s152 = smul.addr %s151, 8
      %s153 = scalar_lea.vmem %s0, %s152
      %p154 = scmp.lt.s32.totalorder %s13, 1
      %s155 = scalar_select %p154, %s13, 1
      %s156 = smul.addr %s155, 16
      %s157 = smul.addr %s156, 8
      %s158 = scalar_lea.vmem %s1, %s157
      %p159 = scmp.lt.s32.totalorder %s13, 1
      %s160 = scalar_select %p159, %s13, 1
      %s161 = smul.addr %s160, 7
      %s162 = smul.addr %s161, 8
      %s163 = scalar_lea.vmem %s2, %s162
      %v164 = vld [vmem:[%s153] sm:$0xff]
      %v165 = vld [vmem:[%s158] sm:$0xff]
      %v167 = vrot.slane %v164, 1
      %v169 = vmax.f32 %v164, %v167
      %v170 = vmax.f32 %v169, %v165
      %s171 = scalar_lea.vmem %s153, 8
      %v172 = vld [vmem:[%s171] sm:$0xff]
      %s173 = scalar_lea.vmem %s158, 8
      %v174 = vld [vmem:[%s173] sm:$0xff]
      %v175 = vmax.f32 %v170, %v172
      %v177 = vrot.slane %v172, 1
      %v179 = vmax.f32 %v175, %v177
      %v180 = vmax.f32 %v179, %v174
      %s181 = scalar_lea.vmem %s153, 16
      %v182 = vld [vmem:[%s181] sm:$0xff]
      %s183 = scalar_lea.vmem %s158, 16
      %v184 = vld [vmem:[%s183] sm:$0xff]
      %v185 = vmax.f32 %v180, %v182
      %v187 = vrot.slane %v182, 1
      %v189 = vmax.f32 %v185, %v187
      %v190 = vmax.f32 %v189, %v184
      %vm191 = vcmask 30720
      %192 = vst.msk [vmem:[%s163] sm:$0x7f] %vm191, %v190
      %v193 = vld [vmem:[%s181] sm:$0xff]
      %v194 = vld [vmem:[%s183] sm:$0xff]
      %v196 = vrot.slane %v193, 1
      %v198 = vmax.f32 %v193, %v196
      %v199 = vmax.f32 %v198, %v194
      %s200 = scalar_lea.vmem %s153, 24
      %v201 = vld [vmem:[%s200] sm:$0xff]
      %s202 = scalar_lea.vmem %s158, 24
      %v203 = vld [vmem:[%s202] sm:$0xff]
      %v204 = vmax.f32 %v199, %v201
      %v206 = vrot.slane %v201, 1
      %v208 = vmax.f32 %v204, %v206
      %v209 = vmax.f32 %v208, %v203
      %s210 = scalar_lea.vmem %s153, 32
      %v211 = vld [vmem:[%s210] sm:$0xff]
      %s212 = scalar_lea.vmem %s158, 32
      %v213 = vld [vmem:[%s212] sm:$0xff]
      %v214 = vmax.f32 %v209, %v211
      %v216 = vrot.slane %v211, 1
      %v218 = vmax.f32 %v214, %v216
      %v219 = vmax.f32 %v218, %v213
      %s220 = scalar_lea.vmem %s163, 8
      %221 = vst.msk [vmem:[%s220] sm:$0x7f] %vm191, %v219
      %v222 = vld [vmem:[%s210] sm:$0xff]
      %v223 = vld [vmem:[%s212] sm:$0xff]
      %v225 = vrot.slane %v222, 1
      %v227 = vmax.f32 %v222, %v225
      %v228 = vmax.f32 %v227, %v223
      %s229 = scalar_lea.vmem %s153, 40
      %v230 = vld [vmem:[%s229] sm:$0xff]
      %s231 = scalar_lea.vmem %s158, 40
      %v232 = vld [vmem:[%s231] sm:$0xff]
      %v233 = vmax.f32 %v228, %v230
      %v235 = vrot.slane %v230, 1
      %v237 = vmax.f32 %v233, %v235
      %v238 = vmax.f32 %v237, %v232
      %s239 = scalar_lea.vmem %s153, 48
      %v240 = vld [vmem:[%s239] sm:$0xff]
      %s241 = scalar_lea.vmem %s158, 48
      %v242 = vld [vmem:[%s241] sm:$0xff]
      %v243 = vmax.f32 %v238, %v240
      %v245 = vrot.slane %v240, 1
      %v247 = vmax.f32 %v243, %v245
      %v248 = vmax.f32 %v247, %v242
      %s249 = scalar_lea.vmem %s163, 16
      %250 = vst.msk [vmem:[%s249] sm:$0x7f] %vm191, %v248
      %v251 = vld [vmem:[%s239] sm:$0xff]
      %v252 = vld [vmem:[%s241] sm:$0xff]
      %v254 = vrot.slane %v251, 1
      %v256 = vmax.f32 %v251, %v254
      %v257 = vmax.f32 %v256, %v252
      %s258 = scalar_lea.vmem %s153, 56
      %v259 = vld [vmem:[%s258] sm:$0xff]
      %s260 = scalar_lea.vmem %s158, 56
      %v261 = vld [vmem:[%s260] sm:$0xff]
      %v262 = vmax.f32 %v257, %v259
      %v264 = vrot.slane %v259, 1
      %v266 = vmax.f32 %v262, %v264
      %v267 = vmax.f32 %v266, %v261
      %s268 = scalar_lea.vmem %s153, 64
      %v269 = vld [vmem:[%s268] sm:$0xff]
      %s270 = scalar_lea.vmem %s158, 64
      %v271 = vld [vmem:[%s270] sm:$0xff]
      %v272 = vmax.f32 %v267, %v269
      %v274 = vrot.slane %v269, 1
      %v276 = vmax.f32 %v272, %v274
      %v277 = vmax.f32 %v276, %v271
      %s278 = scalar_lea.vmem %s163, 24
      %279 = vst.msk [vmem:[%s278] sm:$0x7f] %vm191, %v277
      %v280 = vld [vmem:[%s268] sm:$0xff]
      %v281 = vld [vmem:[%s270] sm:$0xff]
      %v283 = vrot.slane %v280, 1
      %v285 = vmax.f32 %v280, %v283
      %v286 = vmax.f32 %v285, %v281
      %s287 = scalar_lea.vmem %s153, 72
      %v288 = vld [vmem:[%s287] sm:$0xff]
      %s289 = scalar_lea.vmem %s158, 72
      %v290 = vld [vmem:[%s289] sm:$0xff]
      %v291 = vmax.f32 %v286, %v288
      %v293 = vrot.slane %v288, 1
      %v295 = vmax.f32 %v291, %v293
      %v296 = vmax.f32 %v295, %v290
      %s297 = scalar_lea.vmem %s153, 80
      %v298 = vld [vmem:[%s297] sm:$0xff]
      %s299 = scalar_lea.vmem %s158, 80
      %v300 = vld [vmem:[%s299] sm:$0xff]
      %v301 = vmax.f32 %v296, %v298
      %v303 = vrot.slane %v298, 1
      %v305 = vmax.f32 %v301, %v303
      %v306 = vmax.f32 %v305, %v300
      %s307 = scalar_lea.vmem %s163, 32
      %308 = vst.msk [vmem:[%s307] sm:$0x7f] %vm191, %v306
      %v309 = vld [vmem:[%s297] sm:$0xff]
      %v310 = vld [vmem:[%s299] sm:$0xff]
      %v312 = vrot.slane %v309, 1
      %v314 = vmax.f32 %v309, %v312
      %v315 = vmax.f32 %v314, %v310
      %s316 = scalar_lea.vmem %s153, 88
      %v317 = vld [vmem:[%s316] sm:$0xff]
      %s318 = scalar_lea.vmem %s158, 88
      %v319 = vld [vmem:[%s318] sm:$0xff]
      %v320 = vmax.f32 %v315, %v317
      %v322 = vrot.slane %v317, 1
      %v324 = vmax.f32 %v320, %v322
      %v325 = vmax.f32 %v324, %v319
      %s326 = scalar_lea.vmem %s153, 96
      %v327 = vld [vmem:[%s326] sm:$0xff]
      %s328 = scalar_lea.vmem %s158, 96
      %v329 = vld [vmem:[%s328] sm:$0xff]
      %v330 = vmax.f32 %v325, %v327
      %v332 = vrot.slane %v327, 1
      %v334 = vmax.f32 %v330, %v332
      %v335 = vmax.f32 %v334, %v329
      %s336 = scalar_lea.vmem %s163, 40
      %337 = vst.msk [vmem:[%s336] sm:$0x7f] %vm191, %v335
      %v338 = vld [vmem:[%s326] sm:$0xff]
      %v339 = vld [vmem:[%s328] sm:$0xff]
      %v341 = vrot.slane %v338, 1
      %v343 = vmax.f32 %v338, %v341
      %v344 = vmax.f32 %v343, %v339
      %s345 = scalar_lea.vmem %s153, 104
      %v346 = vld [vmem:[%s345] sm:$0xff]
      %s347 = scalar_lea.vmem %s158, 104
      %v348 = vld [vmem:[%s347] sm:$0xff]
      %v349 = vmax.f32 %v344, %v346
      %v351 = vrot.slane %v346, 1
      %v353 = vmax.f32 %v349, %v351
      %v354 = vmax.f32 %v353, %v348
      %s355 = scalar_lea.vmem %s153, 112
      %v356 = vld [vmem:[%s355] sm:$0xff]
      %s357 = scalar_lea.vmem %s158, 112
      %v358 = vld [vmem:[%s357] sm:$0xff]
      %v359 = vmax.f32 %v354, %v356
      %v361 = vrot.slane %v356, 1
      %v363 = vmax.f32 %v359, %v361
      %v364 = vmax.f32 %v363, %v358
      %s365 = scalar_lea.vmem %s163, 48
      %366 = vst.msk [vmem:[%s365] sm:$0x7f] %vm191, %v364
      %p367 = scmp.lt.s32.totalorder %s13, 1
      %s368 = scalar_select %p367, %s13, 1
      %s369 = smul.addr %s368, 7
      %s370 = smul.addr %s369, 8
      %s371 = scalar_lea.vmem %s2, %s370
      // Predicated region
      $region29: #{inception_b_forward.9} parent=27 // pred_check
        %p372 = pneg %p83
      $region30: #{inception_b_forward.9} parent=27 // pred_check_branch
        %374 = sbr.rel (%p372) target = $region32
      $region31: #{inception_b_forward.9} parent=27 // pred_region
        _
      $region32: #{inception_b_forward.9} parent=27 // pred_fallthru
        _
    $region28: #{inception_b_forward.9} parent=5 // pred_fallthru
      _
    %p375 = scmp.le.s32.totalorder 2, %s8
    // Predicated region
    $region33: #{inception_b_forward.9} parent=5 // pred_check
      %p376 = pneg %p375
    $region34: #{inception_b_forward.9} parent=5 // pred_check_branch
      %378 = sbr.rel (%p376) target = $region36
    $region35: #{inception_b_forward.9} parent=5 // pred_region
      %s379 = ssub.s32 %s8, 2
      // Predicated region
      $region37: #{inception_b_forward.9} parent=35 // pred_check
        %p380 = pneg %p89
      $region38: #{inception_b_forward.9} parent=35 // pred_check_branch
        %382 = sbr.rel (%p380) target = $region40
      $region39: #{inception_b_forward.9} parent=35 // pred_region
        %p383 = scmp.lt.s32.totalorder %s14, 1
        %s384 = scalar_select %p383, %s14, 1
        %s385 = smul.addr %s384, 7
        %s386 = smul.addr %s385, 8
        %s387 = scalar_lea.vmem %s2, %s386
      $region40: #{inception_b_forward.9} parent=35 // pred_fallthru
        _
    $region36: #{inception_b_forward.9} parent=5 // pred_fallthru
      _
  $region6: #{inception_b_forward.9} parent=0 // loop_footer
    %s12 = sadd.s32 1, %s8
  $region7: #{inception_b_forward.9} parent=0 // loop_footer_branch
    %7 = sbr.rel target = $region3
  $region8: #{inception_b_forward.9} parent=0 // loop_exit
    _

</llo_original>
